<compile_context>
chip_gen: v7x
topology: tpu7x:2x2x1
jax: 0.10.0
libtpu: 0.0.40
codegen_flags: <defaults>
</compile_context>

<pallas_src>
import functools

import numpy as np

import jax
import jax.numpy as jnp
from jax import lax
from jax.experimental import pallas as pl
from jax.experimental.pallas import tpu as pltpu


def _basic_block_kernel(x_ref, w1_ref, s1_ref, b1_ref, w2_ref, s2_ref, b2_ref,
                        out_ref, padx_ref, padh_ref, col_ref, *, rh):
    """BasicBlock forward for a block of B samples (NHWC, eval-mode BN).

    x_ref   : (B, H, W, C)    input block (compute dtype)
    w*_ref  : (9*C, C)        im2col conv weights, row = (kh*3+kw)*C + cin
    s*/b*   : (1, C)          folded BN scale / bias (f32)
    out_ref : (B, H, W, C)    output block (compute dtype)
    padx_ref: (H+2, W+2, C)   zero-halo scratch holding the current sample's x
    padh_ref: (H+2, W+2, C)   zero-halo scratch holding relu(bn1(conv1(x)))
    col_ref : (rh*W, 9*C)     im2col scratch for one row strip
    """
    B, H, W, C = x_ref.shape
    f32 = jnp.float32
    cdt = padx_ref.dtype
    n_strips = H // rh
    M = rh * W

    # Zero only the 1-pixel halo of both padded scratches, once per grid step.
    # The interiors are always fully overwritten and the halo is never touched
    # again, so it stays zero across all B samples and both convolutions.
    zrow = jnp.zeros((1, W + 2, C), cdt)
    zcol = jnp.zeros((H + 2, 1, C), cdt)
    for pref in (padx_ref, padh_ref):
        pref[0:1, :, :] = zrow
        pref[H + 1:H + 2, :, :] = zrow
        pref[:, 0:1, :] = zcol
        pref[:, W + 1:W + 2, :] = zcol

    def im2col_strip(pref, r0):
        # Build the (rh*W, 9*C) im2col rows for output rows [r0, r0+rh).
        for kh in range(3):
            for kw in range(3):
                tap = kh * 3 + kw
                patch = pref[r0 + kh:r0 + kh + rh, kw:kw + W, :]
                col_ref[:, tap * C:(tap + 1) * C] = patch.reshape(M, C)

    def sample_body(b, carry):
        # Stage the unpadded sample into the zero-halo scratch.
        padx_ref[1:H + 1, 1:W + 1, :] = x_ref[b]

        # conv1 -> bn1 -> relu : one K=9C matmul per row strip, result written
        # (in compute dtype) into the interior of the second padded scratch.
        for s in range(n_strips):
            r0 = s * rh
            im2col_strip(padx_ref, r0)
            acc = jnp.dot(col_ref[...], w1_ref[...],
                          preferred_element_type=f32)
            h = jnp.maximum(acc * s1_ref[...] + b1_ref[...], 0.0)
            padh_ref[1 + r0:1 + r0 + rh, 1:W + 1, :] = (
                h.reshape(rh, W, C).astype(cdt))

        # conv2 -> bn2 -> + identity -> relu : identity is read back from the
        # padded-x scratch (static slices, no extra HBM traffic).
        for s in range(n_strips):
            r0 = s * rh
            im2col_strip(padh_ref, r0)
            acc = jnp.dot(col_ref[...], w2_ref[...],
                          preferred_element_type=f32)
            h = acc * s2_ref[...] + b2_ref[...]
            ident = padx_ref[1 + r0:1 + r0 + rh, 1:W + 1, :]
            out = jnp.maximum(h + ident.astype(f32).reshape(M, C), 0.0)
            out_ref[b, r0:r0 + rh, :, :] = (
                out.reshape(rh, W, C).astype(out_ref.dtype))
        return carry

    lax.fori_loop(0, B, sample_body, None)


def _fold_bn(gamma, beta, rmean, rvar, eps, c):
    scale = (gamma / jnp.sqrt(rvar + eps)).astype(jnp.float32)
    bias = (beta - rmean * scale).astype(jnp.float32)
    return scale.reshape(1, c), bias.reshape(1, c)


def _pick_batch_block(n, per_sample_block_bytes, budget=24 << 20, cap=32):
    """Largest divisor B of n with B <= VMEM/cap limit, keeping >=2 grid steps."""
    limit = max(1, min(cap, budget // max(per_sample_block_bytes, 1)))
    best = 1
    for d in range(1, n + 1):
        if n % d == 0 and d <= limit and (n // d >= 2 or n == 1):
            best = d
    return best


def _pick_row_strip(h, w, c, target_bytes=32 << 10):
    """Largest divisor rh of h keeping the f32 strip accumulator <= target."""
    row_bytes = w * c * 4
    best = 1
    for rh in range(1, h + 1):
        if h % rh == 0 and rh * row_bytes <= target_bytes:
            best = rh
    return best


def basic_block_forward_nhwc(x_nhwc, w1, g1, be1, rm1, rv1,
                             w2, g2, be2, rm2, rv2,
                             eps=1e-5, compute_dtype=jnp.bfloat16):
    """Fused BasicBlock forward, NHWC activations (native TPU layout).

    x_nhwc: (N, H, W, C). Conv weights in PyTorch (Cout, Cin, 3, 3) layout.
    Returns NHWC activations in `compute_dtype` (keeps HBM traffic minimal
    when blocks are chained; cast at the network boundary if f32 is needed).
    """
    N, H, W, C = x_nhwc.shape
    cdt = np.dtype(compute_dtype)
    out_dt = cdt

    x_c = x_nhwc.astype(cdt)
    # (Cout, Cin, 3, 3) -> (kh, kw, Cin, Cout) -> (9*Cin, Cout)  (im2col order)
    w1_k = jnp.transpose(w1, (2, 3, 1, 0)).reshape(9 * C, C).astype(cdt)
    w2_k = jnp.transpose(w2, (2, 3, 1, 0)).reshape(9 * C, C).astype(cdt)

    s1, b1 = _fold_bn(g1, be1, rm1, rv1, eps, C)
    s2, b2 = _fold_bn(g2, be2, rm2, rv2, eps, C)

    # Batch block: amortize per-grid-step overhead / halo zeroing / weight
    # residency over B samples, sized so double-buffered in+out blocks stay
    # comfortably inside v7x's 64 MiB physical VMEM and keeping >=2 grid steps
    # so dimension_semantics=("parallel",) can shard across both TensorCores.
    per_sample = 2 * H * W * C * cdt.itemsize + 2 * H * W * C * out_dt.itemsize
    B = _pick_batch_block(N, per_sample)
    rh = _pick_row_strip(H, W, C)

    blk_in = B * H * W * C * cdt.itemsize
    blk_out = B * H * W * C * out_dt.itemsize
    pads = 2 * (H + 2) * (W + 2) * C * cdt.itemsize
    col = rh * W * 9 * C * cdt.itemsize
    weights = 2 * (2 * 9 * C * C * cdt.itemsize + 2 * C * 4 * 2)
    est = 2 * blk_in + 2 * blk_out + pads + col + weights
    vmem_limit = int(min(max(int(est * 1.4), 16 << 20), 48 << 20))

    flops = 2 * (2 * 9 * C * C) * (N * H * W)              # two 3x3 convs
    bytes_accessed = (N * H * W * C * (cdt.itemsize + out_dt.itemsize)
                      + 2 * 9 * C * C * cdt.itemsize + 4 * C * 4)

    kernel = functools.partial(_basic_block_kernel, rh=rh)

    return pl.pallas_call(
        kernel,
        out_shape=jax.ShapeDtypeStruct((N, H, W, C), out_dt),
        grid_spec=pltpu.PrefetchScalarGridSpec(
            num_scalar_prefetch=0,
            grid=(N // B,),
            in_specs=[
                pl.BlockSpec((B, H, W, C), lambda n: (n, 0, 0, 0)),   # x
                pl.BlockSpec((9 * C, C), lambda n: (0, 0)),           # w1
                pl.BlockSpec((1, C), lambda n: (0, 0)),               # s1
                pl.BlockSpec((1, C), lambda n: (0, 0)),               # b1
                pl.BlockSpec((9 * C, C), lambda n: (0, 0)),           # w2
                pl.BlockSpec((1, C), lambda n: (0, 0)),               # s2
                pl.BlockSpec((1, C), lambda n: (0, 0)),               # b2
            ],
            out_specs=pl.BlockSpec((B, H, W, C), lambda n: (n, 0, 0, 0)),
            scratch_shapes=[
                pltpu.VMEM((H + 2, W + 2, C), cdt),   # padded x
                pltpu.VMEM((H + 2, W + 2, C), cdt),   # padded relu(bn1(conv1))
                pltpu.VMEM((rh * W, 9 * C), cdt),     # im2col row strip
            ],
        ),
        compiler_params=pltpu.CompilerParams(
            dimension_semantics=("parallel",),
            vmem_limit_bytes=vmem_limit),
        cost_estimate=pl.CostEstimate(flops=flops, transcendentals=0,
                                      bytes_accessed=bytes_accessed),
    )(x_c, w1_k, s1, b1, w2_k, s2, b2)


def basic_block_forward(x_nchw, w1, g1, be1, rm1, rv1, w2, g2, be2, rm2, rv2,
                        eps=1e-5, compute_dtype=jnp.bfloat16):
    """NCHW compatibility wrapper (test-only glue to match the PyTorch layout).

    The NCHW<->NHWC transposes and the final f32 cast are extra HBM round
    trips; real networks should keep activations NHWC/bf16 end-to-end and call
    basic_block_forward_nhwc directly.
    """
    x_nhwc = jnp.transpose(x_nchw, (0, 2, 3, 1))
    out_nhwc = basic_block_forward_nhwc(x_nhwc, w1, g1, be1, rm1, rv1,
                                        w2, g2, be2, rm2, rv2,
                                        eps=eps, compute_dtype=compute_dtype)
    return jnp.transpose(out_nhwc, (0, 3, 1, 2)).astype(x_nchw.dtype)


def _reference_forward(x_nchw, w1, g1, be1, rm1, rv1, w2, g2, be2, rm2, rv2,
                       eps=1e-5):
    """Plain-JAX f32 reference (NCHW, mirrors the PyTorch forward, eval mode)."""
    dn = jax.lax.conv_dimension_numbers(x_nchw.shape, w1.shape,
                                        ('NCHW', 'OIHW', 'NCHW'))

    def conv(x, w):
        return jax.lax.conv_general_dilated(x, w, (1, 1), ((1, 1), (1, 1)),
                                            dimension_numbers=dn)

    def bn(x, g, b, rm, rv):
        g = g.reshape(1, -1, 1, 1)
        b = b.reshape(1, -1, 1, 1)
        rm = rm.reshape(1, -1, 1, 1)
        rv = rv.reshape(1, -1, 1, 1)
        return (x - rm) / jnp.sqrt(rv + eps) * g + b

    out = jax.nn.relu(bn(conv(x_nchw, w1), g1, be1, rm1, rv1))
    out = bn(conv(out, w2), g2, be2, rm2, rv2)
    return jax.nn.relu(out + x_nchw)


if __name__ == "__main__":
    def run_case(seed, n, c, h, w):
        key = jax.random.PRNGKey(seed)
        keys = jax.random.split(key, 11)
        x = jax.random.normal(keys[0], (n, c, h, w), jnp.float32)
        fan_in = c * 9
        w1 = jax.random.normal(keys[1], (c, c, 3, 3), jnp.float32) * (2.0 / fan_in) ** 0.5
        w2 = jax.random.normal(keys[2], (c, c, 3, 3), jnp.float32) * (2.0 / fan_in) ** 0.5
        g1 = 1.0 + 0.1 * jax.random.normal(keys[3], (c,), jnp.float32)
        be1 = 0.1 * jax.random.normal(keys[4], (c,), jnp.float32)
        g2 = 1.0 + 0.1 * jax.random.normal(keys[5], (c,), jnp.float32)
        be2 = 0.1 * jax.random.normal(keys[6], (c,), jnp.float32)
        rm1 = 0.1 * jax.random.normal(keys[7], (c,), jnp.float32)
        rv1 = 1.0 + 0.1 * jax.random.uniform(keys[8], (c,), jnp.float32)
        rm2 = 0.1 * jax.random.normal(keys[9], (c,), jnp.float32)
        rv2 = 1.0 + 0.1 * jax.random.uniform(keys[10], (c,), jnp.float32)

        args = (x, w1, g1, be1, rm1, rv1, w2, g2, be2, rm2, rv2)
        ref = _reference_forward(*args)

        # f32 compute path: tight check against the plain-JAX reference.
        fwd_f32 = jax.jit(functools.partial(basic_block_forward,
                                            compute_dtype=jnp.float32))
        out_f32 = jax.block_until_ready(fwd_f32(*args))
        assert out_f32.shape == (n, c, h, w)
        assert jnp.allclose(out_f32, ref, atol=1e-3, rtol=1e-3), \
            f"f32 mismatch at shape {(n, c, h, w)}"

        # bf16 compute path (the default): loose tolerance since activations,
        # weights, the identity, and the output are quantized to bf16.
        fwd_bf16 = jax.jit(functools.partial(basic_block_forward,
                                             compute_dtype=jnp.bfloat16))
        out_bf16 = jax.block_until_ready(fwd_bf16(*args))
        assert out_bf16.shape == (n, c, h, w)
        assert jnp.allclose(out_bf16, ref, atol=5e-2, rtol=5e-2), \
            f"bf16 mismatch at shape {(n, c, h, w)}"

    # Small deterministic shape consistent with the module: batch=2, C=4, 16x16.
    run_case(0, 2, 4, 16, 16)
    # A realistic CIFAR stage: exercises batch-blocking (B=2 samples per grid
    # step, grid=2) and the row-strip path (rh=16 -> 2 strips per conv).
    run_case(1, 4, 16, 32, 32)

    print("KERNEL_OK")
</pallas_src>

<mosaic_0001>
module attributes {stable_mosaic.version = 11 : i64} {
  func.func @_basic_block_kernel(%arg0: i32, %arg1: memref<1x16x16x4xf32, #tpu.memory_space<vmem>>, %arg2: memref<36x4xf32, #tpu.memory_space<vmem>>, %arg3: memref<1x4xf32, #tpu.memory_space<vmem>>, %arg4: memref<1x4xf32, #tpu.memory_space<vmem>>, %arg5: memref<36x4xf32, #tpu.memory_space<vmem>>, %arg6: memref<1x4xf32, #tpu.memory_space<vmem>>, %arg7: memref<1x4xf32, #tpu.memory_space<vmem>>, %arg8: memref<1x16x16x4xf32, #tpu.memory_space<vmem>>, %arg9: memref<18x18x4xf32, #tpu.memory_space<vmem>>, %arg10: memref<18x18x4xf32, #tpu.memory_space<vmem>>, %arg11: memref<256x36xf32, #tpu.memory_space<vmem>>) attributes {dimension_semantics = [#tpu.dimension_semantics<parallel>], iteration_bounds = array<i64: 2>, scalar_prefetch = 0 : i64, scratch_operands = 3 : i64, tpu.core_type = #tpu.core_type<tc>, window_params = [{transform_indices = @transform_0, window_bounds = array<i64: 1, 16, 16, 4>}, {pipeline_mode = #tpu.pipeline_mode<synchronous>, transform_indices = @transform_1, window_bounds = array<i64: 36, 4>}, {pipeline_mode = #tpu.pipeline_mode<synchronous>, transform_indices = @transform_2, window_bounds = array<i64: 1, 4>}, {pipeline_mode = #tpu.pipeline_mode<synchronous>, transform_indices = @transform_3, window_bounds = array<i64: 1, 4>}, {pipeline_mode = #tpu.pipeline_mode<synchronous>, transform_indices = @transform_4, window_bounds = array<i64: 36, 4>}, {pipeline_mode = #tpu.pipeline_mode<synchronous>, transform_indices = @transform_5, window_bounds = array<i64: 1, 4>}, {pipeline_mode = #tpu.pipeline_mode<synchronous>, transform_indices = @transform_6, window_bounds = array<i64: 1, 4>}, {transform_indices = @transform_7, window_bounds = array<i64: 1, 16, 16, 4>}]} {
    %cst = arith.constant 0.000000e+00 : f32
    %0 = vector.broadcast %cst : f32 to vector<1x18x4xf32>
    %cst_0 = arith.constant 0.000000e+00 : f32
    %1 = vector.broadcast %cst_0 : f32 to vector<18x1x4xf32>
    %c0 = arith.constant 0 : index
    %c0_1 = arith.constant 0 : index
    %c0_2 = arith.constant 0 : index
    %2 = vector.load %arg9[%c0, %c0_1, %c0_2] : memref<18x18x4xf32, #tpu.memory_space<vmem>>, vector<1x18x4xf32>
    tpu.vector_store %arg9[%c0, %c0_1, %c0_2], %0 {strides = array<i32>} : memref<18x18x4xf32, #tpu.memory_space<vmem>>, vector<1x18x4xf32>,
    %c17 = arith.constant 17 : index
    %c0_3 = arith.constant 0 : index
    %c0_4 = arith.constant 0 : index
    %3 = vector.load %arg9[%c17, %c0_3, %c0_4] : memref<18x18x4xf32, #tpu.memory_space<vmem>>, vector<1x18x4xf32>
    tpu.vector_store %arg9[%c17, %c0_3, %c0_4], %0 {strides = array<i32>} : memref<18x18x4xf32, #tpu.memory_space<vmem>>, vector<1x18x4xf32>,
    %c0_5 = arith.constant 0 : index
    %c0_6 = arith.constant 0 : index
    %c0_7 = arith.constant 0 : index
    %4 = vector.load %arg9[%c0_5, %c0_6, %c0_7] : memref<18x18x4xf32, #tpu.memory_space<vmem>>, vector<18x1x4xf32>
    tpu.vector_store %arg9[%c0_5, %c0_6, %c0_7], %1 {strides = array<i32>} : memref<18x18x4xf32, #tpu.memory_space<vmem>>, vector<18x1x4xf32>,
    %c0_8 = arith.constant 0 : index
    %c17_9 = arith.constant 17 : index
    %c0_10 = arith.constant 0 : index
    %5 = vector.load %arg9[%c0_8, %c17_9, %c0_10] : memref<18x18x4xf32, #tpu.memory_space<vmem>>, vector<18x1x4xf32>
    tpu.vector_store %arg9[%c0_8, %c17_9, %c0_10], %1 {strides = array<i32>} : memref<18x18x4xf32, #tpu.memory_space<vmem>>, vector<18x1x4xf32>,
    %c0_11 = arith.constant 0 : index
    %c0_12 = arith.constant 0 : index
    %c0_13 = arith.constant 0 : index
    %6 = vector.load %arg10[%c0_11, %c0_12, %c0_13] : memref<18x18x4xf32, #tpu.memory_space<vmem>>, vector<1x18x4xf32>
    tpu.vector_store %arg10[%c0_11, %c0_12, %c0_13], %0 {strides = array<i32>} : memref<18x18x4xf32, #tpu.memory_space<vmem>>, vector<1x18x4xf32>,
    %c17_14 = arith.constant 17 : index
    %c0_15 = arith.constant 0 : index
    %c0_16 = arith.constant 0 : index
    %7 = vector.load %arg10[%c17_14, %c0_15, %c0_16] : memref<18x18x4xf32, #tpu.memory_space<vmem>>, vector<1x18x4xf32>
    tpu.vector_store %arg10[%c17_14, %c0_15, %c0_16], %0 {strides = array<i32>} : memref<18x18x4xf32, #tpu.memory_space<vmem>>, vector<1x18x4xf32>,
    %c0_17 = arith.constant 0 : index
    %c0_18 = arith.constant 0 : index
    %c0_19 = arith.constant 0 : index
    %8 = vector.load %arg10[%c0_17, %c0_18, %c0_19] : memref<18x18x4xf32, #tpu.memory_space<vmem>>, vector<18x1x4xf32>
    tpu.vector_store %arg10[%c0_17, %c0_18, %c0_19], %1 {strides = array<i32>} : memref<18x18x4xf32, #tpu.memory_space<vmem>>, vector<18x1x4xf32>,
    %c0_20 = arith.constant 0 : index
    %c17_21 = arith.constant 17 : index
    %c0_22 = arith.constant 0 : index
    %9 = vector.load %arg10[%c0_20, %c17_21, %c0_22] : memref<18x18x4xf32, #tpu.memory_space<vmem>>, vector<18x1x4xf32>
    tpu.vector_store %arg10[%c0_20, %c17_21, %c0_22], %1 {strides = array<i32>} : memref<18x18x4xf32, #tpu.memory_space<vmem>>, vector<18x1x4xf32>,
    %c0_i32 = arith.constant 0 : i32
    %10 = arith.index_cast %c0_i32 : i32 to index
    %c0_23 = arith.constant 0 : index
    %c0_24 = arith.constant 0 : index
    %c0_25 = arith.constant 0 : index
    %11 = vector.load %arg1[%10, %c0_23, %c0_24, %c0_25] : memref<1x16x16x4xf32, #tpu.memory_space<vmem>>, vector<1x16x16x4xf32>
    %12 = vector.shape_cast %11 : vector<1x16x16x4xf32> to vector<16x16x4xf32>
    %c1 = arith.constant 1 : index
    %c1_26 = arith.constant 1 : index
    %c0_27 = arith.constant 0 : index
    %13 = vector.load %arg9[%c1, %c1_26, %c0_27] : memref<18x18x4xf32, #tpu.memory_space<vmem>>, vector<16x16x4xf32>
    tpu.vector_store %arg9[%c1, %c1_26, %c0_27], %12 {strides = array<i32>} : memref<18x18x4xf32, #tpu.memory_space<vmem>>, vector<16x16x4xf32>,
    %c0_28 = arith.constant 0 : index
    %c0_29 = arith.constant 0 : index
    %c0_30 = arith.constant 0 : index
    %14 = vector.load %arg9[%c0_28, %c0_29, %c0_30] : memref<18x18x4xf32, #tpu.memory_space<vmem>>, vector<16x16x4xf32>
    %15 = vector.shape_cast %14 : vector<16x16x4xf32> to vector<256x4xf32>
    %c0_31 = arith.constant 0 : index
    %c0_32 = arith.constant 0 : index
    %16 = vector.load %arg11[%c0_31, %c0_32] : memref<256x36xf32, #tpu.memory_space<vmem>>, vector<256x4xf32>
    tpu.vector_store %arg11[%c0_31, %c0_32], %15 {strides = array<i32>} : memref<256x36xf32, #tpu.memory_space<vmem>>, vector<256x4xf32>,
    %c0_33 = arith.constant 0 : index
    %c1_34 = arith.constant 1 : index
    %c0_35 = arith.constant 0 : index
    %17 = vector.load %arg9[%c0_33, %c1_34, %c0_35] : memref<18x18x4xf32, #tpu.memory_space<vmem>>, vector<16x16x4xf32>
    %18 = vector.shape_cast %17 : vector<16x16x4xf32> to vector<256x4xf32>
    %c0_36 = arith.constant 0 : index
    %c4 = arith.constant 4 : index
    %19 = vector.load %arg11[%c0_36, %c4] : memref<256x36xf32, #tpu.memory_space<vmem>>, vector<256x4xf32>
    tpu.vector_store %arg11[%c0_36, %c4], %18 {strides = array<i32>} : memref<256x36xf32, #tpu.memory_space<vmem>>, vector<256x4xf32>,
    %c0_37 = arith.constant 0 : index
    %c2 = arith.constant 2 : index
    %c0_38 = arith.constant 0 : index
    %20 = vector.load %arg9[%c0_37, %c2, %c0_38] : memref<18x18x4xf32, #tpu.memory_space<vmem>>, vector<16x16x4xf32>
    %21 = vector.shape_cast %20 : vector<16x16x4xf32> to vector<256x4xf32>
    %c0_39 = arith.constant 0 : index
    %c8 = arith.constant 8 : index
    %22 = vector.load %arg11[%c0_39, %c8] : memref<256x36xf32, #tpu.memory_space<vmem>>, vector<256x4xf32>
    tpu.vector_store %arg11[%c0_39, %c8], %21 {strides = array<i32>} : memref<256x36xf32, #tpu.memory_space<vmem>>, vector<256x4xf32>,
    %c1_40 = arith.constant 1 : index
    %c0_41 = arith.constant 0 : index
    %c0_42 = arith.constant 0 : index
    %23 = vector.load %arg9[%c1_40, %c0_41, %c0_42] : memref<18x18x4xf32, #tpu.memory_space<vmem>>, vector<16x16x4xf32>
    %24 = vector.shape_cast %23 : vector<16x16x4xf32> to vector<256x4xf32>
    %c0_43 = arith.constant 0 : index
    %c12 = arith.constant 12 : index
    %25 = vector.load %arg11[%c0_43, %c12] : memref<256x36xf32, #tpu.memory_space<vmem>>, vector<256x4xf32>
    tpu.vector_store %arg11[%c0_43, %c12], %24 {strides = array<i32>} : memref<256x36xf32, #tpu.memory_space<vmem>>, vector<256x4xf32>,
    %c1_44 = arith.constant 1 : index
    %c1_45 = arith.constant 1 : index
    %c0_46 = arith.constant 0 : index
    %26 = vector.load %arg9[%c1_44, %c1_45, %c0_46] : memref<18x18x4xf32, #tpu.memory_space<vmem>>, vector<16x16x4xf32>
    %27 = vector.shape_cast %26 : vector<16x16x4xf32> to vector<256x4xf32>
    %c0_47 = arith.constant 0 : index
    %c16 = arith.constant 16 : index
    %28 = vector.load %arg11[%c0_47, %c16] : memref<256x36xf32, #tpu.memory_space<vmem>>, vector<256x4xf32>
    tpu.vector_store %arg11[%c0_47, %c16], %27 {strides = array<i32>} : memref<256x36xf32, #tpu.memory_space<vmem>>, vector<256x4xf32>,
    %c1_48 = arith.constant 1 : index
    %c2_49 = arith.constant 2 : index
    %c0_50 = arith.constant 0 : index
    %29 = vector.load %arg9[%c1_48, %c2_49, %c0_50] : memref<18x18x4xf32, #tpu.memory_space<vmem>>, vector<16x16x4xf32>
    %30 = vector.shape_cast %29 : vector<16x16x4xf32> to vector<256x4xf32>
    %c0_51 = arith.constant 0 : index
    %c20 = arith.constant 20 : index
    %31 = vector.load %arg11[%c0_51, %c20] : memref<256x36xf32, #tpu.memory_space<vmem>>, vector<256x4xf32>
    tpu.vector_store %arg11[%c0_51, %c20], %30 {strides = array<i32>} : memref<256x36xf32, #tpu.memory_space<vmem>>, vector<256x4xf32>,
    %c2_52 = arith.constant 2 : index
    %c0_53 = arith.constant 0 : index
    %c0_54 = arith.constant 0 : index
    %32 = vector.load %arg9[%c2_52, %c0_53, %c0_54] : memref<18x18x4xf32, #tpu.memory_space<vmem>>, vector<16x16x4xf32>
    %33 = vector.shape_cast %32 : vector<16x16x4xf32> to vector<256x4xf32>
    %c0_55 = arith.constant 0 : index
    %c24 = arith.constant 24 : index
    %34 = vector.load %arg11[%c0_55, %c24] : memref<256x36xf32, #tpu.memory_space<vmem>>, vector<256x4xf32>
    tpu.vector_store %arg11[%c0_55, %c24], %33 {strides = array<i32>} : memref<256x36xf32, #tpu.memory_space<vmem>>, vector<256x4xf32>,
    %c2_56 = arith.constant 2 : index
    %c1_57 = arith.constant 1 : index
    %c0_58 = arith.constant 0 : index
    %35 = vector.load %arg9[%c2_56, %c1_57, %c0_58] : memref<18x18x4xf32, #tpu.memory_space<vmem>>, vector<16x16x4xf32>
    %36 = vector.shape_cast %35 : vector<16x16x4xf32> to vector<256x4xf32>
    %c0_59 = arith.constant 0 : index
    %c28 = arith.constant 28 : index
    %37 = vector.load %arg11[%c0_59, %c28] : memref<256x36xf32, #tpu.memory_space<vmem>>, vector<256x4xf32>
    tpu.vector_store %arg11[%c0_59, %c28], %36 {strides = array<i32>} : memref<256x36xf32, #tpu.memory_space<vmem>>, vector<256x4xf32>,
    %c2_60 = arith.constant 2 : index
    %c2_61 = arith.constant 2 : index
    %c0_62 = arith.constant 0 : index
    %38 = vector.load %arg9[%c2_60, %c2_61, %c0_62] : memref<18x18x4xf32, #tpu.memory_space<vmem>>, vector<16x16x4xf32>
    %39 = vector.shape_cast %38 : vector<16x16x4xf32> to vector<256x4xf32>
    %c0_63 = arith.constant 0 : index
    %c32 = arith.constant 32 : index
    %40 = vector.load %arg11[%c0_63, %c32] : memref<256x36xf32, #tpu.memory_space<vmem>>, vector<256x4xf32>
    tpu.vector_store %arg11[%c0_63, %c32], %39 {strides = array<i32>} : memref<256x36xf32, #tpu.memory_space<vmem>>, vector<256x4xf32>,
    %c0_64 = arith.constant 0 : index
    %c0_65 = arith.constant 0 : index
    %41 = vector.load %arg11[%c0_64, %c0_65] : memref<256x36xf32, #tpu.memory_space<vmem>>, vector<256x36xf32>
    %c0_66 = arith.constant 0 : index
    %c0_67 = arith.constant 0 : index
    %42 = vector.load %arg2[%c0_66, %c0_67] : memref<36x4xf32, #tpu.memory_space<vmem>>, vector<36x4xf32>
    %cst_68 = arith.constant dense<0.000000e+00> : vector<256x4xf32>
    %43 = tpu.matmul %41, %42, %cst_68 {dimension_numbers = #tpu.dot_dimension_numbers<[1], [0], [0], [1], [0, 0, 1, 1], [], []>} : vector<256x36xf32>, vector<36x4xf32>, vector<256x4xf32> -> vector<256x4xf32>
    %c0_69 = arith.constant 0 : index
    %c0_70 = arith.constant 0 : index
    %44 = vector.load %arg3[%c0_69, %c0_70] : memref<1x4xf32, #tpu.memory_space<vmem>>, vector<1x4xf32>
    %45 = vector.broadcast %44 : vector<1x4xf32> to vector<256x4xf32>
    %46 = arith.mulf %43, %45 : vector<256x4xf32>
    %c0_71 = arith.constant 0 : index
    %c0_72 = arith.constant 0 : index
    %47 = vector.load %arg4[%c0_71, %c0_72] : memref<1x4xf32, #tpu.memory_space<vmem>>, vector<1x4xf32>
    %48 = vector.broadcast %47 : vector<1x4xf32> to vector<256x4xf32>
    %49 = arith.addf %46, %48 : vector<256x4xf32>
    %cst_73 = arith.constant 0.000000e+00 : f32
    %50 = vector.broadcast %cst_73 : f32 to vector<256x4xf32>
    %51 = arith.maximumf %49, %50 : vector<256x4xf32>
    %52 = vector.shape_cast %51 : vector<256x4xf32> to vector<16x16x4xf32>
    %c1_74 = arith.constant 1 : index
    %c1_75 = arith.constant 1 : index
    %c0_76 = arith.constant 0 : index
    %53 = vector.load %arg10[%c1_74, %c1_75, %c0_76] : memref<18x18x4xf32, #tpu.memory_space<vmem>>, vector<16x16x4xf32>
    tpu.vector_store %arg10[%c1_74, %c1_75, %c0_76], %52 {strides = array<i32>} : memref<18x18x4xf32, #tpu.memory_space<vmem>>, vector<16x16x4xf32>,
    %c0_77 = arith.constant 0 : index
    %c0_78 = arith.constant 0 : index
    %c0_79 = arith.constant 0 : index
    %54 = vector.load %arg10[%c0_77, %c0_78, %c0_79] : memref<18x18x4xf32, #tpu.memory_space<vmem>>, vector<16x16x4xf32>
    %55 = vector.shape_cast %54 : vector<16x16x4xf32> to vector<256x4xf32>
    %c0_80 = arith.constant 0 : index
    %c0_81 = arith.constant 0 : index
    %56 = vector.load %arg11[%c0_80, %c0_81] : memref<256x36xf32, #tpu.memory_space<vmem>>, vector<256x4xf32>
    tpu.vector_store %arg11[%c0_80, %c0_81], %55 {strides = array<i32>} : memref<256x36xf32, #tpu.memory_space<vmem>>, vector<256x4xf32>,
    %c0_82 = arith.constant 0 : index
    %c1_83 = arith.constant 1 : index
    %c0_84 = arith.constant 0 : index
    %57 = vector.load %arg10[%c0_82, %c1_83, %c0_84] : memref<18x18x4xf32, #tpu.memory_space<vmem>>, vector<16x16x4xf32>
    %58 = vector.shape_cast %57 : vector<16x16x4xf32> to vector<256x4xf32>
    %c0_85 = arith.constant 0 : index
    %c4_86 = arith.constant 4 : index
    %59 = vector.load %arg11[%c0_85, %c4_86] : memref<256x36xf32, #tpu.memory_space<vmem>>, vector<256x4xf32>
    tpu.vector_store %arg11[%c0_85, %c4_86], %58 {strides = array<i32>} : memref<256x36xf32, #tpu.memory_space<vmem>>, vector<256x4xf32>,
    %c0_87 = arith.constant 0 : index
    %c2_88 = arith.constant 2 : index
    %c0_89 = arith.constant 0 : index
    %60 = vector.load %arg10[%c0_87, %c2_88, %c0_89] : memref<18x18x4xf32, #tpu.memory_space<vmem>>, vector<16x16x4xf32>
    %61 = vector.shape_cast %60 : vector<16x16x4xf32> to vector<256x4xf32>
    %c0_90 = arith.constant 0 : index
    %c8_91 = arith.constant 8 : index
    %62 = vector.load %arg11[%c0_90, %c8_91] : memref<256x36xf32, #tpu.memory_space<vmem>>, vector<256x4xf32>
    tpu.vector_store %arg11[%c0_90, %c8_91], %61 {strides = array<i32>} : memref<256x36xf32, #tpu.memory_space<vmem>>, vector<256x4xf32>,
    %c1_92 = arith.constant 1 : index
    %c0_93 = arith.constant 0 : index
    %c0_94 = arith.constant 0 : index
    %63 = vector.load %arg10[%c1_92, %c0_93, %c0_94] : memref<18x18x4xf32, #tpu.memory_space<vmem>>, vector<16x16x4xf32>
    %64 = vector.shape_cast %63 : vector<16x16x4xf32> to vector<256x4xf32>
    %c0_95 = arith.constant 0 : index
    %c12_96 = arith.constant 12 : index
    %65 = vector.load %arg11[%c0_95, %c12_96] : memref<256x36xf32, #tpu.memory_space<vmem>>, vector<256x4xf32>
    tpu.vector_store %arg11[%c0_95, %c12_96], %64 {strides = array<i32>} : memref<256x36xf32, #tpu.memory_space<vmem>>, vector<256x4xf32>,
    %c1_97 = arith.constant 1 : index
    %c1_98 = arith.constant 1 : index
    %c0_99 = arith.constant 0 : index
    %66 = vector.load %arg10[%c1_97, %c1_98, %c0_99] : memref<18x18x4xf32, #tpu.memory_space<vmem>>, vector<16x16x4xf32>
    %67 = vector.shape_cast %66 : vector<16x16x4xf32> to vector<256x4xf32>
    %c0_100 = arith.constant 0 : index
    %c16_101 = arith.constant 16 : index
    %68 = vector.load %arg11[%c0_100, %c16_101] : memref<256x36xf32, #tpu.memory_space<vmem>>, vector<256x4xf32>
    tpu.vector_store %arg11[%c0_100, %c16_101], %67 {strides = array<i32>} : memref<256x36xf32, #tpu.memory_space<vmem>>, vector<256x4xf32>,
    %c1_102 = arith.constant 1 : index
    %c2_103 = arith.constant 2 : index
    %c0_104 = arith.constant 0 : index
    %69 = vector.load %arg10[%c1_102, %c2_103, %c0_104] : memref<18x18x4xf32, #tpu.memory_space<vmem>>, vector<16x16x4xf32>
    %70 = vector.shape_cast %69 : vector<16x16x4xf32> to vector<256x4xf32>
    %c0_105 = arith.constant 0 : index
    %c20_106 = arith.constant 20 : index
    %71 = vector.load %arg11[%c0_105, %c20_106] : memref<256x36xf32, #tpu.memory_space<vmem>>, vector<256x4xf32>
    tpu.vector_store %arg11[%c0_105, %c20_106], %70 {strides = array<i32>} : memref<256x36xf32, #tpu.memory_space<vmem>>, vector<256x4xf32>,
    %c2_107 = arith.constant 2 : index
    %c0_108 = arith.constant 0 : index
    %c0_109 = arith.constant 0 : index
    %72 = vector.load %arg10[%c2_107, %c0_108, %c0_109] : memref<18x18x4xf32, #tpu.memory_space<vmem>>, vector<16x16x4xf32>
    %73 = vector.shape_cast %72 : vector<16x16x4xf32> to vector<256x4xf32>
    %c0_110 = arith.constant 0 : index
    %c24_111 = arith.constant 24 : index
    %74 = vector.load %arg11[%c0_110, %c24_111] : memref<256x36xf32, #tpu.memory_space<vmem>>, vector<256x4xf32>
    tpu.vector_store %arg11[%c0_110, %c24_111], %73 {strides = array<i32>} : memref<256x36xf32, #tpu.memory_space<vmem>>, vector<256x4xf32>,
    %c2_112 = arith.constant 2 : index
    %c1_113 = arith.constant 1 : index
    %c0_114 = arith.constant 0 : index
    %75 = vector.load %arg10[%c2_112, %c1_113, %c0_114] : memref<18x18x4xf32, #tpu.memory_space<vmem>>, vector<16x16x4xf32>
    %76 = vector.shape_cast %75 : vector<16x16x4xf32> to vector<256x4xf32>
    %c0_115 = arith.constant 0 : index
    %c28_116 = arith.constant 28 : index
    %77 = vector.load %arg11[%c0_115, %c28_116] : memref<256x36xf32, #tpu.memory_space<vmem>>, vector<256x4xf32>
    tpu.vector_store %arg11[%c0_115, %c28_116], %76 {strides = array<i32>} : memref<256x36xf32, #tpu.memory_space<vmem>>, vector<256x4xf32>,
    %c2_117 = arith.constant 2 : index
    %c2_118 = arith.constant 2 : index
    %c0_119 = arith.constant 0 : index
    %78 = vector.load %arg10[%c2_117, %c2_118, %c0_119] : memref<18x18x4xf32, #tpu.memory_space<vmem>>, vector<16x16x4xf32>
    %79 = vector.shape_cast %78 : vector<16x16x4xf32> to vector<256x4xf32>
    %c0_120 = arith.constant 0 : index
    %c32_121 = arith.constant 32 : index
    %80 = vector.load %arg11[%c0_120, %c32_121] : memref<256x36xf32, #tpu.memory_space<vmem>>, vector<256x4xf32>
    tpu.vector_store %arg11[%c0_120, %c32_121], %79 {strides = array<i32>} : memref<256x36xf32, #tpu.memory_space<vmem>>, vector<256x4xf32>,
    %c0_122 = arith.constant 0 : index
    %c0_123 = arith.constant 0 : index
    %81 = vector.load %arg11[%c0_122, %c0_123] : memref<256x36xf32, #tpu.memory_space<vmem>>, vector<256x36xf32>
    %c0_124 = arith.constant 0 : index
    %c0_125 = arith.constant 0 : index
    %82 = vector.load %arg5[%c0_124, %c0_125] : memref<36x4xf32, #tpu.memory_space<vmem>>, vector<36x4xf32>
    %cst_126 = arith.constant dense<0.000000e+00> : vector<256x4xf32>
    %83 = tpu.matmul %81, %82, %cst_126 {dimension_numbers = #tpu.dot_dimension_numbers<[1], [0], [0], [1], [0, 0, 1, 1], [], []>} : vector<256x36xf32>, vector<36x4xf32>, vector<256x4xf32> -> vector<256x4xf32>
    %c0_127 = arith.constant 0 : index
    %c0_128 = arith.constant 0 : index
    %84 = vector.load %arg6[%c0_127, %c0_128] : memref<1x4xf32, #tpu.memory_space<vmem>>, vector<1x4xf32>
    %85 = vector.broadcast %84 : vector<1x4xf32> to vector<256x4xf32>
    %86 = arith.mulf %83, %85 : vector<256x4xf32>
    %c0_129 = arith.constant 0 : index
    %c0_130 = arith.constant 0 : index
    %87 = vector.load %arg7[%c0_129, %c0_130] : memref<1x4xf32, #tpu.memory_space<vmem>>, vector<1x4xf32>
    %88 = vector.broadcast %87 : vector<1x4xf32> to vector<256x4xf32>
    %89 = arith.addf %86, %88 : vector<256x4xf32>
    %c1_131 = arith.constant 1 : index
    %c1_132 = arith.constant 1 : index
    %c0_133 = arith.constant 0 : index
    %90 = vector.load %arg9[%c1_131, %c1_132, %c0_133] : memref<18x18x4xf32, #tpu.memory_space<vmem>>, vector<16x16x4xf32>
    %91 = vector.shape_cast %90 : vector<16x16x4xf32> to vector<256x4xf32>
    %92 = arith.addf %89, %91 : vector<256x4xf32>
    %cst_134 = arith.constant 0.000000e+00 : f32
    %93 = vector.broadcast %cst_134 : f32 to vector<256x4xf32>
    %94 = arith.maximumf %92, %93 : vector<256x4xf32>
    %95 = vector.shape_cast %94 : vector<256x4xf32> to vector<16x16x4xf32>
    %96 = arith.index_cast %c0_i32 : i32 to index
    %c0_135 = arith.constant 0 : index
    %c0_136 = arith.constant 0 : index
    %c0_137 = arith.constant 0 : index
    %97 = vector.load %arg8[%96, %c0_135, %c0_136, %c0_137] : memref<1x16x16x4xf32, #tpu.memory_space<vmem>>, vector<1x16x16x4xf32>
    %98 = vector.shape_cast %97 : vector<1x16x16x4xf32> to vector<16x16x4xf32>
    %99 = vector.shape_cast %95 : vector<16x16x4xf32> to vector<1x16x16x4xf32>
    tpu.vector_store %arg8[%96, %c0_135, %c0_136, %c0_137], %99 {strides = array<i32>} : memref<1x16x16x4xf32, #tpu.memory_space<vmem>>, vector<1x16x16x4xf32>,
    %c1_i32 = arith.constant 1 : i32
    return
  }
  func.func @transform_0(%arg0: i32) -> (i32, i32, i32, i32) {
    %c0_i32 = arith.constant 0 : i32
    %c0_i32_0 = arith.constant 0 : i32
    %c0_i32_1 = arith.constant 0 : i32
    %c0_i32_2 = arith.constant 0 : i32
    return %arg0, %c0_i32, %c0_i32_0, %c0_i32_1 : i32, i32, i32, i32
  }
  func.func @transform_1(%arg0: i32) -> (i32, i32) {
    %c0_i32 = arith.constant 0 : i32
    %c0_i32_0 = arith.constant 0 : i32
    %c0_i32_1 = arith.constant 0 : i32
    return %c0_i32, %c0_i32_0 : i32, i32
  }
  func.func @transform_2(%arg0: i32) -> (i32, i32) {
    %c0_i32 = arith.constant 0 : i32
    %c0_i32_0 = arith.constant 0 : i32
    %c0_i32_1 = arith.constant 0 : i32
    return %c0_i32, %c0_i32_0 : i32, i32
  }
  func.func @transform_3(%arg0: i32) -> (i32, i32) {
    %c0_i32 = arith.constant 0 : i32
    %c0_i32_0 = arith.constant 0 : i32
    %c0_i32_1 = arith.constant 0 : i32
    return %c0_i32, %c0_i32_0 : i32, i32
  }
  func.func @transform_4(%arg0: i32) -> (i32, i32) {
    %c0_i32 = arith.constant 0 : i32
    %c0_i32_0 = arith.constant 0 : i32
    %c0_i32_1 = arith.constant 0 : i32
    return %c0_i32, %c0_i32_0 : i32, i32
  }
  func.func @transform_5(%arg0: i32) -> (i32, i32) {
    %c0_i32 = arith.constant 0 : i32
    %c0_i32_0 = arith.constant 0 : i32
    %c0_i32_1 = arith.constant 0 : i32
    return %c0_i32, %c0_i32_0 : i32, i32
  }
  func.func @transform_6(%arg0: i32) -> (i32, i32) {
    %c0_i32 = arith.constant 0 : i32
    %c0_i32_0 = arith.constant 0 : i32
    %c0_i32_1 = arith.constant 0 : i32
    return %c0_i32, %c0_i32_0 : i32, i32
  }
  func.func @transform_7(%arg0: i32) -> (i32, i32, i32, i32) {
    %c0_i32 = arith.constant 0 : i32
    %c0_i32_0 = arith.constant 0 : i32
    %c0_i32_1 = arith.constant 0 : i32
    %c0_i32_2 = arith.constant 0 : i32
    return %arg0, %c0_i32, %c0_i32_0, %c0_i32_1 : i32, i32, i32, i32
  }
}

</mosaic_0001>

<llo_original>
// kernel: basic_block_forward.1
$region0: #{basic_block_forward.1}
  #allocation0 [shape = 'u32[]', space=smem, size = 0x4, offset = 0x4, fixed_abs, tag = 'smem constant byte address 0x4 - core index']
  #allocation1 [shape = 'u32[144,128]{1,0:T(1,128)}', space=vmem, size = 0x12000, scoped, tag = 'internal scratch']
  #allocation2 [shape = 'f32[18,18,4]{2,1,0:T(8,128)}', space=vmem, size = 0x36000, scoped, tag = 'scratch operand']
  #allocation3 [shape = 'f32[18,18,4]{2,1,0:T(8,128)}', space=vmem, size = 0x36000, scoped, tag = 'scratch operand']
  #allocation4 [shape = 'f32[256,36]{1,0:T(8,128)}', space=vmem, size = 0x20000, scoped, tag = 'scratch operand']
  %s0 = inlined_call_operand.vmem [shape: f32[2,16,16,4], index: 0, kind: input, shape index: {}]
  %s1 = inlined_call_operand.vmem [shape: f32[36,4], index: 1, kind: input, shape index: {}]
  %s2 = inlined_call_operand.vmem [shape: f32[1,4], index: 2, kind: input, shape index: {}]
  %s3 = inlined_call_operand.vmem [shape: f32[1,4], index: 3, kind: input, shape index: {}]
  %s4 = inlined_call_operand.vmem [shape: f32[36,4], index: 4, kind: input, shape index: {}]
  %s5 = inlined_call_operand.vmem [shape: f32[1,4], index: 5, kind: input, shape index: {}]
  %s6 = inlined_call_operand.vmem [shape: f32[1,4], index: 6, kind: input, shape index: {}]
  %s7 = inlined_call_operand.vmem [shape: f32[2,16,16,4], index: 7, kind: output, shape index: {}]
  %s8 = sld [smem:[#allocation0]]
  $region61: #{basic_block_forward.1} parent=0
    _
  %s10 = ssub.s32 1, %s8
  %s11 = scalar_select 0, %s10, %s8
  loop: start=0, step=1, limit=4
  $region2: #{basic_block_forward.1} parent=0 // loop_pre_header
    _
  $region3: #{basic_block_forward.1} parent=0 // loop_header
    %s13 = sphi 0, %s17
    %p14 = scmp.ge.s32.totalorder %s13, 4
    %s23 = sphi 0, %s25
    %s26 = sphi 0, %s23
    %s27 = sphi 0, %s26
    %s43 = sphi 0, %s27
    %s47 = sphi 0, %s47
    %s49 = sphi 0, %s47
    %s50 = sphi 0, %s49
    %s64 = sphi 0, %s50
    %s68 = sphi 0, %s68
    %s70 = sphi 0, %s68
    %s71 = sphi 0, %s70
    %s85 = sphi 0, %s71
    %s89 = sphi 0, %s89
    %s91 = sphi 0, %s89
    %s92 = sphi 0, %s91
    %s106 = sphi 0, %s92
    %s110 = sphi 0, %s110
    %s112 = sphi 0, %s110
    %s113 = sphi 0, %s112
    %s127 = sphi 0, %s113
    %s131 = sphi 0, %s131
    %s133 = sphi 0, %s131
    %s134 = sphi 0, %s133
    %s148 = sphi 0, %s134
    %s152 = sphi 0, %s152
    %s154 = sphi 0, %s152
    %s155 = sphi 0, %s154
    %s169 = sphi 0, %s155
    %s175 = sphi 0, %s177
    %s178 = sphi 0, %s175
    %s179 = sphi 0, %s178
    %s195 = sphi 0, %s179
  $region4: #{basic_block_forward.1} parent=0 // loop_header_branch
    %16 = sbr.rel (%p14) target = $region8
  $region5: #{basic_block_forward.1} parent=0 // loop_body
    %s18 = ssub.s32 %s13, 1
    %s19 = ssub.s32 %s13, 2
    %s20 = sadd.s32 %s13, 1
    %s21 = ssub.s32 %s13, %s20
    %p22 = scmp.eq.s32.totalorder %s21, 0
    %s24 = sadd.s32 %s23, 1
    %s25 = scalar_select %p22, %s23, %s24
    %p28 = pneg %p22
    %p29 = scmp.eq.s32.totalorder %s13, 1
    %p30 = por %p28, %p29
    %p31 = scmp.ne.s32.totalorder %s23, %s26
    %p32 = scmp.eq.s32.totalorder %s13, 0
    %p33 = por %p31, %p32
    %p34 = scmp.ne.s32.totalorder %s23, %s26
    %p35 = scmp.eq.s32.totalorder %s18, 1
    %p36 = por %p34, %p35
    %p37 = scmp.ne.s32.totalorder %s26, %s27
    %p38 = scmp.eq.s32.totalorder %s18, 0
    %p39 = por %p37, %p38
    %p40 = scmp.ne.s32.totalorder %s26, %s27
    %p41 = scmp.eq.s32.totalorder %s19, 1
    %p42 = por %p40, %p41
    %p44 = scmp.ne.s32.totalorder %s27, %s43
    %p45 = scmp.eq.s32.totalorder %s19, 0
    %p46 = por %p44, %p45
    %s48 = sadd.s32 %s47, 1
    %p51 = scmp.eq.s32.totalorder %s13, 1
    %p52 = scmp.ne.s32.totalorder %s47, %s49
    %p53 = scmp.eq.s32.totalorder %s13, 0
    %p54 = por %p52, %p53
    %p55 = scmp.ne.s32.totalorder %s47, %s49
    %p56 = scmp.eq.s32.totalorder %s18, 1
    %p57 = por %p55, %p56
    %p58 = scmp.ne.s32.totalorder %s49, %s50
    %p59 = scmp.eq.s32.totalorder %s18, 0
    %p60 = por %p58, %p59
    %p61 = scmp.ne.s32.totalorder %s49, %s50
    %p62 = scmp.eq.s32.totalorder %s19, 1
    %p63 = por %p61, %p62
    %p65 = scmp.ne.s32.totalorder %s50, %s64
    %p66 = scmp.eq.s32.totalorder %s19, 0
    %p67 = por %p65, %p66
    %s69 = sadd.s32 %s68, 1
    %p72 = scmp.eq.s32.totalorder %s13, 1
    %p73 = scmp.ne.s32.totalorder %s68, %s70
    %p74 = scmp.eq.s32.totalorder %s13, 0
    %p75 = por %p73, %p74
    %p76 = scmp.ne.s32.totalorder %s68, %s70
    %p77 = scmp.eq.s32.totalorder %s18, 1
    %p78 = por %p76, %p77
    %p79 = scmp.ne.s32.totalorder %s70, %s71
    %p80 = scmp.eq.s32.totalorder %s18, 0
    %p81 = por %p79, %p80
    %p82 = scmp.ne.s32.totalorder %s70, %s71
    %p83 = scmp.eq.s32.totalorder %s19, 1
    %p84 = por %p82, %p83
    %p86 = scmp.ne.s32.totalorder %s71, %s85
    %p87 = scmp.eq.s32.totalorder %s19, 0
    %p88 = por %p86, %p87
    %s90 = sadd.s32 %s89, 1
    %p93 = scmp.eq.s32.totalorder %s13, 1
    %p94 = scmp.ne.s32.totalorder %s89, %s91
    %p95 = scmp.eq.s32.totalorder %s13, 0
    %p96 = por %p94, %p95
    %p97 = scmp.ne.s32.totalorder %s89, %s91
    %p98 = scmp.eq.s32.totalorder %s18, 1
    %p99 = por %p97, %p98
    %p100 = scmp.ne.s32.totalorder %s91, %s92
    %p101 = scmp.eq.s32.totalorder %s18, 0
    %p102 = por %p100, %p101
    %p103 = scmp.ne.s32.totalorder %s91, %s92
    %p104 = scmp.eq.s32.totalorder %s19, 1
    %p105 = por %p103, %p104
    %p107 = scmp.ne.s32.totalorder %s92, %s106
    %p108 = scmp.eq.s32.totalorder %s19, 0
    %p109 = por %p107, %p108
    %s111 = sadd.s32 %s110, 1
    %p114 = scmp.eq.s32.totalorder %s13, 1
    %p115 = scmp.ne.s32.totalorder %s110, %s112
    %p116 = scmp.eq.s32.totalorder %s13, 0
    %p117 = por %p115, %p116
    %p118 = scmp.ne.s32.totalorder %s110, %s112
    %p119 = scmp.eq.s32.totalorder %s18, 1
    %p120 = por %p118, %p119
    %p121 = scmp.ne.s32.totalorder %s112, %s113
    %p122 = scmp.eq.s32.totalorder %s18, 0
    %p123 = por %p121, %p122
    %p124 = scmp.ne.s32.totalorder %s112, %s113
    %p125 = scmp.eq.s32.totalorder %s19, 1
    %p126 = por %p124, %p125
    %p128 = scmp.ne.s32.totalorder %s113, %s127
    %p129 = scmp.eq.s32.totalorder %s19, 0
    %p130 = por %p128, %p129
    %s132 = sadd.s32 %s131, 1
    %p135 = scmp.eq.s32.totalorder %s13, 1
    %p136 = scmp.ne.s32.totalorder %s131, %s133
    %p137 = scmp.eq.s32.totalorder %s13, 0
    %p138 = por %p136, %p137
    %p139 = scmp.ne.s32.totalorder %s131, %s133
    %p140 = scmp.eq.s32.totalorder %s18, 1
    %p141 = por %p139, %p140
    %p142 = scmp.ne.s32.totalorder %s133, %s134
    %p143 = scmp.eq.s32.totalorder %s18, 0
    %p144 = por %p142, %p143
    %p145 = scmp.ne.s32.totalorder %s133, %s134
    %p146 = scmp.eq.s32.totalorder %s19, 1
    %p147 = por %p145, %p146
    %p149 = scmp.ne.s32.totalorder %s134, %s148
    %p150 = scmp.eq.s32.totalorder %s19, 0
    %p151 = por %p149, %p150
    %s153 = sadd.s32 %s152, 1
    %p156 = scmp.eq.s32.totalorder %s13, 1
    %p157 = scmp.ne.s32.totalorder %s152, %s154
    %p158 = scmp.eq.s32.totalorder %s13, 0
    %p159 = por %p157, %p158
    %p160 = scmp.ne.s32.totalorder %s152, %s154
    %p161 = scmp.eq.s32.totalorder %s18, 1
    %p162 = por %p160, %p161
    %p163 = scmp.ne.s32.totalorder %s154, %s155
    %p164 = scmp.eq.s32.totalorder %s18, 0
    %p165 = por %p163, %p164
    %p166 = scmp.ne.s32.totalorder %s154, %s155
    %p167 = scmp.eq.s32.totalorder %s19, 1
    %p168 = por %p166, %p167
    %p170 = scmp.ne.s32.totalorder %s155, %s169
    %p171 = scmp.eq.s32.totalorder %s19, 0
    %p172 = por %p170, %p171
    %s173 = ssub.s32 %s13, %s20
    %p174 = scmp.eq.s32.totalorder %s173, 0
    %s176 = sadd.s32 %s175, 1
    %s177 = scalar_select %p174, %s175, %s176
    %p180 = pneg %p174
    %p181 = scmp.eq.s32.totalorder %s13, 1
    %p182 = por %p180, %p181
    %p183 = scmp.ne.s32.totalorder %s175, %s178
    %p184 = scmp.eq.s32.totalorder %s13, 0
    %p185 = por %p183, %p184
    %p186 = scmp.ne.s32.totalorder %s175, %s178
    %p187 = scmp.eq.s32.totalorder %s18, 1
    %p188 = por %p186, %p187
    %p189 = scmp.ne.s32.totalorder %s178, %s179
    %p190 = scmp.eq.s32.totalorder %s18, 0
    %p191 = por %p189, %p190
    %p192 = scmp.ne.s32.totalorder %s178, %s179
    %p193 = scmp.eq.s32.totalorder %s19, 1
    %p194 = por %p192, %p193
    %p196 = scmp.ne.s32.totalorder %s179, %s195
    %p197 = scmp.eq.s32.totalorder %s19, 0
    %p198 = por %p196, %p197
    %p199 = scmp.le.s32.totalorder 1, %s13
    %p200 = scmp.lt.s32.totalorder %s13, 3
    %p201 = pnand %p199, %p200
    %p202 = pneg %p201
    // Predicated region
    $region9: #{basic_block_forward.1} parent=5 // pred_check
      _
    $region10: #{basic_block_forward.1} parent=5 // pred_check_branch
      %204 = sbr.rel (%p201) target = $region12
    $region11: #{basic_block_forward.1} parent=5 // pred_region
      %s205 = ssub.s32 %s13, 1
      // Predicated region
      $region13: #{basic_block_forward.1} parent=11 // pred_check
        %p206 = pneg %p60
      $region14: #{basic_block_forward.1} parent=11 // pred_check_branch
        %208 = sbr.rel (%p206) target = $region16
      $region15: #{basic_block_forward.1} parent=11 // pred_region
        _
      $region16: #{basic_block_forward.1} parent=11 // pred_fallthru
        _
      // Predicated region
      $region17: #{basic_block_forward.1} parent=11 // pred_check
        %p209 = pneg %p81
      $region18: #{basic_block_forward.1} parent=11 // pred_check_branch
        %211 = sbr.rel (%p209) target = $region20
      $region19: #{basic_block_forward.1} parent=11 // pred_region
        _
      $region20: #{basic_block_forward.1} parent=11 // pred_fallthru
        _
      // Predicated region
      $region21: #{basic_block_forward.1} parent=11 // pred_check
        %p212 = pneg %p102
      $region22: #{basic_block_forward.1} parent=11 // pred_check_branch
        %214 = sbr.rel (%p212) target = $region24
      $region23: #{basic_block_forward.1} parent=11 // pred_region
        _
      $region24: #{basic_block_forward.1} parent=11 // pred_fallthru
        _
      // Predicated region
      $region25: #{basic_block_forward.1} parent=11 // pred_check
        %p215 = pneg %p123
      $region26: #{basic_block_forward.1} parent=11 // pred_check_branch
        %217 = sbr.rel (%p215) target = $region28
      $region27: #{basic_block_forward.1} parent=11 // pred_region
        _
      $region28: #{basic_block_forward.1} parent=11 // pred_fallthru
        _
      // Predicated region
      $region29: #{basic_block_forward.1} parent=11 // pred_check
        %p218 = pneg %p144
      $region30: #{basic_block_forward.1} parent=11 // pred_check_branch
        %220 = sbr.rel (%p218) target = $region32
      $region31: #{basic_block_forward.1} parent=11 // pred_region
        _
      $region32: #{basic_block_forward.1} parent=11 // pred_fallthru
        _
      // Predicated region
      $region33: #{basic_block_forward.1} parent=11 // pred_check
        %p221 = pneg %p165
      $region34: #{basic_block_forward.1} parent=11 // pred_check_branch
        %223 = sbr.rel (%p221) target = $region36
      $region35: #{basic_block_forward.1} parent=11 // pred_region
        _
      $region36: #{basic_block_forward.1} parent=11 // pred_fallthru
        _
    $region12: #{basic_block_forward.1} parent=5 // pred_fallthru
      _
    %p224 = scmp.lt.s32.totalorder %s13, 2
    // Predicated region
    $region37: #{basic_block_forward.1} parent=5 // pred_check
      %p225 = pneg %p224
    $region38: #{basic_block_forward.1} parent=5 // pred_check_branch
      %227 = sbr.rel (%p225) target = $region40
    $region39: #{basic_block_forward.1} parent=5 // pred_region
      // Predicated region
      $region41: #{basic_block_forward.1} parent=39 // pred_check
        %p228 = pneg %p33
      $region42: #{basic_block_forward.1} parent=39 // pred_check_branch
        %230 = sbr.rel (%p228) target = $region44
      $region43: #{basic_block_forward.1} parent=39 // pred_region
        %p231 = scmp.lt.s32.totalorder %s13, 1
        %s232 = scalar_select %p231, %s13, 1
        %s233 = smul.addr %s232, 32
        %s234 = smul.addr %s233, 8
        %s235 = scalar_lea.vmem %s0, %s234
      $region44: #{basic_block_forward.1} parent=39 // pred_fallthru
        _
    $region40: #{basic_block_forward.1} parent=5 // pred_fallthru
      _
    %p236 = scmp.le.s32.totalorder 1, %s13
    %p237 = scmp.lt.s32.totalorder %s13, 3
    %p238 = pnand %p236, %p237
    %p239 = pneg %p238
    // Predicated region
    $region45: #{basic_block_forward.1} parent=5 // pred_check
      _
    $region46: #{basic_block_forward.1} parent=5 // pred_check_branch
      %241 = sbr.rel (%p238) target = $region48
    $region47: #{basic_block_forward.1} parent=5 // pred_region
      %s242 = ssub.s32 %s13, 1
      %p243 = scmp.lt.s32.totalorder %s18, 1
      %s244 = scalar_select %p243, %s18, 1
      %s245 = smul.addr %s244, 32
      %s246 = smul.addr %s245, 8
      %s247 = scalar_lea.vmem %s0, %s246
      %p248 = pneg %p39
      %p249 = pneg %p36
      %p250 = pneg %p60
      %p251 = pneg %p57
      %p252 = pneg %p81
      %p253 = pneg %p78
      %p254 = pneg %p102
      %p255 = pneg %p99
      %p256 = pneg %p123
      %p257 = pneg %p120
      %p258 = pneg %p144
      %p259 = pneg %p141
      %p260 = pneg %p165
      %p261 = pneg %p162
      %p262 = pneg %p191
      %p263 = pneg %p188
      %p264 = scmp.lt.s32.totalorder %s18, 1
      %s265 = scalar_select %p264, %s18, 1
      %s266 = smul.addr %s265, 32
      %s267 = smul.addr %s266, 8
      %s268 = scalar_lea.vmem %s7, %s267
      %p269 = scmp.lt.s32.totalorder %s18, 1
      %s270 = scalar_select %p269, %s18, 1
      %s271 = smul.addr %s270, 32
      %s272 = smul.addr %s271, 8
      %s273 = scalar_lea.vmem %s0, %s272
      %p274 = scmp.lt.s32.totalorder %s18, 1
      %s275 = scalar_select %p274, %s18, 1
      %s276 = smul.addr %s275, 32
      %s277 = smul.addr %s276, 8
      %s278 = scalar_lea.vmem %s7, %s277
      %vm279 = vcmask 31744
      %280 = vst.msk [vmem:[#allocation2] sm:$0xff] %vm279, 0.0
      %281 = vst.msk [vmem:[#allocation2 + $0x8] sm:$0xff] %vm279, 0.0
      %vm282 = vcmask 25600
      %283 = vst.msk [vmem:[#allocation2 + $0x10] sm:$0x3] %vm282, 0.0
      %s284 = scalar_lea.vmem [#allocation2], 408
      %285 = vst.msk [vmem:[%s284] sm:$0xff] %vm279, 0.0
      %286 = vst.msk [vmem:[%s284 + $0x8] sm:$0xff] %vm279, 0.0
      %287 = vst.msk [vmem:[%s284 + $0x10] sm:$0x3] %vm282, 0.0
      %vm288 = vcmask 24576
      %289 = vst.msk [vmem:[#allocation2] sm:$0x1] %vm288, 0.0
      %290 = vst.msk [vmem:[#allocation2 + $0x18] sm:$0x1] %vm288, 0.0
      %291 = vst.msk [vmem:[#allocation2 + $0x30] sm:$0x1] %vm288, 0.0
      %292 = vst.msk [vmem:[#allocation2 + $0x48] sm:$0x1] %vm288, 0.0
      %293 = vst.msk [vmem:[#allocation2 + $0x60] sm:$0x1] %vm288, 0.0
      %294 = vst.msk [vmem:[#allocation2 + $0x78] sm:$0x1] %vm288, 0.0
      %295 = vst.msk [vmem:[#allocation2 + $0x90] sm:$0x1] %vm288, 0.0
      %296 = vst.msk [vmem:[#allocation2 + $0xa8] sm:$0x1] %vm288, 0.0
      %297 = vst.msk [vmem:[#allocation2 + $0xc0] sm:$0x1] %vm288, 0.0
      %298 = vst.msk [vmem:[#allocation2 + $0xd8] sm:$0x1] %vm288, 0.0
      %299 = vst.msk [vmem:[#allocation2 + $0xf0] sm:$0x1] %vm288, 0.0
      %300 = vst.msk [vmem:[#allocation2 + $0x108] sm:$0x1] %vm288, 0.0
      %301 = vst.msk [vmem:[#allocation2 + $0x120] sm:$0x1] %vm288, 0.0
      %302 = vst.msk [vmem:[#allocation2 + $0x138] sm:$0x1] %vm288, 0.0
      %303 = vst.msk [vmem:[#allocation2 + $0x150] sm:$0x1] %vm288, 0.0
      %304 = vst.msk [vmem:[#allocation2 + $0x168] sm:$0x1] %vm288, 0.0
      %305 = vst.msk [vmem:[#allocation2 + $0x180] sm:$0x1] %vm288, 0.0
      %306 = vst.msk [vmem:[#allocation2 + $0x198] sm:$0x1] %vm288, 0.0
      %307 = vst.msk [vmem:[#allocation2 + $0x11] sm:$0x1] %vm288, 0.0
      %308 = vst.msk [vmem:[#allocation2 + $0x29] sm:$0x1] %vm288, 0.0
      %309 = vst.msk [vmem:[#allocation2 + $0x41] sm:$0x1] %vm288, 0.0
      %310 = vst.msk [vmem:[#allocation2 + $0x59] sm:$0x1] %vm288, 0.0
      %311 = vst.msk [vmem:[#allocation2 + $0x71] sm:$0x1] %vm288, 0.0
      %312 = vst.msk [vmem:[#allocation2 + $0x89] sm:$0x1] %vm288, 0.0
      %313 = vst.msk [vmem:[#allocation2 + $0xa1] sm:$0x1] %vm288, 0.0
      %314 = vst.msk [vmem:[#allocation2 + $0xb9] sm:$0x1] %vm288, 0.0
      %315 = vst.msk [vmem:[#allocation2 + $0xd1] sm:$0x1] %vm288, 0.0
      %316 = vst.msk [vmem:[#allocation2 + $0xe9] sm:$0x1] %vm288, 0.0
      %317 = vst.msk [vmem:[#allocation2 + $0x101] sm:$0x1] %vm288, 0.0
      %318 = vst.msk [vmem:[#allocation2 + $0x119] sm:$0x1] %vm288, 0.0
      %319 = vst.msk [vmem:[#allocation2 + $0x131] sm:$0x1] %vm288, 0.0
      %320 = vst.msk [vmem:[#allocation2 + $0x149] sm:$0x1] %vm288, 0.0
      %321 = vst.msk [vmem:[#allocation2 + $0x161] sm:$0x1] %vm288, 0.0
      %322 = vst.msk [vmem:[#allocation2 + $0x179] sm:$0x1] %vm288, 0.0
      %323 = vst.msk [vmem:[#allocation2 + $0x191] sm:$0x1] %vm288, 0.0
      %324 = vst.msk [vmem:[#allocation2 + $0x1a9] sm:$0x1] %vm288, 0.0
      %325 = vst.msk [vmem:[#allocation3] sm:$0xff] %vm279, 0.0
      %326 = vst.msk [vmem:[#allocation3 + $0x8] sm:$0xff] %vm279, 0.0
      %327 = vst.msk [vmem:[#allocation3 + $0x10] sm:$0x3] %vm282, 0.0
      %s328 = scalar_lea.vmem [#allocation3], 408
      %329 = vst.msk [vmem:[%s328] sm:$0xff] %vm279, 0.0
      %330 = vst.msk [vmem:[%s328 + $0x8] sm:$0xff] %vm279, 0.0
      %331 = vst.msk [vmem:[%s328 + $0x10] sm:$0x3] %vm282, 0.0
      %332 = vst.msk [vmem:[#allocation3] sm:$0x1] %vm288, 0.0
      %333 = vst.msk [vmem:[#allocation3 + $0x18] sm:$0x1] %vm288, 0.0
      %334 = vst.msk [vmem:[#allocation3 + $0x30] sm:$0x1] %vm288, 0.0
      %335 = vst.msk [vmem:[#allocation3 + $0x48] sm:$0x1] %vm288, 0.0
      %336 = vst.msk [vmem:[#allocation3 + $0x60] sm:$0x1] %vm288, 0.0
      %337 = vst.msk [vmem:[#allocation3 + $0x78] sm:$0x1] %vm288, 0.0
      %338 = vst.msk [vmem:[#allocation3 + $0x90] sm:$0x1] %vm288, 0.0
      %339 = vst.msk [vmem:[#allocation3 + $0xa8] sm:$0x1] %vm288, 0.0
      %340 = vst.msk [vmem:[#allocation3 + $0xc0] sm:$0x1] %vm288, 0.0
      %341 = vst.msk [vmem:[#allocation3 + $0xd8] sm:$0x1] %vm288, 0.0
      %342 = vst.msk [vmem:[#allocation3 + $0xf0] sm:$0x1] %vm288, 0.0
      %343 = vst.msk [vmem:[#allocation3 + $0x108] sm:$0x1] %vm288, 0.0
      %344 = vst.msk [vmem:[#allocation3 + $0x120] sm:$0x1] %vm288, 0.0
      %345 = vst.msk [vmem:[#allocation3 + $0x138] sm:$0x1] %vm288, 0.0
      %346 = vst.msk [vmem:[#allocation3 + $0x150] sm:$0x1] %vm288, 0.0
      %347 = vst.msk [vmem:[#allocation3 + $0x168] sm:$0x1] %vm288, 0.0
      %348 = vst.msk [vmem:[#allocation3 + $0x180] sm:$0x1] %vm288, 0.0
      %349 = vst.msk [vmem:[#allocation3 + $0x198] sm:$0x1] %vm288, 0.0
      %350 = vst.msk [vmem:[#allocation3 + $0x11] sm:$0x1] %vm288, 0.0
      %351 = vst.msk [vmem:[#allocation3 + $0x29] sm:$0x1] %vm288, 0.0
      %352 = vst.msk [vmem:[#allocation3 + $0x41] sm:$0x1] %vm288, 0.0
      %353 = vst.msk [vmem:[#allocation3 + $0x59] sm:$0x1] %vm288, 0.0
      %354 = vst.msk [vmem:[#allocation3 + $0x71] sm:$0x1] %vm288, 0.0
      %355 = vst.msk [vmem:[#allocation3 + $0x89] sm:$0x1] %vm288, 0.0
      %356 = vst.msk [vmem:[#allocation3 + $0xa1] sm:$0x1] %vm288, 0.0
      %357 = vst.msk [vmem:[#allocation3 + $0xb9] sm:$0x1] %vm288, 0.0
      %358 = vst.msk [vmem:[#allocation3 + $0xd1] sm:$0x1] %vm288, 0.0
      %359 = vst.msk [vmem:[#allocation3 + $0xe9] sm:$0x1] %vm288, 0.0
      %360 = vst.msk [vmem:[#allocation3 + $0x101] sm:$0x1] %vm288, 0.0
      %361 = vst.msk [vmem:[#allocation3 + $0x119] sm:$0x1] %vm288, 0.0
      %362 = vst.msk [vmem:[#allocation3 + $0x131] sm:$0x1] %vm288, 0.0
      %363 = vst.msk [vmem:[#allocation3 + $0x149] sm:$0x1] %vm288, 0.0
      %364 = vst.msk [vmem:[#allocation3 + $0x161] sm:$0x1] %vm288, 0.0
      %365 = vst.msk [vmem:[#allocation3 + $0x179] sm:$0x1] %vm288, 0.0
      %366 = vst.msk [vmem:[#allocation3 + $0x191] sm:$0x1] %vm288, 0.0
      %367 = vst.msk [vmem:[#allocation3 + $0x1a9] sm:$0x1] %vm288, 0.0
      %v368 = vld [vmem:[%s273] sm:$0xff]
      %v369 = vld [vmem:[%s273 + $0x8] sm:$0xff]
      %v370 = vld [vmem:[%s273 + $0x10] sm:$0xff]
      %v371 = vld [vmem:[%s273 + $0x18] sm:$0xff]
      %v372 = vld [vmem:[%s273 + $0x20] sm:$0xff]
      %v373 = vld [vmem:[%s273 + $0x28] sm:$0xff]
      %v374 = vld [vmem:[%s273 + $0x30] sm:$0xff]
      %v375 = vld [vmem:[%s273 + $0x38] sm:$0xff]
      %v376 = vld [vmem:[%s273 + $0x40] sm:$0xff]
      %v377 = vld [vmem:[%s273 + $0x48] sm:$0xff]
      %v378 = vld [vmem:[%s273 + $0x50] sm:$0xff]
      %v379 = vld [vmem:[%s273 + $0x58] sm:$0xff]
      %v380 = vld [vmem:[%s273 + $0x60] sm:$0xff]
      %v381 = vld [vmem:[%s273 + $0x68] sm:$0xff]
      %v382 = vld [vmem:[%s273 + $0x70] sm:$0xff]
      %v383 = vld [vmem:[%s273 + $0x78] sm:$0xff]
      %v384 = vld [vmem:[%s273 + $0x80] sm:$0xff]
      %v385 = vld [vmem:[%s273 + $0x88] sm:$0xff]
      %v386 = vld [vmem:[%s273 + $0x90] sm:$0xff]
      %v387 = vld [vmem:[%s273 + $0x98] sm:$0xff]
      %v388 = vld [vmem:[%s273 + $0xa0] sm:$0xff]
      %v389 = vld [vmem:[%s273 + $0xa8] sm:$0xff]
      %v390 = vld [vmem:[%s273 + $0xb0] sm:$0xff]
      %v391 = vld [vmem:[%s273 + $0xb8] sm:$0xff]
      %v392 = vld [vmem:[%s273 + $0xc0] sm:$0xff]
      %v393 = vld [vmem:[%s273 + $0xc8] sm:$0xff]
      %v394 = vld [vmem:[%s273 + $0xd0] sm:$0xff]
      %v395 = vld [vmem:[%s273 + $0xd8] sm:$0xff]
      %v396 = vld [vmem:[%s273 + $0xe0] sm:$0xff]
      %v397 = vld [vmem:[%s273 + $0xe8] sm:$0xff]
      %v398 = vld [vmem:[%s273 + $0xf0] sm:$0xff]
      %v399 = vld [vmem:[%s273 + $0xf8] sm:$0xff]
      %s400 = scalar_lea.vmem [#allocation2], 24
      %401 = vst.msk [vmem:[%s400 + $0x1] sm:$0xff] %vm279, %v368
      %402 = vst.msk [vmem:[%s400 + $0x9] sm:$0xff] %vm279, %v369
      %403 = vst.msk [vmem:[%s400 + $0x19] sm:$0xff] %vm279, %v370
      %404 = vst.msk [vmem:[%s400 + $0x21] sm:$0xff] %vm279, %v371
      %405 = vst.msk [vmem:[%s400 + $0x31] sm:$0xff] %vm279, %v372
      %406 = vst.msk [vmem:[%s400 + $0x39] sm:$0xff] %vm279, %v373
      %407 = vst.msk [vmem:[%s400 + $0x49] sm:$0xff] %vm279, %v374
      %408 = vst.msk [vmem:[%s400 + $0x51] sm:$0xff] %vm279, %v375
      %409 = vst.msk [vmem:[%s400 + $0x61] sm:$0xff] %vm279, %v376
      %410 = vst.msk [vmem:[%s400 + $0x69] sm:$0xff] %vm279, %v377
      %411 = vst.msk [vmem:[%s400 + $0x79] sm:$0xff] %vm279, %v378
      %412 = vst.msk [vmem:[%s400 + $0x81] sm:$0xff] %vm279, %v379
      %413 = vst.msk [vmem:[%s400 + $0x91] sm:$0xff] %vm279, %v380
      %414 = vst.msk [vmem:[%s400 + $0x99] sm:$0xff] %vm279, %v381
      %415 = vst.msk [vmem:[%s400 + $0xa9] sm:$0xff] %vm279, %v382
      %416 = vst.msk [vmem:[%s400 + $0xb1] sm:$0xff] %vm279, %v383
      %417 = vst.msk [vmem:[%s400 + $0xc1] sm:$0xff] %vm279, %v384
      %418 = vst.msk [vmem:[%s400 + $0xc9] sm:$0xff] %vm279, %v385
      %419 = vst.msk [vmem:[%s400 + $0xd9] sm:$0xff] %vm279, %v386
      %420 = vst.msk [vmem:[%s400 + $0xe1] sm:$0xff] %vm279, %v387
      %421 = vst.msk [vmem:[%s400 + $0xf1] sm:$0xff] %vm279, %v388
      %422 = vst.msk [vmem:[%s400 + $0xf9] sm:$0xff] %vm279, %v389
      %423 = vst.msk [vmem:[%s400 + $0x109] sm:$0xff] %vm279, %v390
      %424 = vst.msk [vmem:[%s400 + $0x111] sm:$0xff] %vm279, %v391
      %425 = vst.msk [vmem:[%s400 + $0x121] sm:$0xff] %vm279, %v392
      %426 = vst.msk [vmem:[%s400 + $0x129] sm:$0xff] %vm279, %v393
      %427 = vst.msk [vmem:[%s400 + $0x139] sm:$0xff] %vm279, %v394
      %428 = vst.msk [vmem:[%s400 + $0x141] sm:$0xff] %vm279, %v395
      %429 = vst.msk [vmem:[%s400 + $0x151] sm:$0xff] %vm279, %v396
      %430 = vst.msk [vmem:[%s400 + $0x159] sm:$0xff] %vm279, %v397
      %431 = vst.msk [vmem:[%s400 + $0x169] sm:$0xff] %vm279, %v398
      %432 = vst.msk [vmem:[%s400 + $0x171] sm:$0xff] %vm279, %v399
      %v433 = vld [vmem:[#allocation2] sm:$0xff]
      %v434 = vld [vmem:[#allocation2 + $0x8] sm:$0xff]
      %v435 = vld [vmem:[#allocation2 + $0x18] sm:$0xff]
      %v436 = vld [vmem:[#allocation2 + $0x20] sm:$0xff]
      %v437 = vld [vmem:[#allocation2 + $0x30] sm:$0xff]
      %v438 = vld [vmem:[#allocation2 + $0x38] sm:$0xff]
      %v439 = vld [vmem:[#allocation2 + $0x48] sm:$0xff]
      %v440 = vld [vmem:[#allocation2 + $0x50] sm:$0xff]
      %v441 = vld [vmem:[#allocation2 + $0x60] sm:$0xff]
      %v442 = vld [vmem:[#allocation2 + $0x68] sm:$0xff]
      %v443 = vld [vmem:[#allocation2 + $0x78] sm:$0xff]
      %v444 = vld [vmem:[#allocation2 + $0x80] sm:$0xff]
      %v445 = vld [vmem:[#allocation2 + $0x90] sm:$0xff]
      %v446 = vld [vmem:[#allocation2 + $0x98] sm:$0xff]
      %v447 = vld [vmem:[#allocation2 + $0xa8] sm:$0xff]
      %v448 = vld [vmem:[#allocation2 + $0xb0] sm:$0xff]
      %v449 = vld [vmem:[#allocation2 + $0xc0] sm:$0xff]
      %v450 = vld [vmem:[#allocation2 + $0xc8] sm:$0xff]
      %v451 = vld [vmem:[#allocation2 + $0xd8] sm:$0xff]
      %v452 = vld [vmem:[#allocation2 + $0xe0] sm:$0xff]
      %v453 = vld [vmem:[#allocation2 + $0xf0] sm:$0xff]
      %v454 = vld [vmem:[#allocation2 + $0xf8] sm:$0xff]
      %v455 = vld [vmem:[#allocation2 + $0x108] sm:$0xff]
      %v456 = vld [vmem:[#allocation2 + $0x110] sm:$0xff]
      %v457 = vld [vmem:[#allocation2 + $0x120] sm:$0xff]
      %v458 = vld [vmem:[#allocation2 + $0x128] sm:$0xff]
      %v459 = vld [vmem:[#allocation2 + $0x138] sm:$0xff]
      %v460 = vld [vmem:[#allocation2 + $0x140] sm:$0xff]
      %v461 = vld [vmem:[#allocation2 + $0x150] sm:$0xff]
      %v462 = vld [vmem:[#allocation2 + $0x158] sm:$0xff]
      %v463 = vld [vmem:[#allocation2 + $0x168] sm:$0xff]
      %v464 = vld [vmem:[#allocation2 + $0x170] sm:$0xff]
      %465 = vst.msk [vmem:[#allocation4] sm:$0xff] %vm279, %v433
      %466 = vst.msk [vmem:[#allocation4 + $0x8] sm:$0xff] %vm279, %v434
      %467 = vst.msk [vmem:[#allocation4 + $0x10] sm:$0xff] %vm279, %v435
      %468 = vst.msk [vmem:[#allocation4 + $0x18] sm:$0xff] %vm279, %v436
      %469 = vst.msk [vmem:[#allocation4 + $0x20] sm:$0xff] %vm279, %v437
      %470 = vst.msk [vmem:[#allocation4 + $0x28] sm:$0xff] %vm279, %v438
      %471 = vst.msk [vmem:[#allocation4 + $0x30] sm:$0xff] %vm279, %v439
      %472 = vst.msk [vmem:[#allocation4 + $0x38] sm:$0xff] %vm279, %v440
      %473 = vst.msk [vmem:[#allocation4 + $0x40] sm:$0xff] %vm279, %v441
      %474 = vst.msk [vmem:[#allocation4 + $0x48] sm:$0xff] %vm279, %v442
      %475 = vst.msk [vmem:[#allocation4 + $0x50] sm:$0xff] %vm279, %v443
      %476 = vst.msk [vmem:[#allocation4 + $0x58] sm:$0xff] %vm279, %v444
      %477 = vst.msk [vmem:[#allocation4 + $0x60] sm:$0xff] %vm279, %v445
      %478 = vst.msk [vmem:[#allocation4 + $0x68] sm:$0xff] %vm279, %v446
      %479 = vst.msk [vmem:[#allocation4 + $0x70] sm:$0xff] %vm279, %v447
      %480 = vst.msk [vmem:[#allocation4 + $0x78] sm:$0xff] %vm279, %v448
      %481 = vst.msk [vmem:[#allocation4 + $0x80] sm:$0xff] %vm279, %v449
      %482 = vst.msk [vmem:[#allocation4 + $0x88] sm:$0xff] %vm279, %v450
      %483 = vst.msk [vmem:[#allocation4 + $0x90] sm:$0xff] %vm279, %v451
      %484 = vst.msk [vmem:[#allocation4 + $0x98] sm:$0xff] %vm279, %v452
      %485 = vst.msk [vmem:[#allocation4 + $0xa0] sm:$0xff] %vm279, %v453
      %486 = vst.msk [vmem:[#allocation4 + $0xa8] sm:$0xff] %vm279, %v454
      %487 = vst.msk [vmem:[#allocation4 + $0xb0] sm:$0xff] %vm279, %v455
      %488 = vst.msk [vmem:[#allocation4 + $0xb8] sm:$0xff] %vm279, %v456
      %489 = vst.msk [vmem:[#allocation4 + $0xc0] sm:$0xff] %vm279, %v457
      %490 = vst.msk [vmem:[#allocation4 + $0xc8] sm:$0xff] %vm279, %v458
      %491 = vst.msk [vmem:[#allocation4 + $0xd0] sm:$0xff] %vm279, %v459
      %492 = vst.msk [vmem:[#allocation4 + $0xd8] sm:$0xff] %vm279, %v460
      %493 = vst.msk [vmem:[#allocation4 + $0xe0] sm:$0xff] %vm279, %v461
      %494 = vst.msk [vmem:[#allocation4 + $0xe8] sm:$0xff] %vm279, %v462
      %495 = vst.msk [vmem:[#allocation4 + $0xf0] sm:$0xff] %vm279, %v463
      %496 = vst.msk [vmem:[#allocation4 + $0xf8] sm:$0xff] %vm279, %v464
      %v497 = vld [vmem:[#allocation2 + $0x1] sm:$0xff]
      %v498 = vld [vmem:[#allocation2 + $0x9] sm:$0xff]
      %v499 = vld [vmem:[#allocation2 + $0x19] sm:$0xff]
      %v500 = vld [vmem:[#allocation2 + $0x21] sm:$0xff]
      %v501 = vld [vmem:[#allocation2 + $0x31] sm:$0xff]
      %v502 = vld [vmem:[#allocation2 + $0x39] sm:$0xff]
      %v503 = vld [vmem:[#allocation2 + $0x49] sm:$0xff]
      %v504 = vld [vmem:[#allocation2 + $0x51] sm:$0xff]
      %v505 = vld [vmem:[#allocation2 + $0x61] sm:$0xff]
      %v506 = vld [vmem:[#allocation2 + $0x69] sm:$0xff]
      %v507 = vld [vmem:[#allocation2 + $0x79] sm:$0xff]
      %v508 = vld [vmem:[#allocation2 + $0x81] sm:$0xff]
      %v509 = vld [vmem:[#allocation2 + $0x91] sm:$0xff]
      %v510 = vld [vmem:[#allocation2 + $0x99] sm:$0xff]
      %v511 = vld [vmem:[#allocation2 + $0xa9] sm:$0xff]
      %v512 = vld [vmem:[#allocation2 + $0xb1] sm:$0xff]
      %v513 = vld [vmem:[#allocation2 + $0xc1] sm:$0xff]
      %v514 = vld [vmem:[#allocation2 + $0xc9] sm:$0xff]
      %v515 = vld [vmem:[#allocation2 + $0xd9] sm:$0xff]
      %v516 = vld [vmem:[#allocation2 + $0xe1] sm:$0xff]
      %v517 = vld [vmem:[#allocation2 + $0xf1] sm:$0xff]
      %v518 = vld [vmem:[#allocation2 + $0xf9] sm:$0xff]
      %v519 = vld [vmem:[#allocation2 + $0x109] sm:$0xff]
      %v520 = vld [vmem:[#allocation2 + $0x111] sm:$0xff]
      %v521 = vld [vmem:[#allocation2 + $0x121] sm:$0xff]
      %v522 = vld [vmem:[#allocation2 + $0x129] sm:$0xff]
      %v523 = vld [vmem:[#allocation2 + $0x139] sm:$0xff]
      %v524 = vld [vmem:[#allocation2 + $0x141] sm:$0xff]
      %v525 = vld [vmem:[#allocation2 + $0x151] sm:$0xff]
      %v526 = vld [vmem:[#allocation2 + $0x159] sm:$0xff]
      %v527 = vld [vmem:[#allocation2 + $0x169] sm:$0xff]
      %v528 = vld [vmem:[#allocation2 + $0x171] sm:$0xff]
      %561 = vrot.lane.b32.xlu0 %v497, 4
      %v562 = vpop.permute.xlu0 %561
      %563 = vrot.lane.b32.xlu0 %v498, 4
      %v564 = vpop.permute.xlu0 %563
      %565 = vrot.lane.b32.xlu0 %v499, 4
      %v566 = vpop.permute.xlu0 %565
      %567 = vrot.lane.b32.xlu0 %v500, 4
      %v568 = vpop.permute.xlu0 %567
      %569 = vrot.lane.b32.xlu0 %v501, 4
      %v570 = vpop.permute.xlu0 %569
      %571 = vrot.lane.b32.xlu0 %v502, 4
      %v572 = vpop.permute.xlu0 %571
      %573 = vrot.lane.b32.xlu0 %v503, 4
      %v574 = vpop.permute.xlu0 %573
      %575 = vrot.lane.b32.xlu0 %v504, 4
      %v576 = vpop.permute.xlu0 %575
      %577 = vrot.lane.b32.xlu0 %v505, 4
      %v578 = vpop.permute.xlu0 %577
      %579 = vrot.lane.b32.xlu0 %v506, 4
      %v580 = vpop.permute.xlu0 %579
      %581 = vrot.lane.b32.xlu0 %v507, 4
      %v582 = vpop.permute.xlu0 %581
      %583 = vrot.lane.b32.xlu0 %v508, 4
      %v584 = vpop.permute.xlu0 %583
      %585 = vrot.lane.b32.xlu0 %v509, 4
      %v586 = vpop.permute.xlu0 %585
      %587 = vrot.lane.b32.xlu0 %v510, 4
      %v588 = vpop.permute.xlu0 %587
      %589 = vrot.lane.b32.xlu0 %v511, 4
      %v590 = vpop.permute.xlu0 %589
      %591 = vrot.lane.b32.xlu0 %v512, 4
      %v592 = vpop.permute.xlu0 %591
      %593 = vrot.lane.b32.xlu0 %v513, 4
      %v594 = vpop.permute.xlu0 %593
      %595 = vrot.lane.b32.xlu0 %v514, 4
      %v596 = vpop.permute.xlu0 %595
      %597 = vrot.lane.b32.xlu0 %v515, 4
      %v598 = vpop.permute.xlu0 %597
      %599 = vrot.lane.b32.xlu0 %v516, 4
      %v600 = vpop.permute.xlu0 %599
      %601 = vrot.lane.b32.xlu0 %v517, 4
      %v602 = vpop.permute.xlu0 %601
      %603 = vrot.lane.b32.xlu0 %v518, 4
      %v604 = vpop.permute.xlu0 %603
      %605 = vrot.lane.b32.xlu0 %v519, 4
      %v606 = vpop.permute.xlu0 %605
      %607 = vrot.lane.b32.xlu0 %v520, 4
      %v608 = vpop.permute.xlu0 %607
      %609 = vrot.lane.b32.xlu0 %v521, 4
      %v610 = vpop.permute.xlu0 %609
      %611 = vrot.lane.b32.xlu0 %v522, 4
      %v612 = vpop.permute.xlu0 %611
      %613 = vrot.lane.b32.xlu0 %v523, 4
      %v614 = vpop.permute.xlu0 %613
      %615 = vrot.lane.b32.xlu0 %v524, 4
      %v616 = vpop.permute.xlu0 %615
      %617 = vrot.lane.b32.xlu0 %v525, 4
      %v618 = vpop.permute.xlu0 %617
      %619 = vrot.lane.b32.xlu0 %v526, 4
      %v620 = vpop.permute.xlu0 %619
      %621 = vrot.lane.b32.xlu0 %v527, 4
      %v622 = vpop.permute.xlu0 %621
      %623 = vrot.lane.b32.xlu0 %v528, 4
      %v624 = vpop.permute.xlu0 %623
      %vm657 = vcmask 64544
      %658 = vst.msk [vmem:[#allocation4] sm:$0xff] %vm657, %v562
      %659 = vst.msk [vmem:[#allocation4 + $0x8] sm:$0xff] %vm657, %v564
      %660 = vst.msk [vmem:[#allocation4 + $0x10] sm:$0xff] %vm657, %v566
      %661 = vst.msk [vmem:[#allocation4 + $0x18] sm:$0xff] %vm657, %v568
      %662 = vst.msk [vmem:[#allocation4 + $0x20] sm:$0xff] %vm657, %v570
      %663 = vst.msk [vmem:[#allocation4 + $0x28] sm:$0xff] %vm657, %v572
      %664 = vst.msk [vmem:[#allocation4 + $0x30] sm:$0xff] %vm657, %v574
      %665 = vst.msk [vmem:[#allocation4 + $0x38] sm:$0xff] %vm657, %v576
      %666 = vst.msk [vmem:[#allocation4 + $0x40] sm:$0xff] %vm657, %v578
      %667 = vst.msk [vmem:[#allocation4 + $0x48] sm:$0xff] %vm657, %v580
      %668 = vst.msk [vmem:[#allocation4 + $0x50] sm:$0xff] %vm657, %v582
      %669 = vst.msk [vmem:[#allocation4 + $0x58] sm:$0xff] %vm657, %v584
      %670 = vst.msk [vmem:[#allocation4 + $0x60] sm:$0xff] %vm657, %v586
      %671 = vst.msk [vmem:[#allocation4 + $0x68] sm:$0xff] %vm657, %v588
      %672 = vst.msk [vmem:[#allocation4 + $0x70] sm:$0xff] %vm657, %v590
      %673 = vst.msk [vmem:[#allocation4 + $0x78] sm:$0xff] %vm657, %v592
      %674 = vst.msk [vmem:[#allocation4 + $0x80] sm:$0xff] %vm657, %v594
      %675 = vst.msk [vmem:[#allocation4 + $0x88] sm:$0xff] %vm657, %v596
      %676 = vst.msk [vmem:[#allocation4 + $0x90] sm:$0xff] %vm657, %v598
      %677 = vst.msk [vmem:[#allocation4 + $0x98] sm:$0xff] %vm657, %v600
      %678 = vst.msk [vmem:[#allocation4 + $0xa0] sm:$0xff] %vm657, %v602
      %679 = vst.msk [vmem:[#allocation4 + $0xa8] sm:$0xff] %vm657, %v604
      %680 = vst.msk [vmem:[#allocation4 + $0xb0] sm:$0xff] %vm657, %v606
      %681 = vst.msk [vmem:[#allocation4 + $0xb8] sm:$0xff] %vm657, %v608
      %682 = vst.msk [vmem:[#allocation4 + $0xc0] sm:$0xff] %vm657, %v610
      %683 = vst.msk [vmem:[#allocation4 + $0xc8] sm:$0xff] %vm657, %v612
      %684 = vst.msk [vmem:[#allocation4 + $0xd0] sm:$0xff] %vm657, %v614
      %685 = vst.msk [vmem:[#allocation4 + $0xd8] sm:$0xff] %vm657, %v616
      %686 = vst.msk [vmem:[#allocation4 + $0xe0] sm:$0xff] %vm657, %v618
      %687 = vst.msk [vmem:[#allocation4 + $0xe8] sm:$0xff] %vm657, %v620
      %688 = vst.msk [vmem:[#allocation4 + $0xf0] sm:$0xff] %vm657, %v622
      %689 = vst.msk [vmem:[#allocation4 + $0xf8] sm:$0xff] %vm657, %v624
      %v690 = vld [vmem:[#allocation2 + $0x2] sm:$0xff]
      %v691 = vld [vmem:[#allocation2 + $0xa] sm:$0xff]
      %v692 = vld [vmem:[#allocation2 + $0x1a] sm:$0xff]
      %v693 = vld [vmem:[#allocation2 + $0x22] sm:$0xff]
      %v694 = vld [vmem:[#allocation2 + $0x32] sm:$0xff]
      %v695 = vld [vmem:[#allocation2 + $0x3a] sm:$0xff]
      %v696 = vld [vmem:[#allocation2 + $0x4a] sm:$0xff]
      %v697 = vld [vmem:[#allocation2 + $0x52] sm:$0xff]
      %v698 = vld [vmem:[#allocation2 + $0x62] sm:$0xff]
      %v699 = vld [vmem:[#allocation2 + $0x6a] sm:$0xff]
      %v700 = vld [vmem:[#allocation2 + $0x7a] sm:$0xff]
      %v701 = vld [vmem:[#allocation2 + $0x82] sm:$0xff]
      %v702 = vld [vmem:[#allocation2 + $0x92] sm:$0xff]
      %v703 = vld [vmem:[#allocation2 + $0x9a] sm:$0xff]
      %v704 = vld [vmem:[#allocation2 + $0xaa] sm:$0xff]
      %v705 = vld [vmem:[#allocation2 + $0xb2] sm:$0xff]
      %v706 = vld [vmem:[#allocation2 + $0xc2] sm:$0xff]
      %v707 = vld [vmem:[#allocation2 + $0xca] sm:$0xff]
      %v708 = vld [vmem:[#allocation2 + $0xda] sm:$0xff]
      %v709 = vld [vmem:[#allocation2 + $0xe2] sm:$0xff]
      %v710 = vld [vmem:[#allocation2 + $0xf2] sm:$0xff]
      %v711 = vld [vmem:[#allocation2 + $0xfa] sm:$0xff]
      %v712 = vld [vmem:[#allocation2 + $0x10a] sm:$0xff]
      %v713 = vld [vmem:[#allocation2 + $0x112] sm:$0xff]
      %v714 = vld [vmem:[#allocation2 + $0x122] sm:$0xff]
      %v715 = vld [vmem:[#allocation2 + $0x12a] sm:$0xff]
      %v716 = vld [vmem:[#allocation2 + $0x13a] sm:$0xff]
      %v717 = vld [vmem:[#allocation2 + $0x142] sm:$0xff]
      %v718 = vld [vmem:[#allocation2 + $0x152] sm:$0xff]
      %v719 = vld [vmem:[#allocation2 + $0x15a] sm:$0xff]
      %v720 = vld [vmem:[#allocation2 + $0x16a] sm:$0xff]
      %v721 = vld [vmem:[#allocation2 + $0x172] sm:$0xff]
      %754 = vrot.lane.b32.xlu0 %v690, 8
      %v755 = vpop.permute.xlu0 %754
      %756 = vrot.lane.b32.xlu0 %v691, 8
      %v757 = vpop.permute.xlu0 %756
      %758 = vrot.lane.b32.xlu0 %v692, 8
      %v759 = vpop.permute.xlu0 %758
      %760 = vrot.lane.b32.xlu0 %v693, 8
      %v761 = vpop.permute.xlu0 %760
      %762 = vrot.lane.b32.xlu0 %v694, 8
      %v763 = vpop.permute.xlu0 %762
      %764 = vrot.lane.b32.xlu0 %v695, 8
      %v765 = vpop.permute.xlu0 %764
      %766 = vrot.lane.b32.xlu0 %v696, 8
      %v767 = vpop.permute.xlu0 %766
      %768 = vrot.lane.b32.xlu0 %v697, 8
      %v769 = vpop.permute.xlu0 %768
      %770 = vrot.lane.b32.xlu0 %v698, 8
      %v771 = vpop.permute.xlu0 %770
      %772 = vrot.lane.b32.xlu0 %v699, 8
      %v773 = vpop.permute.xlu0 %772
      %774 = vrot.lane.b32.xlu0 %v700, 8
      %v775 = vpop.permute.xlu0 %774
      %776 = vrot.lane.b32.xlu0 %v701, 8
      %v777 = vpop.permute.xlu0 %776
      %778 = vrot.lane.b32.xlu0 %v702, 8
      %v779 = vpop.permute.xlu0 %778
      %780 = vrot.lane.b32.xlu0 %v703, 8
      %v781 = vpop.permute.xlu0 %780
      %782 = vrot.lane.b32.xlu0 %v704, 8
      %v783 = vpop.permute.xlu0 %782
      %784 = vrot.lane.b32.xlu0 %v705, 8
      %v785 = vpop.permute.xlu0 %784
      %786 = vrot.lane.b32.xlu0 %v706, 8
      %v787 = vpop.permute.xlu0 %786
      %788 = vrot.lane.b32.xlu0 %v707, 8
      %v789 = vpop.permute.xlu0 %788
      %790 = vrot.lane.b32.xlu0 %v708, 8
      %v791 = vpop.permute.xlu0 %790
      %792 = vrot.lane.b32.xlu0 %v709, 8
      %v793 = vpop.permute.xlu0 %792
      %794 = vrot.lane.b32.xlu0 %v710, 8
      %v795 = vpop.permute.xlu0 %794
      %796 = vrot.lane.b32.xlu0 %v711, 8
      %v797 = vpop.permute.xlu0 %796
      %798 = vrot.lane.b32.xlu0 %v712, 8
      %v799 = vpop.permute.xlu0 %798
      %800 = vrot.lane.b32.xlu0 %v713, 8
      %v801 = vpop.permute.xlu0 %800
      %802 = vrot.lane.b32.xlu0 %v714, 8
      %v803 = vpop.permute.xlu0 %802
      %804 = vrot.lane.b32.xlu0 %v715, 8
      %v805 = vpop.permute.xlu0 %804
      %806 = vrot.lane.b32.xlu0 %v716, 8
      %v807 = vpop.permute.xlu0 %806
      %808 = vrot.lane.b32.xlu0 %v717, 8
      %v809 = vpop.permute.xlu0 %808
      %810 = vrot.lane.b32.xlu0 %v718, 8
      %v811 = vpop.permute.xlu0 %810
      %812 = vrot.lane.b32.xlu0 %v719, 8
      %v813 = vpop.permute.xlu0 %812
      %814 = vrot.lane.b32.xlu0 %v720, 8
      %v815 = vpop.permute.xlu0 %814
      %816 = vrot.lane.b32.xlu0 %v721, 8
      %v817 = vpop.permute.xlu0 %816
      %vm850 = vcmask 97344
      %851 = vst.msk [vmem:[#allocation4] sm:$0xff] %vm850, %v755
      %852 = vst.msk [vmem:[#allocation4 + $0x8] sm:$0xff] %vm850, %v757
      %853 = vst.msk [vmem:[#allocation4 + $0x10] sm:$0xff] %vm850, %v759
      %854 = vst.msk [vmem:[#allocation4 + $0x18] sm:$0xff] %vm850, %v761
      %855 = vst.msk [vmem:[#allocation4 + $0x20] sm:$0xff] %vm850, %v763
      %856 = vst.msk [vmem:[#allocation4 + $0x28] sm:$0xff] %vm850, %v765
      %857 = vst.msk [vmem:[#allocation4 + $0x30] sm:$0xff] %vm850, %v767
      %858 = vst.msk [vmem:[#allocation4 + $0x38] sm:$0xff] %vm850, %v769
      %859 = vst.msk [vmem:[#allocation4 + $0x40] sm:$0xff] %vm850, %v771
      %860 = vst.msk [vmem:[#allocation4 + $0x48] sm:$0xff] %vm850, %v773
      %861 = vst.msk [vmem:[#allocation4 + $0x50] sm:$0xff] %vm850, %v775
      %862 = vst.msk [vmem:[#allocation4 + $0x58] sm:$0xff] %vm850, %v777
      %863 = vst.msk [vmem:[#allocation4 + $0x60] sm:$0xff] %vm850, %v779
      %864 = vst.msk [vmem:[#allocation4 + $0x68] sm:$0xff] %vm850, %v781
      %865 = vst.msk [vmem:[#allocation4 + $0x70] sm:$0xff] %vm850, %v783
      %866 = vst.msk [vmem:[#allocation4 + $0x78] sm:$0xff] %vm850, %v785
      %867 = vst.msk [vmem:[#allocation4 + $0x80] sm:$0xff] %vm850, %v787
      %868 = vst.msk [vmem:[#allocation4 + $0x88] sm:$0xff] %vm850, %v789
      %869 = vst.msk [vmem:[#allocation4 + $0x90] sm:$0xff] %vm850, %v791
      %870 = vst.msk [vmem:[#allocation4 + $0x98] sm:$0xff] %vm850, %v793
      %871 = vst.msk [vmem:[#allocation4 + $0xa0] sm:$0xff] %vm850, %v795
      %872 = vst.msk [vmem:[#allocation4 + $0xa8] sm:$0xff] %vm850, %v797
      %873 = vst.msk [vmem:[#allocation4 + $0xb0] sm:$0xff] %vm850, %v799
      %874 = vst.msk [vmem:[#allocation4 + $0xb8] sm:$0xff] %vm850, %v801
      %875 = vst.msk [vmem:[#allocation4 + $0xc0] sm:$0xff] %vm850, %v803
      %876 = vst.msk [vmem:[#allocation4 + $0xc8] sm:$0xff] %vm850, %v805
      %877 = vst.msk [vmem:[#allocation4 + $0xd0] sm:$0xff] %vm850, %v807
      %878 = vst.msk [vmem:[#allocation4 + $0xd8] sm:$0xff] %vm850, %v809
      %879 = vst.msk [vmem:[#allocation4 + $0xe0] sm:$0xff] %vm850, %v811
      %880 = vst.msk [vmem:[#allocation4 + $0xe8] sm:$0xff] %vm850, %v813
      %881 = vst.msk [vmem:[#allocation4 + $0xf0] sm:$0xff] %vm850, %v815
      %882 = vst.msk [vmem:[#allocation4 + $0xf8] sm:$0xff] %vm850, %v817
      %v883 = vld [vmem:[%s400] sm:$0xff]
      %v884 = vld [vmem:[%s400 + $0x8] sm:$0xff]
      %v885 = vld [vmem:[%s400 + $0x18] sm:$0xff]
      %v886 = vld [vmem:[%s400 + $0x20] sm:$0xff]
      %v887 = vld [vmem:[%s400 + $0x30] sm:$0xff]
      %v888 = vld [vmem:[%s400 + $0x38] sm:$0xff]
      %v889 = vld [vmem:[%s400 + $0x48] sm:$0xff]
      %v890 = vld [vmem:[%s400 + $0x50] sm:$0xff]
      %v891 = vld [vmem:[%s400 + $0x60] sm:$0xff]
      %v892 = vld [vmem:[%s400 + $0x68] sm:$0xff]
      %v893 = vld [vmem:[%s400 + $0x78] sm:$0xff]
      %v894 = vld [vmem:[%s400 + $0x80] sm:$0xff]
      %v895 = vld [vmem:[%s400 + $0x90] sm:$0xff]
      %v896 = vld [vmem:[%s400 + $0x98] sm:$0xff]
      %v897 = vld [vmem:[%s400 + $0xa8] sm:$0xff]
      %v898 = vld [vmem:[%s400 + $0xb0] sm:$0xff]
      %v899 = vld [vmem:[%s400 + $0xc0] sm:$0xff]
      %v900 = vld [vmem:[%s400 + $0xc8] sm:$0xff]
      %v901 = vld [vmem:[%s400 + $0xd8] sm:$0xff]
      %v902 = vld [vmem:[%s400 + $0xe0] sm:$0xff]
      %v903 = vld [vmem:[%s400 + $0xf0] sm:$0xff]
      %v904 = vld [vmem:[%s400 + $0xf8] sm:$0xff]
      %v905 = vld [vmem:[%s400 + $0x108] sm:$0xff]
      %v906 = vld [vmem:[%s400 + $0x110] sm:$0xff]
      %v907 = vld [vmem:[%s400 + $0x120] sm:$0xff]
      %v908 = vld [vmem:[%s400 + $0x128] sm:$0xff]
      %v909 = vld [vmem:[%s400 + $0x138] sm:$0xff]
      %v910 = vld [vmem:[%s400 + $0x140] sm:$0xff]
      %v911 = vld [vmem:[%s400 + $0x150] sm:$0xff]
      %v912 = vld [vmem:[%s400 + $0x158] sm:$0xff]
      %v913 = vld [vmem:[%s400 + $0x168] sm:$0xff]
      %v914 = vld [vmem:[%s400 + $0x170] sm:$0xff]
      %947 = vrot.lane.b32.xlu0 %v883, 12
      %v948 = vpop.permute.xlu0 %947
      %949 = vrot.lane.b32.xlu0 %v884, 12
      %v950 = vpop.permute.xlu0 %949
      %951 = vrot.lane.b32.xlu0 %v885, 12
      %v952 = vpop.permute.xlu0 %951
      %953 = vrot.lane.b32.xlu0 %v886, 12
      %v954 = vpop.permute.xlu0 %953
      %955 = vrot.lane.b32.xlu0 %v887, 12
      %v956 = vpop.permute.xlu0 %955
      %957 = vrot.lane.b32.xlu0 %v888, 12
      %v958 = vpop.permute.xlu0 %957
      %959 = vrot.lane.b32.xlu0 %v889, 12
      %v960 = vpop.permute.xlu0 %959
      %961 = vrot.lane.b32.xlu0 %v890, 12
      %v962 = vpop.permute.xlu0 %961
      %963 = vrot.lane.b32.xlu0 %v891, 12
      %v964 = vpop.permute.xlu0 %963
      %965 = vrot.lane.b32.xlu0 %v892, 12
      %v966 = vpop.permute.xlu0 %965
      %967 = vrot.lane.b32.xlu0 %v893, 12
      %v968 = vpop.permute.xlu0 %967
      %969 = vrot.lane.b32.xlu0 %v894, 12
      %v970 = vpop.permute.xlu0 %969
      %971 = vrot.lane.b32.xlu0 %v895, 12
      %v972 = vpop.permute.xlu0 %971
      %973 = vrot.lane.b32.xlu0 %v896, 12
      %v974 = vpop.permute.xlu0 %973
      %975 = vrot.lane.b32.xlu0 %v897, 12
      %v976 = vpop.permute.xlu0 %975
      %977 = vrot.lane.b32.xlu0 %v898, 12
      %v978 = vpop.permute.xlu0 %977
      %979 = vrot.lane.b32.xlu0 %v899, 12
      %v980 = vpop.permute.xlu0 %979
      %981 = vrot.lane.b32.xlu0 %v900, 12
      %v982 = vpop.permute.xlu0 %981
      %983 = vrot.lane.b32.xlu0 %v901, 12
      %v984 = vpop.permute.xlu0 %983
      %985 = vrot.lane.b32.xlu0 %v902, 12
      %v986 = vpop.permute.xlu0 %985
      %987 = vrot.lane.b32.xlu0 %v903, 12
      %v988 = vpop.permute.xlu0 %987
      %989 = vrot.lane.b32.xlu0 %v904, 12
      %v990 = vpop.permute.xlu0 %989
      %991 = vrot.lane.b32.xlu0 %v905, 12
      %v992 = vpop.permute.xlu0 %991
      %993 = vrot.lane.b32.xlu0 %v906, 12
      %v994 = vpop.permute.xlu0 %993
      %995 = vrot.lane.b32.xlu0 %v907, 12
      %v996 = vpop.permute.xlu0 %995
      %997 = vrot.lane.b32.xlu0 %v908, 12
      %v998 = vpop.permute.xlu0 %997
      %999 = vrot.lane.b32.xlu0 %v909, 12
      %v1000 = vpop.permute.xlu0 %999
      %1001 = vrot.lane.b32.xlu0 %v910, 12
      %v1002 = vpop.permute.xlu0 %1001
      %1003 = vrot.lane.b32.xlu0 %v911, 12
      %v1004 = vpop.permute.xlu0 %1003
      %1005 = vrot.lane.b32.xlu0 %v912, 12
      %v1006 = vpop.permute.xlu0 %1005
      %1007 = vrot.lane.b32.xlu0 %v913, 12
      %v1008 = vpop.permute.xlu0 %1007
      %1009 = vrot.lane.b32.xlu0 %v914, 12
      %v1010 = vpop.permute.xlu0 %1009
      %vm1043 = vcmask 130144
      %1044 = vst.msk [vmem:[#allocation4] sm:$0xff] %vm1043, %v948
      %1045 = vst.msk [vmem:[#allocation4 + $0x8] sm:$0xff] %vm1043, %v950
      %1046 = vst.msk [vmem:[#allocation4 + $0x10] sm:$0xff] %vm1043, %v952
      %1047 = vst.msk [vmem:[#allocation4 + $0x18] sm:$0xff] %vm1043, %v954
      %1048 = vst.msk [vmem:[#allocation4 + $0x20] sm:$0xff] %vm1043, %v956
      %1049 = vst.msk [vmem:[#allocation4 + $0x28] sm:$0xff] %vm1043, %v958
      %1050 = vst.msk [vmem:[#allocation4 + $0x30] sm:$0xff] %vm1043, %v960
      %1051 = vst.msk [vmem:[#allocation4 + $0x38] sm:$0xff] %vm1043, %v962
      %1052 = vst.msk [vmem:[#allocation4 + $0x40] sm:$0xff] %vm1043, %v964
      %1053 = vst.msk [vmem:[#allocation4 + $0x48] sm:$0xff] %vm1043, %v966
      %1054 = vst.msk [vmem:[#allocation4 + $0x50] sm:$0xff] %vm1043, %v968
      %1055 = vst.msk [vmem:[#allocation4 + $0x58] sm:$0xff] %vm1043, %v970
      %1056 = vst.msk [vmem:[#allocation4 + $0x60] sm:$0xff] %vm1043, %v972
      %1057 = vst.msk [vmem:[#allocation4 + $0x68] sm:$0xff] %vm1043, %v974
      %1058 = vst.msk [vmem:[#allocation4 + $0x70] sm:$0xff] %vm1043, %v976
      %1059 = vst.msk [vmem:[#allocation4 + $0x78] sm:$0xff] %vm1043, %v978
      %1060 = vst.msk [vmem:[#allocation4 + $0x80] sm:$0xff] %vm1043, %v980
      %1061 = vst.msk [vmem:[#allocation4 + $0x88] sm:$0xff] %vm1043, %v982
      %1062 = vst.msk [vmem:[#allocation4 + $0x90] sm:$0xff] %vm1043, %v984
      %1063 = vst.msk [vmem:[#allocation4 + $0x98] sm:$0xff] %vm1043, %v986
      %1064 = vst.msk [vmem:[#allocation4 + $0xa0] sm:$0xff] %vm1043, %v988
      %1065 = vst.msk [vmem:[#allocation4 + $0xa8] sm:$0xff] %vm1043, %v990
      %1066 = vst.msk [vmem:[#allocation4 + $0xb0] sm:$0xff] %vm1043, %v992
      %1067 = vst.msk [vmem:[#allocation4 + $0xb8] sm:$0xff] %vm1043, %v994
      %1068 = vst.msk [vmem:[#allocation4 + $0xc0] sm:$0xff] %vm1043, %v996
      %1069 = vst.msk [vmem:[#allocation4 + $0xc8] sm:$0xff] %vm1043, %v998
      %1070 = vst.msk [vmem:[#allocation4 + $0xd0] sm:$0xff] %vm1043, %v1000
      %1071 = vst.msk [vmem:[#allocation4 + $0xd8] sm:$0xff] %vm1043, %v1002
      %1072 = vst.msk [vmem:[#allocation4 + $0xe0] sm:$0xff] %vm1043, %v1004
      %1073 = vst.msk [vmem:[#allocation4 + $0xe8] sm:$0xff] %vm1043, %v1006
      %1074 = vst.msk [vmem:[#allocation4 + $0xf0] sm:$0xff] %vm1043, %v1008
      %1075 = vst.msk [vmem:[#allocation4 + $0xf8] sm:$0xff] %vm1043, %v1010
      %v1076 = vld [vmem:[%s400 + $0x1] sm:$0xff]
      %v1077 = vld [vmem:[%s400 + $0x9] sm:$0xff]
      %v1078 = vld [vmem:[%s400 + $0x19] sm:$0xff]
      %v1079 = vld [vmem:[%s400 + $0x21] sm:$0xff]
      %v1080 = vld [vmem:[%s400 + $0x31] sm:$0xff]
      %v1081 = vld [vmem:[%s400 + $0x39] sm:$0xff]
      %v1082 = vld [vmem:[%s400 + $0x49] sm:$0xff]
      %v1083 = vld [vmem:[%s400 + $0x51] sm:$0xff]
      %v1084 = vld [vmem:[%s400 + $0x61] sm:$0xff]
      %v1085 = vld [vmem:[%s400 + $0x69] sm:$0xff]
      %v1086 = vld [vmem:[%s400 + $0x79] sm:$0xff]
      %v1087 = vld [vmem:[%s400 + $0x81] sm:$0xff]
      %v1088 = vld [vmem:[%s400 + $0x91] sm:$0xff]
      %v1089 = vld [vmem:[%s400 + $0x99] sm:$0xff]
      %v1090 = vld [vmem:[%s400 + $0xa9] sm:$0xff]
      %v1091 = vld [vmem:[%s400 + $0xb1] sm:$0xff]
      %v1092 = vld [vmem:[%s400 + $0xc1] sm:$0xff]
      %v1093 = vld [vmem:[%s400 + $0xc9] sm:$0xff]
      %v1094 = vld [vmem:[%s400 + $0xd9] sm:$0xff]
      %v1095 = vld [vmem:[%s400 + $0xe1] sm:$0xff]
      %v1096 = vld [vmem:[%s400 + $0xf1] sm:$0xff]
      %v1097 = vld [vmem:[%s400 + $0xf9] sm:$0xff]
      %v1098 = vld [vmem:[%s400 + $0x109] sm:$0xff]
      %v1099 = vld [vmem:[%s400 + $0x111] sm:$0xff]
      %v1100 = vld [vmem:[%s400 + $0x121] sm:$0xff]
      %v1101 = vld [vmem:[%s400 + $0x129] sm:$0xff]
      %v1102 = vld [vmem:[%s400 + $0x139] sm:$0xff]
      %v1103 = vld [vmem:[%s400 + $0x141] sm:$0xff]
      %v1104 = vld [vmem:[%s400 + $0x151] sm:$0xff]
      %v1105 = vld [vmem:[%s400 + $0x159] sm:$0xff]
      %v1106 = vld [vmem:[%s400 + $0x169] sm:$0xff]
      %v1107 = vld [vmem:[%s400 + $0x171] sm:$0xff]
      %1140 = vrot.lane.b32.xlu0 %v1076, 16
      %v1141 = vpop.permute.xlu0 %1140
      %1142 = vrot.lane.b32.xlu0 %v1077, 16
      %v1143 = vpop.permute.xlu0 %1142
      %1144 = vrot.lane.b32.xlu0 %v1078, 16
      %v1145 = vpop.permute.xlu0 %1144
      %1146 = vrot.lane.b32.xlu0 %v1079, 16
      %v1147 = vpop.permute.xlu0 %1146
      %1148 = vrot.lane.b32.xlu0 %v1080, 16
      %v1149 = vpop.permute.xlu0 %1148
      %1150 = vrot.lane.b32.xlu0 %v1081, 16
      %v1151 = vpop.permute.xlu0 %1150
      %1152 = vrot.lane.b32.xlu0 %v1082, 16
      %v1153 = vpop.permute.xlu0 %1152
      %1154 = vrot.lane.b32.xlu0 %v1083, 16
      %v1155 = vpop.permute.xlu0 %1154
      %1156 = vrot.lane.b32.xlu0 %v1084, 16
      %v1157 = vpop.permute.xlu0 %1156
      %1158 = vrot.lane.b32.xlu0 %v1085, 16
      %v1159 = vpop.permute.xlu0 %1158
      %1160 = vrot.lane.b32.xlu0 %v1086, 16
      %v1161 = vpop.permute.xlu0 %1160
      %1162 = vrot.lane.b32.xlu0 %v1087, 16
      %v1163 = vpop.permute.xlu0 %1162
      %1164 = vrot.lane.b32.xlu0 %v1088, 16
      %v1165 = vpop.permute.xlu0 %1164
      %1166 = vrot.lane.b32.xlu0 %v1089, 16
      %v1167 = vpop.permute.xlu0 %1166
      %1168 = vrot.lane.b32.xlu0 %v1090, 16
      %v1169 = vpop.permute.xlu0 %1168
      %1170 = vrot.lane.b32.xlu0 %v1091, 16
      %v1171 = vpop.permute.xlu0 %1170
      %1172 = vrot.lane.b32.xlu0 %v1092, 16
      %v1173 = vpop.permute.xlu0 %1172
      %1174 = vrot.lane.b32.xlu0 %v1093, 16
      %v1175 = vpop.permute.xlu0 %1174
      %1176 = vrot.lane.b32.xlu0 %v1094, 16
      %v1177 = vpop.permute.xlu0 %1176
      %1178 = vrot.lane.b32.xlu0 %v1095, 16
      %v1179 = vpop.permute.xlu0 %1178
      %1180 = vrot.lane.b32.xlu0 %v1096, 16
      %v1181 = vpop.permute.xlu0 %1180
      %1182 = vrot.lane.b32.xlu0 %v1097, 16
      %v1183 = vpop.permute.xlu0 %1182
      %1184 = vrot.lane.b32.xlu0 %v1098, 16
      %v1185 = vpop.permute.xlu0 %1184
      %1186 = vrot.lane.b32.xlu0 %v1099, 16
      %v1187 = vpop.permute.xlu0 %1186
      %1188 = vrot.lane.b32.xlu0 %v1100, 16
      %v1189 = vpop.permute.xlu0 %1188
      %1190 = vrot.lane.b32.xlu0 %v1101, 16
      %v1191 = vpop.permute.xlu0 %1190
      %1192 = vrot.lane.b32.xlu0 %v1102, 16
      %v1193 = vpop.permute.xlu0 %1192
      %1194 = vrot.lane.b32.xlu0 %v1103, 16
      %v1195 = vpop.permute.xlu0 %1194
      %1196 = vrot.lane.b32.xlu0 %v1104, 16
      %v1197 = vpop.permute.xlu0 %1196
      %1198 = vrot.lane.b32.xlu0 %v1105, 16
      %v1199 = vpop.permute.xlu0 %1198
      %1200 = vrot.lane.b32.xlu0 %v1106, 16
      %v1201 = vpop.permute.xlu0 %1200
      %1202 = vrot.lane.b32.xlu0 %v1107, 16
      %v1203 = vpop.permute.xlu0 %1202
      %vm1236 = vcmask 162944
      %1237 = vst.msk [vmem:[#allocation4] sm:$0xff] %vm1236, %v1141
      %1238 = vst.msk [vmem:[#allocation4 + $0x8] sm:$0xff] %vm1236, %v1143
      %1239 = vst.msk [vmem:[#allocation4 + $0x10] sm:$0xff] %vm1236, %v1145
      %1240 = vst.msk [vmem:[#allocation4 + $0x18] sm:$0xff] %vm1236, %v1147
      %1241 = vst.msk [vmem:[#allocation4 + $0x20] sm:$0xff] %vm1236, %v1149
      %1242 = vst.msk [vmem:[#allocation4 + $0x28] sm:$0xff] %vm1236, %v1151
      %1243 = vst.msk [vmem:[#allocation4 + $0x30] sm:$0xff] %vm1236, %v1153
      %1244 = vst.msk [vmem:[#allocation4 + $0x38] sm:$0xff] %vm1236, %v1155
      %1245 = vst.msk [vmem:[#allocation4 + $0x40] sm:$0xff] %vm1236, %v1157
      %1246 = vst.msk [vmem:[#allocation4 + $0x48] sm:$0xff] %vm1236, %v1159
      %1247 = vst.msk [vmem:[#allocation4 + $0x50] sm:$0xff] %vm1236, %v1161
      %1248 = vst.msk [vmem:[#allocation4 + $0x58] sm:$0xff] %vm1236, %v1163
      %1249 = vst.msk [vmem:[#allocation4 + $0x60] sm:$0xff] %vm1236, %v1165
      %1250 = vst.msk [vmem:[#allocation4 + $0x68] sm:$0xff] %vm1236, %v1167
      %1251 = vst.msk [vmem:[#allocation4 + $0x70] sm:$0xff] %vm1236, %v1169
      %1252 = vst.msk [vmem:[#allocation4 + $0x78] sm:$0xff] %vm1236, %v1171
      %1253 = vst.msk [vmem:[#allocation4 + $0x80] sm:$0xff] %vm1236, %v1173
      %1254 = vst.msk [vmem:[#allocation4 + $0x88] sm:$0xff] %vm1236, %v1175
      %1255 = vst.msk [vmem:[#allocation4 + $0x90] sm:$0xff] %vm1236, %v1177
      %1256 = vst.msk [vmem:[#allocation4 + $0x98] sm:$0xff] %vm1236, %v1179
      %1257 = vst.msk [vmem:[#allocation4 + $0xa0] sm:$0xff] %vm1236, %v1181
      %1258 = vst.msk [vmem:[#allocation4 + $0xa8] sm:$0xff] %vm1236, %v1183
      %1259 = vst.msk [vmem:[#allocation4 + $0xb0] sm:$0xff] %vm1236, %v1185
      %1260 = vst.msk [vmem:[#allocation4 + $0xb8] sm:$0xff] %vm1236, %v1187
      %1261 = vst.msk [vmem:[#allocation4 + $0xc0] sm:$0xff] %vm1236, %v1189
      %1262 = vst.msk [vmem:[#allocation4 + $0xc8] sm:$0xff] %vm1236, %v1191
      %1263 = vst.msk [vmem:[#allocation4 + $0xd0] sm:$0xff] %vm1236, %v1193
      %1264 = vst.msk [vmem:[#allocation4 + $0xd8] sm:$0xff] %vm1236, %v1195
      %1265 = vst.msk [vmem:[#allocation4 + $0xe0] sm:$0xff] %vm1236, %v1197
      %1266 = vst.msk [vmem:[#allocation4 + $0xe8] sm:$0xff] %vm1236, %v1199
      %1267 = vst.msk [vmem:[#allocation4 + $0xf0] sm:$0xff] %vm1236, %v1201
      %1268 = vst.msk [vmem:[#allocation4 + $0xf8] sm:$0xff] %vm1236, %v1203
      %v1269 = vld [vmem:[%s400 + $0x2] sm:$0xff]
      %v1270 = vld [vmem:[%s400 + $0xa] sm:$0xff]
      %v1271 = vld [vmem:[%s400 + $0x1a] sm:$0xff]
      %v1272 = vld [vmem:[%s400 + $0x22] sm:$0xff]
      %v1273 = vld [vmem:[%s400 + $0x32] sm:$0xff]
      %v1274 = vld [vmem:[%s400 + $0x3a] sm:$0xff]
      %v1275 = vld [vmem:[%s400 + $0x4a] sm:$0xff]
      %v1276 = vld [vmem:[%s400 + $0x52] sm:$0xff]
      %v1277 = vld [vmem:[%s400 + $0x62] sm:$0xff]
      %v1278 = vld [vmem:[%s400 + $0x6a] sm:$0xff]
      %v1279 = vld [vmem:[%s400 + $0x7a] sm:$0xff]
      %v1280 = vld [vmem:[%s400 + $0x82] sm:$0xff]
      %v1281 = vld [vmem:[%s400 + $0x92] sm:$0xff]
      %v1282 = vld [vmem:[%s400 + $0x9a] sm:$0xff]
      %v1283 = vld [vmem:[%s400 + $0xaa] sm:$0xff]
      %v1284 = vld [vmem:[%s400 + $0xb2] sm:$0xff]
      %v1285 = vld [vmem:[%s400 + $0xc2] sm:$0xff]
      %v1286 = vld [vmem:[%s400 + $0xca] sm:$0xff]
      %v1287 = vld [vmem:[%s400 + $0xda] sm:$0xff]
      %v1288 = vld [vmem:[%s400 + $0xe2] sm:$0xff]
      %v1289 = vld [vmem:[%s400 + $0xf2] sm:$0xff]
      %v1290 = vld [vmem:[%s400 + $0xfa] sm:$0xff]
      %v1291 = vld [vmem:[%s400 + $0x10a] sm:$0xff]
      %v1292 = vld [vmem:[%s400 + $0x112] sm:$0xff]
      %v1293 = vld [vmem:[%s400 + $0x122] sm:$0xff]
      %v1294 = vld [vmem:[%s400 + $0x12a] sm:$0xff]
      %v1295 = vld [vmem:[%s400 + $0x13a] sm:$0xff]
      %v1296 = vld [vmem:[%s400 + $0x142] sm:$0xff]
      %v1297 = vld [vmem:[%s400 + $0x152] sm:$0xff]
      %v1298 = vld [vmem:[%s400 + $0x15a] sm:$0xff]
      %v1299 = vld [vmem:[%s400 + $0x16a] sm:$0xff]
      %v1300 = vld [vmem:[%s400 + $0x172] sm:$0xff]
      %1333 = vrot.lane.b32.xlu0 %v1269, 20
      %v1334 = vpop.permute.xlu0 %1333
      %1335 = vrot.lane.b32.xlu0 %v1270, 20
      %v1336 = vpop.permute.xlu0 %1335
      %1337 = vrot.lane.b32.xlu0 %v1271, 20
      %v1338 = vpop.permute.xlu0 %1337
      %1339 = vrot.lane.b32.xlu0 %v1272, 20
      %v1340 = vpop.permute.xlu0 %1339
      %1341 = vrot.lane.b32.xlu0 %v1273, 20
      %v1342 = vpop.permute.xlu0 %1341
      %1343 = vrot.lane.b32.xlu0 %v1274, 20
      %v1344 = vpop.permute.xlu0 %1343
      %1345 = vrot.lane.b32.xlu0 %v1275, 20
      %v1346 = vpop.permute.xlu0 %1345
      %1347 = vrot.lane.b32.xlu0 %v1276, 20
      %v1348 = vpop.permute.xlu0 %1347
      %1349 = vrot.lane.b32.xlu0 %v1277, 20
      %v1350 = vpop.permute.xlu0 %1349
      %1351 = vrot.lane.b32.xlu0 %v1278, 20
      %v1352 = vpop.permute.xlu0 %1351
      %1353 = vrot.lane.b32.xlu0 %v1279, 20
      %v1354 = vpop.permute.xlu0 %1353
      %1355 = vrot.lane.b32.xlu0 %v1280, 20
      %v1356 = vpop.permute.xlu0 %1355
      %1357 = vrot.lane.b32.xlu0 %v1281, 20
      %v1358 = vpop.permute.xlu0 %1357
      %1359 = vrot.lane.b32.xlu0 %v1282, 20
      %v1360 = vpop.permute.xlu0 %1359
      %1361 = vrot.lane.b32.xlu0 %v1283, 20
      %v1362 = vpop.permute.xlu0 %1361
      %1363 = vrot.lane.b32.xlu0 %v1284, 20
      %v1364 = vpop.permute.xlu0 %1363
      %1365 = vrot.lane.b32.xlu0 %v1285, 20
      %v1366 = vpop.permute.xlu0 %1365
      %1367 = vrot.lane.b32.xlu0 %v1286, 20
      %v1368 = vpop.permute.xlu0 %1367
      %1369 = vrot.lane.b32.xlu0 %v1287, 20
      %v1370 = vpop.permute.xlu0 %1369
      %1371 = vrot.lane.b32.xlu0 %v1288, 20
      %v1372 = vpop.permute.xlu0 %1371
      %1373 = vrot.lane.b32.xlu0 %v1289, 20
      %v1374 = vpop.permute.xlu0 %1373
      %1375 = vrot.lane.b32.xlu0 %v1290, 20
      %v1376 = vpop.permute.xlu0 %1375
      %1377 = vrot.lane.b32.xlu0 %v1291, 20
      %v1378 = vpop.permute.xlu0 %1377
      %1379 = vrot.lane.b32.xlu0 %v1292, 20
      %v1380 = vpop.permute.xlu0 %1379
      %1381 = vrot.lane.b32.xlu0 %v1293, 20
      %v1382 = vpop.permute.xlu0 %1381
      %1383 = vrot.lane.b32.xlu0 %v1294, 20
      %v1384 = vpop.permute.xlu0 %1383
      %1385 = vrot.lane.b32.xlu0 %v1295, 20
      %v1386 = vpop.permute.xlu0 %1385
      %1387 = vrot.lane.b32.xlu0 %v1296, 20
      %v1388 = vpop.permute.xlu0 %1387
      %1389 = vrot.lane.b32.xlu0 %v1297, 20
      %v1390 = vpop.permute.xlu0 %1389
      %1391 = vrot.lane.b32.xlu0 %v1298, 20
      %v1392 = vpop.permute.xlu0 %1391
      %1393 = vrot.lane.b32.xlu0 %v1299, 20
      %v1394 = vpop.permute.xlu0 %1393
      %1395 = vrot.lane.b32.xlu0 %v1300, 20
      %v1396 = vpop.permute.xlu0 %1395
      %vm1429 = vcmask 195744
      %1430 = vst.msk [vmem:[#allocation4] sm:$0xff] %vm1429, %v1334
      %1431 = vst.msk [vmem:[#allocation4 + $0x8] sm:$0xff] %vm1429, %v1336
      %1432 = vst.msk [vmem:[#allocation4 + $0x10] sm:$0xff] %vm1429, %v1338
      %1433 = vst.msk [vmem:[#allocation4 + $0x18] sm:$0xff] %vm1429, %v1340
      %1434 = vst.msk [vmem:[#allocation4 + $0x20] sm:$0xff] %vm1429, %v1342
      %1435 = vst.msk [vmem:[#allocation4 + $0x28] sm:$0xff] %vm1429, %v1344
      %1436 = vst.msk [vmem:[#allocation4 + $0x30] sm:$0xff] %vm1429, %v1346
      %1437 = vst.msk [vmem:[#allocation4 + $0x38] sm:$0xff] %vm1429, %v1348
      %1438 = vst.msk [vmem:[#allocation4 + $0x40] sm:$0xff] %vm1429, %v1350
      %1439 = vst.msk [vmem:[#allocation4 + $0x48] sm:$0xff] %vm1429, %v1352
      %1440 = vst.msk [vmem:[#allocation4 + $0x50] sm:$0xff] %vm1429, %v1354
      %1441 = vst.msk [vmem:[#allocation4 + $0x58] sm:$0xff] %vm1429, %v1356
      %1442 = vst.msk [vmem:[#allocation4 + $0x60] sm:$0xff] %vm1429, %v1358
      %1443 = vst.msk [vmem:[#allocation4 + $0x68] sm:$0xff] %vm1429, %v1360
      %1444 = vst.msk [vmem:[#allocation4 + $0x70] sm:$0xff] %vm1429, %v1362
      %1445 = vst.msk [vmem:[#allocation4 + $0x78] sm:$0xff] %vm1429, %v1364
      %1446 = vst.msk [vmem:[#allocation4 + $0x80] sm:$0xff] %vm1429, %v1366
      %1447 = vst.msk [vmem:[#allocation4 + $0x88] sm:$0xff] %vm1429, %v1368
      %1448 = vst.msk [vmem:[#allocation4 + $0x90] sm:$0xff] %vm1429, %v1370
      %1449 = vst.msk [vmem:[#allocation4 + $0x98] sm:$0xff] %vm1429, %v1372
      %1450 = vst.msk [vmem:[#allocation4 + $0xa0] sm:$0xff] %vm1429, %v1374
      %1451 = vst.msk [vmem:[#allocation4 + $0xa8] sm:$0xff] %vm1429, %v1376
      %1452 = vst.msk [vmem:[#allocation4 + $0xb0] sm:$0xff] %vm1429, %v1378
      %1453 = vst.msk [vmem:[#allocation4 + $0xb8] sm:$0xff] %vm1429, %v1380
      %1454 = vst.msk [vmem:[#allocation4 + $0xc0] sm:$0xff] %vm1429, %v1382
      %1455 = vst.msk [vmem:[#allocation4 + $0xc8] sm:$0xff] %vm1429, %v1384
      %1456 = vst.msk [vmem:[#allocation4 + $0xd0] sm:$0xff] %vm1429, %v1386
      %1457 = vst.msk [vmem:[#allocation4 + $0xd8] sm:$0xff] %vm1429, %v1388
      %1458 = vst.msk [vmem:[#allocation4 + $0xe0] sm:$0xff] %vm1429, %v1390
      %1459 = vst.msk [vmem:[#allocation4 + $0xe8] sm:$0xff] %vm1429, %v1392
      %1460 = vst.msk [vmem:[#allocation4 + $0xf0] sm:$0xff] %vm1429, %v1394
      %1461 = vst.msk [vmem:[#allocation4 + $0xf8] sm:$0xff] %vm1429, %v1396
      %s1462 = scalar_lea.vmem [#allocation2], 48
      %v1463 = vld [vmem:[%s1462] sm:$0xff]
      %v1464 = vld [vmem:[%s1462 + $0x8] sm:$0xff]
      %v1465 = vld [vmem:[%s1462 + $0x18] sm:$0xff]
      %v1466 = vld [vmem:[%s1462 + $0x20] sm:$0xff]
      %v1467 = vld [vmem:[%s1462 + $0x30] sm:$0xff]
      %v1468 = vld [vmem:[%s1462 + $0x38] sm:$0xff]
      %v1469 = vld [vmem:[%s1462 + $0x48] sm:$0xff]
      %v1470 = vld [vmem:[%s1462 + $0x50] sm:$0xff]
      %v1471 = vld [vmem:[%s1462 + $0x60] sm:$0xff]
      %v1472 = vld [vmem:[%s1462 + $0x68] sm:$0xff]
      %v1473 = vld [vmem:[%s1462 + $0x78] sm:$0xff]
      %v1474 = vld [vmem:[%s1462 + $0x80] sm:$0xff]
      %v1475 = vld [vmem:[%s1462 + $0x90] sm:$0xff]
      %v1476 = vld [vmem:[%s1462 + $0x98] sm:$0xff]
      %v1477 = vld [vmem:[%s1462 + $0xa8] sm:$0xff]
      %v1478 = vld [vmem:[%s1462 + $0xb0] sm:$0xff]
      %v1479 = vld [vmem:[%s1462 + $0xc0] sm:$0xff]
      %v1480 = vld [vmem:[%s1462 + $0xc8] sm:$0xff]
      %v1481 = vld [vmem:[%s1462 + $0xd8] sm:$0xff]
      %v1482 = vld [vmem:[%s1462 + $0xe0] sm:$0xff]
      %v1483 = vld [vmem:[%s1462 + $0xf0] sm:$0xff]
      %v1484 = vld [vmem:[%s1462 + $0xf8] sm:$0xff]
      %v1485 = vld [vmem:[%s1462 + $0x108] sm:$0xff]
      %v1486 = vld [vmem:[%s1462 + $0x110] sm:$0xff]
      %v1487 = vld [vmem:[%s1462 + $0x120] sm:$0xff]
      %v1488 = vld [vmem:[%s1462 + $0x128] sm:$0xff]
      %v1489 = vld [vmem:[%s1462 + $0x138] sm:$0xff]
      %v1490 = vld [vmem:[%s1462 + $0x140] sm:$0xff]
      %v1491 = vld [vmem:[%s1462 + $0x150] sm:$0xff]
      %v1492 = vld [vmem:[%s1462 + $0x158] sm:$0xff]
      %v1493 = vld [vmem:[%s1462 + $0x168] sm:$0xff]
      %v1494 = vld [vmem:[%s1462 + $0x170] sm:$0xff]
      %1527 = vrot.lane.b32.xlu0 %v1463, 24
      %v1528 = vpop.permute.xlu0 %1527
      %1529 = vrot.lane.b32.xlu0 %v1464, 24
      %v1530 = vpop.permute.xlu0 %1529
      %1531 = vrot.lane.b32.xlu0 %v1465, 24
      %v1532 = vpop.permute.xlu0 %1531
      %1533 = vrot.lane.b32.xlu0 %v1466, 24
      %v1534 = vpop.permute.xlu0 %1533
      %1535 = vrot.lane.b32.xlu0 %v1467, 24
      %v1536 = vpop.permute.xlu0 %1535
      %1537 = vrot.lane.b32.xlu0 %v1468, 24
      %v1538 = vpop.permute.xlu0 %1537
      %1539 = vrot.lane.b32.xlu0 %v1469, 24
      %v1540 = vpop.permute.xlu0 %1539
      %1541 = vrot.lane.b32.xlu0 %v1470, 24
      %v1542 = vpop.permute.xlu0 %1541
      %1543 = vrot.lane.b32.xlu0 %v1471, 24
      %v1544 = vpop.permute.xlu0 %1543
      %1545 = vrot.lane.b32.xlu0 %v1472, 24
      %v1546 = vpop.permute.xlu0 %1545
      %1547 = vrot.lane.b32.xlu0 %v1473, 24
      %v1548 = vpop.permute.xlu0 %1547
      %1549 = vrot.lane.b32.xlu0 %v1474, 24
      %v1550 = vpop.permute.xlu0 %1549
      %1551 = vrot.lane.b32.xlu0 %v1475, 24
      %v1552 = vpop.permute.xlu0 %1551
      %1553 = vrot.lane.b32.xlu0 %v1476, 24
      %v1554 = vpop.permute.xlu0 %1553
      %1555 = vrot.lane.b32.xlu0 %v1477, 24
      %v1556 = vpop.permute.xlu0 %1555
      %1557 = vrot.lane.b32.xlu0 %v1478, 24
      %v1558 = vpop.permute.xlu0 %1557
      %1559 = vrot.lane.b32.xlu0 %v1479, 24
      %v1560 = vpop.permute.xlu0 %1559
      %1561 = vrot.lane.b32.xlu0 %v1480, 24
      %v1562 = vpop.permute.xlu0 %1561
      %1563 = vrot.lane.b32.xlu0 %v1481, 24
      %v1564 = vpop.permute.xlu0 %1563
      %1565 = vrot.lane.b32.xlu0 %v1482, 24
      %v1566 = vpop.permute.xlu0 %1565
      %1567 = vrot.lane.b32.xlu0 %v1483, 24
      %v1568 = vpop.permute.xlu0 %1567
      %1569 = vrot.lane.b32.xlu0 %v1484, 24
      %v1570 = vpop.permute.xlu0 %1569
      %1571 = vrot.lane.b32.xlu0 %v1485, 24
      %v1572 = vpop.permute.xlu0 %1571
      %1573 = vrot.lane.b32.xlu0 %v1486, 24
      %v1574 = vpop.permute.xlu0 %1573
      %1575 = vrot.lane.b32.xlu0 %v1487, 24
      %v1576 = vpop.permute.xlu0 %1575
      %1577 = vrot.lane.b32.xlu0 %v1488, 24
      %v1578 = vpop.permute.xlu0 %1577
      %1579 = vrot.lane.b32.xlu0 %v1489, 24
      %v1580 = vpop.permute.xlu0 %1579
      %1581 = vrot.lane.b32.xlu0 %v1490, 24
      %v1582 = vpop.permute.xlu0 %1581
      %1583 = vrot.lane.b32.xlu0 %v1491, 24
      %v1584 = vpop.permute.xlu0 %1583
      %1585 = vrot.lane.b32.xlu0 %v1492, 24
      %v1586 = vpop.permute.xlu0 %1585
      %1587 = vrot.lane.b32.xlu0 %v1493, 24
      %v1588 = vpop.permute.xlu0 %1587
      %1589 = vrot.lane.b32.xlu0 %v1494, 24
      %v1590 = vpop.permute.xlu0 %1589
      %vm1623 = vcmask 228544
      %1624 = vst.msk [vmem:[#allocation4] sm:$0xff] %vm1623, %v1528
      %1625 = vst.msk [vmem:[#allocation4 + $0x8] sm:$0xff] %vm1623, %v1530
      %1626 = vst.msk [vmem:[#allocation4 + $0x10] sm:$0xff] %vm1623, %v1532
      %1627 = vst.msk [vmem:[#allocation4 + $0x18] sm:$0xff] %vm1623, %v1534
      %1628 = vst.msk [vmem:[#allocation4 + $0x20] sm:$0xff] %vm1623, %v1536
      %1629 = vst.msk [vmem:[#allocation4 + $0x28] sm:$0xff] %vm1623, %v1538
      %1630 = vst.msk [vmem:[#allocation4 + $0x30] sm:$0xff] %vm1623, %v1540
      %1631 = vst.msk [vmem:[#allocation4 + $0x38] sm:$0xff] %vm1623, %v1542
      %1632 = vst.msk [vmem:[#allocation4 + $0x40] sm:$0xff] %vm1623, %v1544
      %1633 = vst.msk [vmem:[#allocation4 + $0x48] sm:$0xff] %vm1623, %v1546
      %1634 = vst.msk [vmem:[#allocation4 + $0x50] sm:$0xff] %vm1623, %v1548
      %1635 = vst.msk [vmem:[#allocation4 + $0x58] sm:$0xff] %vm1623, %v1550
      %1636 = vst.msk [vmem:[#allocation4 + $0x60] sm:$0xff] %vm1623, %v1552
      %1637 = vst.msk [vmem:[#allocation4 + $0x68] sm:$0xff] %vm1623, %v1554
      %1638 = vst.msk [vmem:[#allocation4 + $0x70] sm:$0xff] %vm1623, %v1556
      %1639 = vst.msk [vmem:[#allocation4 + $0x78] sm:$0xff] %vm1623, %v1558
      %1640 = vst.msk [vmem:[#allocation4 + $0x80] sm:$0xff] %vm1623, %v1560
      %1641 = vst.msk [vmem:[#allocation4 + $0x88] sm:$0xff] %vm1623, %v1562
      %1642 = vst.msk [vmem:[#allocation4 + $0x90] sm:$0xff] %vm1623, %v1564
      %1643 = vst.msk [vmem:[#allocation4 + $0x98] sm:$0xff] %vm1623, %v1566
      %1644 = vst.msk [vmem:[#allocation4 + $0xa0] sm:$0xff] %vm1623, %v1568
      %1645 = vst.msk [vmem:[#allocation4 + $0xa8] sm:$0xff] %vm1623, %v1570
      %1646 = vst.msk [vmem:[#allocation4 + $0xb0] sm:$0xff] %vm1623, %v1572
      %1647 = vst.msk [vmem:[#allocation4 + $0xb8] sm:$0xff] %vm1623, %v1574
      %1648 = vst.msk [vmem:[#allocation4 + $0xc0] sm:$0xff] %vm1623, %v1576
      %1649 = vst.msk [vmem:[#allocation4 + $0xc8] sm:$0xff] %vm1623, %v1578
      %1650 = vst.msk [vmem:[#allocation4 + $0xd0] sm:$0xff] %vm1623, %v1580
      %1651 = vst.msk [vmem:[#allocation4 + $0xd8] sm:$0xff] %vm1623, %v1582
      %1652 = vst.msk [vmem:[#allocation4 + $0xe0] sm:$0xff] %vm1623, %v1584
      %1653 = vst.msk [vmem:[#allocation4 + $0xe8] sm:$0xff] %vm1623, %v1586
      %1654 = vst.msk [vmem:[#allocation4 + $0xf0] sm:$0xff] %vm1623, %v1588
      %1655 = vst.msk [vmem:[#allocation4 + $0xf8] sm:$0xff] %vm1623, %v1590
      %v1656 = vld [vmem:[%s1462 + $0x1] sm:$0xff]
      %v1657 = vld [vmem:[%s1462 + $0x9] sm:$0xff]
      %v1658 = vld [vmem:[%s1462 + $0x19] sm:$0xff]
      %v1659 = vld [vmem:[%s1462 + $0x21] sm:$0xff]
      %v1660 = vld [vmem:[%s1462 + $0x31] sm:$0xff]
      %v1661 = vld [vmem:[%s1462 + $0x39] sm:$0xff]
      %v1662 = vld [vmem:[%s1462 + $0x49] sm:$0xff]
      %v1663 = vld [vmem:[%s1462 + $0x51] sm:$0xff]
      %v1664 = vld [vmem:[%s1462 + $0x61] sm:$0xff]
      %v1665 = vld [vmem:[%s1462 + $0x69] sm:$0xff]
      %v1666 = vld [vmem:[%s1462 + $0x79] sm:$0xff]
      %v1667 = vld [vmem:[%s1462 + $0x81] sm:$0xff]
      %v1668 = vld [vmem:[%s1462 + $0x91] sm:$0xff]
      %v1669 = vld [vmem:[%s1462 + $0x99] sm:$0xff]
      %v1670 = vld [vmem:[%s1462 + $0xa9] sm:$0xff]
      %v1671 = vld [vmem:[%s1462 + $0xb1] sm:$0xff]
      %v1672 = vld [vmem:[%s1462 + $0xc1] sm:$0xff]
      %v1673 = vld [vmem:[%s1462 + $0xc9] sm:$0xff]
      %v1674 = vld [vmem:[%s1462 + $0xd9] sm:$0xff]
      %v1675 = vld [vmem:[%s1462 + $0xe1] sm:$0xff]
      %v1676 = vld [vmem:[%s1462 + $0xf1] sm:$0xff]
      %v1677 = vld [vmem:[%s1462 + $0xf9] sm:$0xff]
      %v1678 = vld [vmem:[%s1462 + $0x109] sm:$0xff]
      %v1679 = vld [vmem:[%s1462 + $0x111] sm:$0xff]
      %v1680 = vld [vmem:[%s1462 + $0x121] sm:$0xff]
      %v1681 = vld [vmem:[%s1462 + $0x129] sm:$0xff]
      %v1682 = vld [vmem:[%s1462 + $0x139] sm:$0xff]
      %v1683 = vld [vmem:[%s1462 + $0x141] sm:$0xff]
      %v1684 = vld [vmem:[%s1462 + $0x151] sm:$0xff]
      %v1685 = vld [vmem:[%s1462 + $0x159] sm:$0xff]
      %v1686 = vld [vmem:[%s1462 + $0x169] sm:$0xff]
      %v1687 = vld [vmem:[%s1462 + $0x171] sm:$0xff]
      %1720 = vrot.lane.b32.xlu0 %v1656, 28
      %v1721 = vpop.permute.xlu0 %1720
      %1722 = vrot.lane.b32.xlu0 %v1657, 28
      %v1723 = vpop.permute.xlu0 %1722
      %1724 = vrot.lane.b32.xlu0 %v1658, 28
      %v1725 = vpop.permute.xlu0 %1724
      %1726 = vrot.lane.b32.xlu0 %v1659, 28
      %v1727 = vpop.permute.xlu0 %1726
      %1728 = vrot.lane.b32.xlu0 %v1660, 28
      %v1729 = vpop.permute.xlu0 %1728
      %1730 = vrot.lane.b32.xlu0 %v1661, 28
      %v1731 = vpop.permute.xlu0 %1730
      %1732 = vrot.lane.b32.xlu0 %v1662, 28
      %v1733 = vpop.permute.xlu0 %1732
      %1734 = vrot.lane.b32.xlu0 %v1663, 28
      %v1735 = vpop.permute.xlu0 %1734
      %1736 = vrot.lane.b32.xlu0 %v1664, 28
      %v1737 = vpop.permute.xlu0 %1736
      %1738 = vrot.lane.b32.xlu0 %v1665, 28
      %v1739 = vpop.permute.xlu0 %1738
      %1740 = vrot.lane.b32.xlu0 %v1666, 28
      %v1741 = vpop.permute.xlu0 %1740
      %1742 = vrot.lane.b32.xlu0 %v1667, 28
      %v1743 = vpop.permute.xlu0 %1742
      %1744 = vrot.lane.b32.xlu0 %v1668, 28
      %v1745 = vpop.permute.xlu0 %1744
      %1746 = vrot.lane.b32.xlu0 %v1669, 28
      %v1747 = vpop.permute.xlu0 %1746
      %1748 = vrot.lane.b32.xlu0 %v1670, 28
      %v1749 = vpop.permute.xlu0 %1748
      %1750 = vrot.lane.b32.xlu0 %v1671, 28
      %v1751 = vpop.permute.xlu0 %1750
      %1752 = vrot.lane.b32.xlu0 %v1672, 28
      %v1753 = vpop.permute.xlu0 %1752
      %1754 = vrot.lane.b32.xlu0 %v1673, 28
      %v1755 = vpop.permute.xlu0 %1754
      %1756 = vrot.lane.b32.xlu0 %v1674, 28
      %v1757 = vpop.permute.xlu0 %1756
      %1758 = vrot.lane.b32.xlu0 %v1675, 28
      %v1759 = vpop.permute.xlu0 %1758
      %1760 = vrot.lane.b32.xlu0 %v1676, 28
      %v1761 = vpop.permute.xlu0 %1760
      %1762 = vrot.lane.b32.xlu0 %v1677, 28
      %v1763 = vpop.permute.xlu0 %1762
      %1764 = vrot.lane.b32.xlu0 %v1678, 28
      %v1765 = vpop.permute.xlu0 %1764
      %1766 = vrot.lane.b32.xlu0 %v1679, 28
      %v1767 = vpop.permute.xlu0 %1766
      %1768 = vrot.lane.b32.xlu0 %v1680, 28
      %v1769 = vpop.permute.xlu0 %1768
      %1770 = vrot.lane.b32.xlu0 %v1681, 28
      %v1771 = vpop.permute.xlu0 %1770
      %1772 = vrot.lane.b32.xlu0 %v1682, 28
      %v1773 = vpop.permute.xlu0 %1772
      %1774 = vrot.lane.b32.xlu0 %v1683, 28
      %v1775 = vpop.permute.xlu0 %1774
      %1776 = vrot.lane.b32.xlu0 %v1684, 28
      %v1777 = vpop.permute.xlu0 %1776
      %1778 = vrot.lane.b32.xlu0 %v1685, 28
      %v1779 = vpop.permute.xlu0 %1778
      %1780 = vrot.lane.b32.xlu0 %v1686, 28
      %v1781 = vpop.permute.xlu0 %1780
      %1782 = vrot.lane.b32.xlu0 %v1687, 28
      %v1783 = vpop.permute.xlu0 %1782
      %vm1816 = vcmask 261344
      %1817 = vst.msk [vmem:[#allocation4] sm:$0xff] %vm1816, %v1721
      %1818 = vst.msk [vmem:[#allocation4 + $0x8] sm:$0xff] %vm1816, %v1723
      %1819 = vst.msk [vmem:[#allocation4 + $0x10] sm:$0xff] %vm1816, %v1725
      %1820 = vst.msk [vmem:[#allocation4 + $0x18] sm:$0xff] %vm1816, %v1727
      %1821 = vst.msk [vmem:[#allocation4 + $0x20] sm:$0xff] %vm1816, %v1729
      %1822 = vst.msk [vmem:[#allocation4 + $0x28] sm:$0xff] %vm1816, %v1731
      %1823 = vst.msk [vmem:[#allocation4 + $0x30] sm:$0xff] %vm1816, %v1733
      %1824 = vst.msk [vmem:[#allocation4 + $0x38] sm:$0xff] %vm1816, %v1735
      %1825 = vst.msk [vmem:[#allocation4 + $0x40] sm:$0xff] %vm1816, %v1737
      %1826 = vst.msk [vmem:[#allocation4 + $0x48] sm:$0xff] %vm1816, %v1739
      %1827 = vst.msk [vmem:[#allocation4 + $0x50] sm:$0xff] %vm1816, %v1741
      %1828 = vst.msk [vmem:[#allocation4 + $0x58] sm:$0xff] %vm1816, %v1743
      %1829 = vst.msk [vmem:[#allocation4 + $0x60] sm:$0xff] %vm1816, %v1745
      %1830 = vst.msk [vmem:[#allocation4 + $0x68] sm:$0xff] %vm1816, %v1747
      %1831 = vst.msk [vmem:[#allocation4 + $0x70] sm:$0xff] %vm1816, %v1749
      %1832 = vst.msk [vmem:[#allocation4 + $0x78] sm:$0xff] %vm1816, %v1751
      %1833 = vst.msk [vmem:[#allocation4 + $0x80] sm:$0xff] %vm1816, %v1753
      %1834 = vst.msk [vmem:[#allocation4 + $0x88] sm:$0xff] %vm1816, %v1755
      %1835 = vst.msk [vmem:[#allocation4 + $0x90] sm:$0xff] %vm1816, %v1757
      %1836 = vst.msk [vmem:[#allocation4 + $0x98] sm:$0xff] %vm1816, %v1759
      %1837 = vst.msk [vmem:[#allocation4 + $0xa0] sm:$0xff] %vm1816, %v1761
      %1838 = vst.msk [vmem:[#allocation4 + $0xa8] sm:$0xff] %vm1816, %v1763
      %1839 = vst.msk [vmem:[#allocation4 + $0xb0] sm:$0xff] %vm1816, %v1765
      %1840 = vst.msk [vmem:[#allocation4 + $0xb8] sm:$0xff] %vm1816, %v1767
      %1841 = vst.msk [vmem:[#allocation4 + $0xc0] sm:$0xff] %vm1816, %v1769
      %1842 = vst.msk [vmem:[#allocation4 + $0xc8] sm:$0xff] %vm1816, %v1771
      %1843 = vst.msk [vmem:[#allocation4 + $0xd0] sm:$0xff] %vm1816, %v1773
      %1844 = vst.msk [vmem:[#allocation4 + $0xd8] sm:$0xff] %vm1816, %v1775
      %1845 = vst.msk [vmem:[#allocation4 + $0xe0] sm:$0xff] %vm1816, %v1777
      %1846 = vst.msk [vmem:[#allocation4 + $0xe8] sm:$0xff] %vm1816, %v1779
      %1847 = vst.msk [vmem:[#allocation4 + $0xf0] sm:$0xff] %vm1816, %v1781
      %1848 = vst.msk [vmem:[#allocation4 + $0xf8] sm:$0xff] %vm1816, %v1783
      %v1849 = vld [vmem:[%s1462 + $0x2] sm:$0xff]
      %v1850 = vld [vmem:[%s1462 + $0xa] sm:$0xff]
      %v1851 = vld [vmem:[%s1462 + $0x1a] sm:$0xff]
      %v1852 = vld [vmem:[%s1462 + $0x22] sm:$0xff]
      %v1853 = vld [vmem:[%s1462 + $0x32] sm:$0xff]
      %v1854 = vld [vmem:[%s1462 + $0x3a] sm:$0xff]
      %v1855 = vld [vmem:[%s1462 + $0x4a] sm:$0xff]
      %v1856 = vld [vmem:[%s1462 + $0x52] sm:$0xff]
      %v1857 = vld [vmem:[%s1462 + $0x62] sm:$0xff]
      %v1858 = vld [vmem:[%s1462 + $0x6a] sm:$0xff]
      %v1859 = vld [vmem:[%s1462 + $0x7a] sm:$0xff]
      %v1860 = vld [vmem:[%s1462 + $0x82] sm:$0xff]
      %v1861 = vld [vmem:[%s1462 + $0x92] sm:$0xff]
      %v1862 = vld [vmem:[%s1462 + $0x9a] sm:$0xff]
      %v1863 = vld [vmem:[%s1462 + $0xaa] sm:$0xff]
      %v1864 = vld [vmem:[%s1462 + $0xb2] sm:$0xff]
      %v1865 = vld [vmem:[%s1462 + $0xc2] sm:$0xff]
      %v1866 = vld [vmem:[%s1462 + $0xca] sm:$0xff]
      %v1867 = vld [vmem:[%s1462 + $0xda] sm:$0xff]
      %v1868 = vld [vmem:[%s1462 + $0xe2] sm:$0xff]
      %v1869 = vld [vmem:[%s1462 + $0xf2] sm:$0xff]
      %v1870 = vld [vmem:[%s1462 + $0xfa] sm:$0xff]
      %v1871 = vld [vmem:[%s1462 + $0x10a] sm:$0xff]
      %v1872 = vld [vmem:[%s1462 + $0x112] sm:$0xff]
      %v1873 = vld [vmem:[%s1462 + $0x122] sm:$0xff]
      %v1874 = vld [vmem:[%s1462 + $0x12a] sm:$0xff]
      %v1875 = vld [vmem:[%s1462 + $0x13a] sm:$0xff]
      %v1876 = vld [vmem:[%s1462 + $0x142] sm:$0xff]
      %v1877 = vld [vmem:[%s1462 + $0x152] sm:$0xff]
      %v1878 = vld [vmem:[%s1462 + $0x15a] sm:$0xff]
      %v1879 = vld [vmem:[%s1462 + $0x16a] sm:$0xff]
      %v1880 = vld [vmem:[%s1462 + $0x172] sm:$0xff]
      %1913 = vrot.lane.b32.xlu0 %v1849, 32
      %v1914 = vpop.permute.xlu0 %1913
      %1915 = vrot.lane.b32.xlu0 %v1850, 32
      %v1916 = vpop.permute.xlu0 %1915
      %1917 = vrot.lane.b32.xlu0 %v1851, 32
      %v1918 = vpop.permute.xlu0 %1917
      %1919 = vrot.lane.b32.xlu0 %v1852, 32
      %v1920 = vpop.permute.xlu0 %1919
      %1921 = vrot.lane.b32.xlu0 %v1853, 32
      %v1922 = vpop.permute.xlu0 %1921
      %1923 = vrot.lane.b32.xlu0 %v1854, 32
      %v1924 = vpop.permute.xlu0 %1923
      %1925 = vrot.lane.b32.xlu0 %v1855, 32
      %v1926 = vpop.permute.xlu0 %1925
      %1927 = vrot.lane.b32.xlu0 %v1856, 32
      %v1928 = vpop.permute.xlu0 %1927
      %1929 = vrot.lane.b32.xlu0 %v1857, 32
      %v1930 = vpop.permute.xlu0 %1929
      %1931 = vrot.lane.b32.xlu0 %v1858, 32
      %v1932 = vpop.permute.xlu0 %1931
      %1933 = vrot.lane.b32.xlu0 %v1859, 32
      %v1934 = vpop.permute.xlu0 %1933
      %1935 = vrot.lane.b32.xlu0 %v1860, 32
      %v1936 = vpop.permute.xlu0 %1935
      %1937 = vrot.lane.b32.xlu0 %v1861, 32
      %v1938 = vpop.permute.xlu0 %1937
      %1939 = vrot.lane.b32.xlu0 %v1862, 32
      %v1940 = vpop.permute.xlu0 %1939
      %1941 = vrot.lane.b32.xlu0 %v1863, 32
      %v1942 = vpop.permute.xlu0 %1941
      %1943 = vrot.lane.b32.xlu0 %v1864, 32
      %v1944 = vpop.permute.xlu0 %1943
      %1945 = vrot.lane.b32.xlu0 %v1865, 32
      %v1946 = vpop.permute.xlu0 %1945
      %1947 = vrot.lane.b32.xlu0 %v1866, 32
      %v1948 = vpop.permute.xlu0 %1947
      %1949 = vrot.lane.b32.xlu0 %v1867, 32
      %v1950 = vpop.permute.xlu0 %1949
      %1951 = vrot.lane.b32.xlu0 %v1868, 32
      %v1952 = vpop.permute.xlu0 %1951
      %1953 = vrot.lane.b32.xlu0 %v1869, 32
      %v1954 = vpop.permute.xlu0 %1953
      %1955 = vrot.lane.b32.xlu0 %v1870, 32
      %v1956 = vpop.permute.xlu0 %1955
      %1957 = vrot.lane.b32.xlu0 %v1871, 32
      %v1958 = vpop.permute.xlu0 %1957
      %1959 = vrot.lane.b32.xlu0 %v1872, 32
      %v1960 = vpop.permute.xlu0 %1959
      %1961 = vrot.lane.b32.xlu0 %v1873, 32
      %v1962 = vpop.permute.xlu0 %1961
      %1963 = vrot.lane.b32.xlu0 %v1874, 32
      %v1964 = vpop.permute.xlu0 %1963
      %1965 = vrot.lane.b32.xlu0 %v1875, 32
      %v1966 = vpop.permute.xlu0 %1965
      %1967 = vrot.lane.b32.xlu0 %v1876, 32
      %v1968 = vpop.permute.xlu0 %1967
      %1969 = vrot.lane.b32.xlu0 %v1877, 32
      %v1970 = vpop.permute.xlu0 %1969
      %1971 = vrot.lane.b32.xlu0 %v1878, 32
      %v1972 = vpop.permute.xlu0 %1971
      %1973 = vrot.lane.b32.xlu0 %v1879, 32
      %v1974 = vpop.permute.xlu0 %1973
      %1975 = vrot.lane.b32.xlu0 %v1880, 32
      %v1976 = vpop.permute.xlu0 %1975
      %vm2009 = vcmask 294144
      %2010 = vst.msk [vmem:[#allocation4] sm:$0xff] %vm2009, %v1914
      %2011 = vst.msk [vmem:[#allocation4 + $0x8] sm:$0xff] %vm2009, %v1916
      %2012 = vst.msk [vmem:[#allocation4 + $0x10] sm:$0xff] %vm2009, %v1918
      %2013 = vst.msk [vmem:[#allocation4 + $0x18] sm:$0xff] %vm2009, %v1920
      %2014 = vst.msk [vmem:[#allocation4 + $0x20] sm:$0xff] %vm2009, %v1922
      %2015 = vst.msk [vmem:[#allocation4 + $0x28] sm:$0xff] %vm2009, %v1924
      %2016 = vst.msk [vmem:[#allocation4 + $0x30] sm:$0xff] %vm2009, %v1926
      %2017 = vst.msk [vmem:[#allocation4 + $0x38] sm:$0xff] %vm2009, %v1928
      %2018 = vst.msk [vmem:[#allocation4 + $0x40] sm:$0xff] %vm2009, %v1930
      %2019 = vst.msk [vmem:[#allocation4 + $0x48] sm:$0xff] %vm2009, %v1932
      %2020 = vst.msk [vmem:[#allocation4 + $0x50] sm:$0xff] %vm2009, %v1934
      %2021 = vst.msk [vmem:[#allocation4 + $0x58] sm:$0xff] %vm2009, %v1936
      %2022 = vst.msk [vmem:[#allocation4 + $0x60] sm:$0xff] %vm2009, %v1938
      %2023 = vst.msk [vmem:[#allocation4 + $0x68] sm:$0xff] %vm2009, %v1940
      %2024 = vst.msk [vmem:[#allocation4 + $0x70] sm:$0xff] %vm2009, %v1942
      %2025 = vst.msk [vmem:[#allocation4 + $0x78] sm:$0xff] %vm2009, %v1944
      %2026 = vst.msk [vmem:[#allocation4 + $0x80] sm:$0xff] %vm2009, %v1946
      %2027 = vst.msk [vmem:[#allocation4 + $0x88] sm:$0xff] %vm2009, %v1948
      %2028 = vst.msk [vmem:[#allocation4 + $0x90] sm:$0xff] %vm2009, %v1950
      %2029 = vst.msk [vmem:[#allocation4 + $0x98] sm:$0xff] %vm2009, %v1952
      %2030 = vst.msk [vmem:[#allocation4 + $0xa0] sm:$0xff] %vm2009, %v1954
      %2031 = vst.msk [vmem:[#allocation4 + $0xa8] sm:$0xff] %vm2009, %v1956
      %2032 = vst.msk [vmem:[#allocation4 + $0xb0] sm:$0xff] %vm2009, %v1958
      %2033 = vst.msk [vmem:[#allocation4 + $0xb8] sm:$0xff] %vm2009, %v1960
      %2034 = vst.msk [vmem:[#allocation4 + $0xc0] sm:$0xff] %vm2009, %v1962
      %2035 = vst.msk [vmem:[#allocation4 + $0xc8] sm:$0xff] %vm2009, %v1964
      %2036 = vst.msk [vmem:[#allocation4 + $0xd0] sm:$0xff] %vm2009, %v1966
      %2037 = vst.msk [vmem:[#allocation4 + $0xd8] sm:$0xff] %vm2009, %v1968
      %2038 = vst.msk [vmem:[#allocation4 + $0xe0] sm:$0xff] %vm2009, %v1970
      %2039 = vst.msk [vmem:[#allocation4 + $0xe8] sm:$0xff] %vm2009, %v1972
      %2040 = vst.msk [vmem:[#allocation4 + $0xf0] sm:$0xff] %vm2009, %v1974
      %2041 = vst.msk [vmem:[#allocation4 + $0xf8] sm:$0xff] %vm2009, %v1976
      %v2042 = vld [vmem:[#allocation4] sm:$0xff]
      %v2043 = vld [vmem:[#allocation4 + $0x8] sm:$0xff]
      %v2044 = vld [vmem:[#allocation4 + $0x10] sm:$0xff]
      %v2045 = vld [vmem:[#allocation4 + $0x18] sm:$0xff]
      %v2046 = vld [vmem:[#allocation4 + $0x20] sm:$0xff]
      %v2047 = vld [vmem:[#allocation4 + $0x28] sm:$0xff]
      %v2048 = vld [vmem:[#allocation4 + $0x30] sm:$0xff]
      %v2049 = vld [vmem:[#allocation4 + $0x38] sm:$0xff]
      %v2050 = vld [vmem:[#allocation4 + $0x40] sm:$0xff]
      %v2051 = vld [vmem:[#allocation4 + $0x48] sm:$0xff]
      %v2052 = vld [vmem:[#allocation4 + $0x50] sm:$0xff]
      %v2053 = vld [vmem:[#allocation4 + $0x58] sm:$0xff]
      %v2054 = vld [vmem:[#allocation4 + $0x60] sm:$0xff]
      %v2055 = vld [vmem:[#allocation4 + $0x68] sm:$0xff]
      %v2056 = vld [vmem:[#allocation4 + $0x70] sm:$0xff]
      %v2057 = vld [vmem:[#allocation4 + $0x78] sm:$0xff]
      %v2058 = vld [vmem:[#allocation4 + $0x80] sm:$0xff]
      %v2059 = vld [vmem:[#allocation4 + $0x88] sm:$0xff]
      %v2060 = vld [vmem:[#allocation4 + $0x90] sm:$0xff]
      %v2061 = vld [vmem:[#allocation4 + $0x98] sm:$0xff]
      %v2062 = vld [vmem:[#allocation4 + $0xa0] sm:$0xff]
      %v2063 = vld [vmem:[#allocation4 + $0xa8] sm:$0xff]
      %v2064 = vld [vmem:[#allocation4 + $0xb0] sm:$0xff]
      %v2065 = vld [vmem:[#allocation4 + $0xb8] sm:$0xff]
      %v2066 = vld [vmem:[#allocation4 + $0xc0] sm:$0xff]
      %v2067 = vld [vmem:[#allocation4 + $0xc8] sm:$0xff]
      %v2068 = vld [vmem:[#allocation4 + $0xd0] sm:$0xff]
      %v2069 = vld [vmem:[#allocation4 + $0xd8] sm:$0xff]
      %v2070 = vld [vmem:[#allocation4 + $0xe0] sm:$0xff]
      %v2071 = vld [vmem:[#allocation4 + $0xe8] sm:$0xff]
      %v2072 = vld [vmem:[#allocation4 + $0xf0] sm:$0xff]
      %v2073 = vld [vmem:[#allocation4 + $0xf8] sm:$0xff]
      %v2074 = vld [vmem:[%s1] sm:$0xff]
      %v2075 = vld [vmem:[%s1 + $0x8] sm:$0xff]
      %v2076 = vld [vmem:[%s1 + $0x10] sm:$0xff]
      %v2077 = vld [vmem:[%s1 + $0x18] sm:$0xff]
      %v2078 = vld [vmem:[%s1 + $0x20] sm:$0xf]
      %vm2079 = vcmask 293888
      %v2081 = vsel %vm2079, %v2042, 0
      %v2084 = vsel %vm2079, %v2043, 0
      %v2087 = vsel %vm2079, %v2044, 0
      %v2090 = vsel %vm2079, %v2045, 0
      %v2093 = vsel %vm2079, %v2046, 0
      %v2096 = vsel %vm2079, %v2047, 0
      %v2099 = vsel %vm2079, %v2048, 0
      %v2102 = vsel %vm2079, %v2049, 0
      %v2105 = vsel %vm2079, %v2050, 0
      %v2108 = vsel %vm2079, %v2051, 0
      %v2111 = vsel %vm2079, %v2052, 0
      %v2114 = vsel %vm2079, %v2053, 0
      %v2117 = vsel %vm2079, %v2054, 0
      %v2120 = vsel %vm2079, %v2055, 0
      %v2123 = vsel %vm2079, %v2056, 0
      %v2126 = vsel %vm2079, %v2057, 0
      %v2129 = vsel %vm2079, %v2058, 0
      %v2132 = vsel %vm2079, %v2059, 0
      %v2135 = vsel %vm2079, %v2060, 0
      %v2138 = vsel %vm2079, %v2061, 0
      %v2141 = vsel %vm2079, %v2062, 0
      %v2144 = vsel %vm2079, %v2063, 0
      %v2147 = vsel %vm2079, %v2064, 0
      %v2150 = vsel %vm2079, %v2065, 0
      %v2153 = vsel %vm2079, %v2066, 0
      %v2156 = vsel %vm2079, %v2067, 0
      %v2159 = vsel %vm2079, %v2068, 0
      %v2162 = vsel %vm2079, %v2069, 0
      %v2165 = vsel %vm2079, %v2070, 0
      %v2168 = vsel %vm2079, %v2071, 0
      %v2171 = vsel %vm2079, %v2072, 0
      %v2174 = vsel %vm2079, %v2073, 0
      %vm2176 = vcmask 1043456
      %v2178 = vsel %vm2176, %v2078, 0
      %2180 = vmatprep.subr.mxu0 0.0
      %2181 = vmatpush1.msra.mxu0 %v2074
      %2182 = vmatprep.subr.mxu0 0.0
      %2183 = vmatpush1.msra.mxu0 %v2075
      %2184 = vmatprep.subr.mxu0 0.0
      %2185 = vmatpush1.msra.mxu0 %v2076
      %2186 = vmatprep.subr.mxu0 0.0
      %2187 = vmatpush1.msra.mxu0 %v2077
      %2188 = vmatprep.subr.mxu0 0.0
      %2189 = vmatpush1.msra.mxu0 %v2178
      %2190 = vmatprep.subr.mxu0 0.0
      %2191 = vmatpush1.msra.mxu0 0.0
      %2192 = vmatprep.subr.mxu0 0.0
      %2193 = vmatpush1.msra.mxu0 0.0
      %2194 = vmatprep.subr.mxu0 0.0
      %2195 = vmatpush1.msra.mxu0 0.0
      %2196 = vmatprep.subr.mxu0 0.0
      %2197 = vmatpush1.msra.mxu0 0.0
      %2198 = vmatprep.subr.mxu0 0.0
      %2199 = vmatpush1.msra.mxu0 0.0
      %2200 = vmatprep.subr.mxu0 0.0
      %2201 = vmatpush1.msra.mxu0 0.0
      %2202 = vmatprep.subr.mxu0 0.0
      %2203 = vmatpush1.msra.mxu0 0.0
      %2204 = vmatprep.subr.mxu0 0.0
      %2205 = vmatpush1.msra.mxu0 0.0
      %2206 = vmatprep.subr.mxu0 0.0
      %2207 = vmatpush1.msra.mxu0 0.0
      %2208 = vmatprep.subr.mxu0 0.0
      %2209 = vmatpush1.msra.mxu0 0.0
      %2210 = vmatprep.subr.mxu0 0.0
      %2211 = vmatpush1.msra.mxu0 0.0
      %2212 = vmatprep.subr.mxu0 0.0
      %2213 = vmatpush1.msra.mxu0 0.0
      %2214 = vmatprep.subr.mxu0 0.0
      %2215 = vmatpush1.msra.mxu0 0.0
      %2216 = vmatprep.subr.mxu0 0.0
      %2217 = vmatpush1.msra.mxu0 0.0
      %2218 = vmatprep.subr.mxu0 0.0
      %2219 = vmatpush1.msra.mxu0 0.0
      %2220 = vmatprep.subr.mxu0 0.0
      %2221 = vmatpush1.msra.mxu0 0.0
      %2222 = vmatprep.subr.mxu0 0.0
      %2223 = vmatpush1.msra.mxu0 0.0
      %2224 = vmatprep.subr.mxu0 0.0
      %2225 = vmatpush1.msra.mxu0 0.0
      %2226 = vmatprep.subr.mxu0 0.0
      %2227 = vmatpush1.msra.mxu0 0.0
      %2228 = vmatprep.subr.mxu0 0.0
      %2229 = vmatpush1.msra.mxu0 0.0
      %2230 = vmatprep.subr.mxu0 0.0
      %2231 = vmatpush1.msra.mxu0 0.0
      %2232 = vmatprep.subr.mxu0 0.0
      %2233 = vmatpush1.msra.mxu0 0.0
      %2234 = vmatprep.subr.mxu0 0.0
      %2235 = vmatpush1.msra.mxu0 0.0
      %2236 = vmatprep.subr.mxu0 0.0
      %2237 = vmatpush1.msra.mxu0 0.0
      %2238 = vmatprep.subr.mxu0 0.0
      %2239 = vmatpush1.msra.mxu0 0.0
      %2240 = vmatprep.subr.mxu0 0.0
      %2241 = vmatpush1.msra.mxu0 0.0
      %2242 = vmatprep.subr.mxu0 0.0
      %2243 = vmatpush1.msra.mxu0 0.0
      %2244 = vmatprep.mubr.f32.mxu0 0.0
      %2245 = vmatmul.mubr.f32.gmra.mrb[0].mxu0 %v2081
      %v2246 = vpop.f32.mrb[0].mxu0
      %v2247 = vadd.f32 0.0, %v2246
      %v2248 = vpop.f32.mrb[0].mxu0
      %2249 = vmatprep.mubr.f32.mxu0 0.0
      %2250 = vmatmul.mubr.f32.gmra.mrb[0].mxu0 %v2084
      %v2251 = vpop.f32.mrb[0].mxu0
      %v2252 = vadd.f32 0.0, %v2251
      %v2253 = vpop.f32.mrb[0].mxu0
      %2254 = vmatprep.mubr.f32.mxu0 0.0
      %2255 = vmatmul.mubr.f32.gmra.mrb[0].mxu0 %v2087
      %v2256 = vpop.f32.mrb[0].mxu0
      %v2257 = vadd.f32 0.0, %v2256
      %v2258 = vpop.f32.mrb[0].mxu0
      %2259 = vmatprep.mubr.f32.mxu0 0.0
      %2260 = vmatmul.mubr.f32.gmra.mrb[0].mxu0 %v2090
      %v2261 = vpop.f32.mrb[0].mxu0
      %v2262 = vadd.f32 0.0, %v2261
      %v2263 = vpop.f32.mrb[0].mxu0
      %2264 = vmatprep.mubr.f32.mxu0 0.0
      %2265 = vmatmul.mubr.f32.gmra.mrb[0].mxu0 %v2093
      %v2266 = vpop.f32.mrb[0].mxu0
      %v2267 = vadd.f32 0.0, %v2266
      %v2268 = vpop.f32.mrb[0].mxu0
      %2269 = vmatprep.mubr.f32.mxu0 0.0
      %2270 = vmatmul.mubr.f32.gmra.mrb[0].mxu0 %v2096
      %v2271 = vpop.f32.mrb[0].mxu0
      %v2272 = vadd.f32 0.0, %v2271
      %v2273 = vpop.f32.mrb[0].mxu0
      %2274 = vmatprep.mubr.f32.mxu0 0.0
      %2275 = vmatmul.mubr.f32.gmra.mrb[0].mxu0 %v2099
      %v2276 = vpop.f32.mrb[0].mxu0
      %v2277 = vadd.f32 0.0, %v2276
      %v2278 = vpop.f32.mrb[0].mxu0
      %2279 = vmatprep.mubr.f32.mxu0 0.0
      %2280 = vmatmul.mubr.f32.gmra.mrb[0].mxu0 %v2102
      %v2281 = vpop.f32.mrb[0].mxu0
      %v2282 = vadd.f32 0.0, %v2281
      %v2283 = vpop.f32.mrb[0].mxu0
      %2284 = vmatprep.mubr.f32.mxu0 0.0
      %2285 = vmatmul.mubr.f32.gmra.mrb[0].mxu0 %v2105
      %v2286 = vpop.f32.mrb[0].mxu0
      %v2287 = vadd.f32 0.0, %v2286
      %v2288 = vpop.f32.mrb[0].mxu0
      %2289 = vmatprep.mubr.f32.mxu0 0.0
      %2290 = vmatmul.mubr.f32.gmra.mrb[0].mxu0 %v2108
      %v2291 = vpop.f32.mrb[0].mxu0
      %v2292 = vadd.f32 0.0, %v2291
      %v2293 = vpop.f32.mrb[0].mxu0
      %2294 = vmatprep.mubr.f32.mxu0 0.0
      %2295 = vmatmul.mubr.f32.gmra.mrb[0].mxu0 %v2111
      %v2296 = vpop.f32.mrb[0].mxu0
      %v2297 = vadd.f32 0.0, %v2296
      %v2298 = vpop.f32.mrb[0].mxu0
      %2299 = vmatprep.mubr.f32.mxu0 0.0
      %2300 = vmatmul.mubr.f32.gmra.mrb[0].mxu0 %v2114
      %v2301 = vpop.f32.mrb[0].mxu0
      %v2302 = vadd.f32 0.0, %v2301
      %v2303 = vpop.f32.mrb[0].mxu0
      %2304 = vmatprep.mubr.f32.mxu0 0.0
      %2305 = vmatmul.mubr.f32.gmra.mrb[0].mxu0 %v2117
      %v2306 = vpop.f32.mrb[0].mxu0
      %v2307 = vadd.f32 0.0, %v2306
      %v2308 = vpop.f32.mrb[0].mxu0
      %2309 = vmatprep.mubr.f32.mxu0 0.0
      %2310 = vmatmul.mubr.f32.gmra.mrb[0].mxu0 %v2120
      %v2311 = vpop.f32.mrb[0].mxu0
      %v2312 = vadd.f32 0.0, %v2311
      %v2313 = vpop.f32.mrb[0].mxu0
      %2314 = vmatprep.mubr.f32.mxu0 0.0
      %2315 = vmatmul.mubr.f32.gmra.mrb[0].mxu0 %v2123
      %v2316 = vpop.f32.mrb[0].mxu0
      %v2317 = vadd.f32 0.0, %v2316
      %v2318 = vpop.f32.mrb[0].mxu0
      %2319 = vmatprep.mubr.f32.mxu0 0.0
      %2320 = vmatmul.mubr.f32.gmra.mrb[0].mxu0 %v2126
      %v2321 = vpop.f32.mrb[0].mxu0
      %v2322 = vadd.f32 0.0, %v2321
      %v2323 = vpop.f32.mrb[0].mxu0
      %2324 = vmatprep.mubr.f32.mxu0 0.0
      %2325 = vmatmul.mubr.f32.gmra.mrb[0].mxu0 %v2129
      %v2326 = vpop.f32.mrb[0].mxu0
      %v2327 = vadd.f32 0.0, %v2326
      %v2328 = vpop.f32.mrb[0].mxu0
      %2329 = vmatprep.mubr.f32.mxu0 0.0
      %2330 = vmatmul.mubr.f32.gmra.mrb[0].mxu0 %v2132
      %v2331 = vpop.f32.mrb[0].mxu0
      %v2332 = vadd.f32 0.0, %v2331
      %v2333 = vpop.f32.mrb[0].mxu0
      %2334 = vmatprep.mubr.f32.mxu0 0.0
      %2335 = vmatmul.mubr.f32.gmra.mrb[0].mxu0 %v2135
      %v2336 = vpop.f32.mrb[0].mxu0
      %v2337 = vadd.f32 0.0, %v2336
      %v2338 = vpop.f32.mrb[0].mxu0
      %2339 = vmatprep.mubr.f32.mxu0 0.0
      %2340 = vmatmul.mubr.f32.gmra.mrb[0].mxu0 %v2138
      %v2341 = vpop.f32.mrb[0].mxu0
      %v2342 = vadd.f32 0.0, %v2341
      %v2343 = vpop.f32.mrb[0].mxu0
      %2344 = vmatprep.mubr.f32.mxu0 0.0
      %2345 = vmatmul.mubr.f32.gmra.mrb[0].mxu0 %v2141
      %v2346 = vpop.f32.mrb[0].mxu0
      %v2347 = vadd.f32 0.0, %v2346
      %v2348 = vpop.f32.mrb[0].mxu0
      %2349 = vmatprep.mubr.f32.mxu0 0.0
      %2350 = vmatmul.mubr.f32.gmra.mrb[0].mxu0 %v2144
      %v2351 = vpop.f32.mrb[0].mxu0
      %v2352 = vadd.f32 0.0, %v2351
      %v2353 = vpop.f32.mrb[0].mxu0
      %2354 = vmatprep.mubr.f32.mxu0 0.0
      %2355 = vmatmul.mubr.f32.gmra.mrb[0].mxu0 %v2147
      %v2356 = vpop.f32.mrb[0].mxu0
      %v2357 = vadd.f32 0.0, %v2356
      %v2358 = vpop.f32.mrb[0].mxu0
      %2359 = vmatprep.mubr.f32.mxu0 0.0
      %2360 = vmatmul.mubr.f32.gmra.mrb[0].mxu0 %v2150
      %v2361 = vpop.f32.mrb[0].mxu0
      %v2362 = vadd.f32 0.0, %v2361
      %v2363 = vpop.f32.mrb[0].mxu0
      %2364 = vmatprep.mubr.f32.mxu0 0.0
      %2365 = vmatmul.mubr.f32.gmra.mrb[0].mxu0 %v2153
      %v2366 = vpop.f32.mrb[0].mxu0
      %v2367 = vadd.f32 0.0, %v2366
      %v2368 = vpop.f32.mrb[0].mxu0
      %2369 = vmatprep.mubr.f32.mxu0 0.0
      %2370 = vmatmul.mubr.f32.gmra.mrb[0].mxu0 %v2156
      %v2371 = vpop.f32.mrb[0].mxu0
      %v2372 = vadd.f32 0.0, %v2371
      %v2373 = vpop.f32.mrb[0].mxu0
      %2374 = vmatprep.mubr.f32.mxu0 0.0
      %2375 = vmatmul.mubr.f32.gmra.mrb[0].mxu0 %v2159
      %v2376 = vpop.f32.mrb[0].mxu0
      %v2377 = vadd.f32 0.0, %v2376
      %v2378 = vpop.f32.mrb[0].mxu0
      %2379 = vmatprep.mubr.f32.mxu0 0.0
      %2380 = vmatmul.mubr.f32.gmra.mrb[0].mxu0 %v2162
      %v2381 = vpop.f32.mrb[0].mxu0
      %v2382 = vadd.f32 0.0, %v2381
      %v2383 = vpop.f32.mrb[0].mxu0
      %2384 = vmatprep.mubr.f32.mxu0 0.0
      %2385 = vmatmul.mubr.f32.gmra.mrb[0].mxu0 %v2165
      %v2386 = vpop.f32.mrb[0].mxu0
      %v2387 = vadd.f32 0.0, %v2386
      %v2388 = vpop.f32.mrb[0].mxu0
      %2389 = vmatprep.mubr.f32.mxu0 0.0
      %2390 = vmatmul.mubr.f32.gmra.mrb[0].mxu0 %v2168
      %v2391 = vpop.f32.mrb[0].mxu0
      %v2392 = vadd.f32 0.0, %v2391
      %v2393 = vpop.f32.mrb[0].mxu0
      %2394 = vmatprep.mubr.f32.mxu0 0.0
      %2395 = vmatmul.mubr.f32.gmra.mrb[0].mxu0 %v2171
      %v2396 = vpop.f32.mrb[0].mxu0
      %v2397 = vadd.f32 0.0, %v2396
      %v2398 = vpop.f32.mrb[0].mxu0
      %2399 = vmatprep.mubr.f32.mxu0 0.0
      %2400 = vmatmul.mubr.f32.gmra.mrb[0].mxu0 %v2174
      %v2401 = vpop.f32.mrb[0].mxu0
      %v2402 = vadd.f32 0.0, %v2401
      %v2403 = vpop.f32.mrb[0].mxu0
      %2404 = vdwg.mxu0
      %v2405 = vld [vmem:[%s2] sm:$0x1]
      %v2407 = vlaneseq
      %v2408 = vshrl.u32 %v2407, 7
      %v2409 = vsub.s32 0, %v2408
      %v2410 = vrot.slane %v2405, %v2409
      %v2412 = vmul.f32 %v2247, %v2410
      %v2413 = vmul.f32 %v2252, %v2410
      %v2414 = vmul.f32 %v2257, %v2410
      %v2415 = vmul.f32 %v2262, %v2410
      %v2416 = vmul.f32 %v2267, %v2410
      %v2417 = vmul.f32 %v2272, %v2410
      %v2418 = vmul.f32 %v2277, %v2410
      %v2419 = vmul.f32 %v2282, %v2410
      %v2420 = vmul.f32 %v2287, %v2410
      %v2421 = vmul.f32 %v2292, %v2410
      %v2422 = vmul.f32 %v2297, %v2410
      %v2423 = vmul.f32 %v2302, %v2410
      %v2424 = vmul.f32 %v2307, %v2410
      %v2425 = vmul.f32 %v2312, %v2410
      %v2426 = vmul.f32 %v2317, %v2410
      %v2427 = vmul.f32 %v2322, %v2410
      %v2428 = vmul.f32 %v2327, %v2410
      %v2429 = vmul.f32 %v2332, %v2410
      %v2430 = vmul.f32 %v2337, %v2410
      %v2431 = vmul.f32 %v2342, %v2410
      %v2432 = vmul.f32 %v2347, %v2410
      %v2433 = vmul.f32 %v2352, %v2410
      %v2434 = vmul.f32 %v2357, %v2410
      %v2435 = vmul.f32 %v2362, %v2410
      %v2436 = vmul.f32 %v2367, %v2410
      %v2437 = vmul.f32 %v2372, %v2410
      %v2438 = vmul.f32 %v2377, %v2410
      %v2439 = vmul.f32 %v2382, %v2410
      %v2440 = vmul.f32 %v2387, %v2410
      %v2441 = vmul.f32 %v2392, %v2410
      %v2442 = vmul.f32 %v2397, %v2410
      %v2443 = vmul.f32 %v2402, %v2410
      %v2444 = vld [vmem:[%s3] sm:$0x1]
      %v2446 = vlaneseq
      %v2447 = vshrl.u32 %v2446, 7
      %v2448 = vsub.s32 0, %v2447
      %v2449 = vrot.slane %v2444, %v2448
      %v2451 = vadd.f32 %v2412, %v2449
      %v2452 = vadd.f32 %v2413, %v2449
      %v2453 = vadd.f32 %v2414, %v2449
      %v2454 = vadd.f32 %v2415, %v2449
      %v2455 = vadd.f32 %v2416, %v2449
      %v2456 = vadd.f32 %v2417, %v2449
      %v2457 = vadd.f32 %v2418, %v2449
      %v2458 = vadd.f32 %v2419, %v2449
      %v2459 = vadd.f32 %v2420, %v2449
      %v2460 = vadd.f32 %v2421, %v2449
      %v2461 = vadd.f32 %v2422, %v2449
      %v2462 = vadd.f32 %v2423, %v2449
      %v2463 = vadd.f32 %v2424, %v2449
      %v2464 = vadd.f32 %v2425, %v2449
      %v2465 = vadd.f32 %v2426, %v2449
      %v2466 = vadd.f32 %v2427, %v2449
      %v2467 = vadd.f32 %v2428, %v2449
      %v2468 = vadd.f32 %v2429, %v2449
      %v2469 = vadd.f32 %v2430, %v2449
      %v2470 = vadd.f32 %v2431, %v2449
      %v2471 = vadd.f32 %v2432, %v2449
      %v2472 = vadd.f32 %v2433, %v2449
      %v2473 = vadd.f32 %v2434, %v2449
      %v2474 = vadd.f32 %v2435, %v2449
      %v2475 = vadd.f32 %v2436, %v2449
      %v2476 = vadd.f32 %v2437, %v2449
      %v2477 = vadd.f32 %v2438, %v2449
      %v2478 = vadd.f32 %v2439, %v2449
      %v2479 = vadd.f32 %v2440, %v2449
      %v2480 = vadd.f32 %v2441, %v2449
      %v2481 = vadd.f32 %v2442, %v2449
      %v2482 = vadd.f32 %v2443, %v2449
      %v2483 = vmax.f32 %v2451, 0.0
      %v2484 = vmax.f32 %v2452, 0.0
      %v2485 = vmax.f32 %v2453, 0.0
      %v2486 = vmax.f32 %v2454, 0.0
      %v2487 = vmax.f32 %v2455, 0.0
      %v2488 = vmax.f32 %v2456, 0.0
      %v2489 = vmax.f32 %v2457, 0.0
      %v2490 = vmax.f32 %v2458, 0.0
      %v2491 = vmax.f32 %v2459, 0.0
      %v2492 = vmax.f32 %v2460, 0.0
      %v2493 = vmax.f32 %v2461, 0.0
      %v2494 = vmax.f32 %v2462, 0.0
      %v2495 = vmax.f32 %v2463, 0.0
      %v2496 = vmax.f32 %v2464, 0.0
      %v2497 = vmax.f32 %v2465, 0.0
      %v2498 = vmax.f32 %v2466, 0.0
      %v2499 = vmax.f32 %v2467, 0.0
      %v2500 = vmax.f32 %v2468, 0.0
      %v2501 = vmax.f32 %v2469, 0.0
      %v2502 = vmax.f32 %v2470, 0.0
      %v2503 = vmax.f32 %v2471, 0.0
      %v2504 = vmax.f32 %v2472, 0.0
      %v2505 = vmax.f32 %v2473, 0.0
      %v2506 = vmax.f32 %v2474, 0.0
      %v2507 = vmax.f32 %v2475, 0.0
      %v2508 = vmax.f32 %v2476, 0.0
      %v2509 = vmax.f32 %v2477, 0.0
      %v2510 = vmax.f32 %v2478, 0.0
      %v2511 = vmax.f32 %v2479, 0.0
      %v2512 = vmax.f32 %v2480, 0.0
      %v2513 = vmax.f32 %v2481, 0.0
      %v2514 = vmax.f32 %v2482, 0.0
      %s2515 = scalar_lea.vmem [#allocation3], 24
      %2516 = vst.msk [vmem:[%s2515 + $0x1] sm:$0xff] %vm279, %v2483
      %2517 = vst.msk [vmem:[%s2515 + $0x9] sm:$0xff] %vm279, %v2484
      %2518 = vst.msk [vmem:[%s2515 + $0x19] sm:$0xff] %vm279, %v2485
      %2519 = vst.msk [vmem:[%s2515 + $0x21] sm:$0xff] %vm279, %v2486
      %2520 = vst.msk [vmem:[%s2515 + $0x31] sm:$0xff] %vm279, %v2487
      %2521 = vst.msk [vmem:[%s2515 + $0x39] sm:$0xff] %vm279, %v2488
      %2522 = vst.msk [vmem:[%s2515 + $0x49] sm:$0xff] %vm279, %v2489
      %2523 = vst.msk [vmem:[%s2515 + $0x51] sm:$0xff] %vm279, %v2490
      %2524 = vst.msk [vmem:[%s2515 + $0x61] sm:$0xff] %vm279, %v2491
      %2525 = vst.msk [vmem:[%s2515 + $0x69] sm:$0xff] %vm279, %v2492
      %2526 = vst.msk [vmem:[%s2515 + $0x79] sm:$0xff] %vm279, %v2493
      %2527 = vst.msk [vmem:[%s2515 + $0x81] sm:$0xff] %vm279, %v2494
      %2528 = vst.msk [vmem:[%s2515 + $0x91] sm:$0xff] %vm279, %v2495
      %2529 = vst.msk [vmem:[%s2515 + $0x99] sm:$0xff] %vm279, %v2496
      %2530 = vst.msk [vmem:[%s2515 + $0xa9] sm:$0xff] %vm279, %v2497
      %2531 = vst.msk [vmem:[%s2515 + $0xb1] sm:$0xff] %vm279, %v2498
      %2532 = vst.msk [vmem:[%s2515 + $0xc1] sm:$0xff] %vm279, %v2499
      %2533 = vst.msk [vmem:[%s2515 + $0xc9] sm:$0xff] %vm279, %v2500
      %2534 = vst.msk [vmem:[%s2515 + $0xd9] sm:$0xff] %vm279, %v2501
      %2535 = vst.msk [vmem:[%s2515 + $0xe1] sm:$0xff] %vm279, %v2502
      %2536 = vst.msk [vmem:[%s2515 + $0xf1] sm:$0xff] %vm279, %v2503
      %2537 = vst.msk [vmem:[%s2515 + $0xf9] sm:$0xff] %vm279, %v2504
      %2538 = vst.msk [vmem:[%s2515 + $0x109] sm:$0xff] %vm279, %v2505
      %2539 = vst.msk [vmem:[%s2515 + $0x111] sm:$0xff] %vm279, %v2506
      %2540 = vst.msk [vmem:[%s2515 + $0x121] sm:$0xff] %vm279, %v2507
      %2541 = vst.msk [vmem:[%s2515 + $0x129] sm:$0xff] %vm279, %v2508
      %2542 = vst.msk [vmem:[%s2515 + $0x139] sm:$0xff] %vm279, %v2509
      %2543 = vst.msk [vmem:[%s2515 + $0x141] sm:$0xff] %vm279, %v2510
      %2544 = vst.msk [vmem:[%s2515 + $0x151] sm:$0xff] %vm279, %v2511
      %2545 = vst.msk [vmem:[%s2515 + $0x159] sm:$0xff] %vm279, %v2512
      %2546 = vst.msk [vmem:[%s2515 + $0x169] sm:$0xff] %vm279, %v2513
      %2547 = vst.msk [vmem:[%s2515 + $0x171] sm:$0xff] %vm279, %v2514
      %v2548 = vld [vmem:[#allocation3] sm:$0xff]
      %v2549 = vld [vmem:[#allocation3 + $0x8] sm:$0xff]
      %v2550 = vld [vmem:[#allocation3 + $0x18] sm:$0xff]
      %v2551 = vld [vmem:[#allocation3 + $0x20] sm:$0xff]
      %v2552 = vld [vmem:[#allocation3 + $0x30] sm:$0xff]
      %v2553 = vld [vmem:[#allocation3 + $0x38] sm:$0xff]
      %v2554 = vld [vmem:[#allocation3 + $0x48] sm:$0xff]
      %v2555 = vld [vmem:[#allocation3 + $0x50] sm:$0xff]
      %v2556 = vld [vmem:[#allocation3 + $0x60] sm:$0xff]
      %v2557 = vld [vmem:[#allocation3 + $0x68] sm:$0xff]
      %v2558 = vld [vmem:[#allocation3 + $0x78] sm:$0xff]
      %v2559 = vld [vmem:[#allocation3 + $0x80] sm:$0xff]
      %v2560 = vld [vmem:[#allocation3 + $0x90] sm:$0xff]
      %v2561 = vld [vmem:[#allocation3 + $0x98] sm:$0xff]
      %v2562 = vld [vmem:[#allocation3 + $0xa8] sm:$0xff]
      %v2563 = vld [vmem:[#allocation3 + $0xb0] sm:$0xff]
      %v2564 = vld [vmem:[#allocation3 + $0xc0] sm:$0xff]
      %v2565 = vld [vmem:[#allocation3 + $0xc8] sm:$0xff]
      %v2566 = vld [vmem:[#allocation3 + $0xd8] sm:$0xff]
      %v2567 = vld [vmem:[#allocation3 + $0xe0] sm:$0xff]
      %v2568 = vld [vmem:[#allocation3 + $0xf0] sm:$0xff]
      %v2569 = vld [vmem:[#allocation3 + $0xf8] sm:$0xff]
      %v2570 = vld [vmem:[#allocation3 + $0x108] sm:$0xff]
      %v2571 = vld [vmem:[#allocation3 + $0x110] sm:$0xff]
      %v2572 = vld [vmem:[#allocation3 + $0x120] sm:$0xff]
      %v2573 = vld [vmem:[#allocation3 + $0x128] sm:$0xff]
      %v2574 = vld [vmem:[#allocation3 + $0x138] sm:$0xff]
      %v2575 = vld [vmem:[#allocation3 + $0x140] sm:$0xff]
      %v2576 = vld [vmem:[#allocation3 + $0x150] sm:$0xff]
      %v2577 = vld [vmem:[#allocation3 + $0x158] sm:$0xff]
      %v2578 = vld [vmem:[#allocation3 + $0x168] sm:$0xff]
      %v2579 = vld [vmem:[#allocation3 + $0x170] sm:$0xff]
      %2580 = vst.msk [vmem:[#allocation4] sm:$0xff] %vm279, %v2548
      %2581 = vst.msk [vmem:[#allocation4 + $0x8] sm:$0xff] %vm279, %v2549
      %2582 = vst.msk [vmem:[#allocation4 + $0x10] sm:$0xff] %vm279, %v2550
      %2583 = vst.msk [vmem:[#allocation4 + $0x18] sm:$0xff] %vm279, %v2551
      %2584 = vst.msk [vmem:[#allocation4 + $0x20] sm:$0xff] %vm279, %v2552
      %2585 = vst.msk [vmem:[#allocation4 + $0x28] sm:$0xff] %vm279, %v2553
      %2586 = vst.msk [vmem:[#allocation4 + $0x30] sm:$0xff] %vm279, %v2554
      %2587 = vst.msk [vmem:[#allocation4 + $0x38] sm:$0xff] %vm279, %v2555
      %2588 = vst.msk [vmem:[#allocation4 + $0x40] sm:$0xff] %vm279, %v2556
      %2589 = vst.msk [vmem:[#allocation4 + $0x48] sm:$0xff] %vm279, %v2557
      %2590 = vst.msk [vmem:[#allocation4 + $0x50] sm:$0xff] %vm279, %v2558
      %2591 = vst.msk [vmem:[#allocation4 + $0x58] sm:$0xff] %vm279, %v2559
      %2592 = vst.msk [vmem:[#allocation4 + $0x60] sm:$0xff] %vm279, %v2560
      %2593 = vst.msk [vmem:[#allocation4 + $0x68] sm:$0xff] %vm279, %v2561
      %2594 = vst.msk [vmem:[#allocation4 + $0x70] sm:$0xff] %vm279, %v2562
      %2595 = vst.msk [vmem:[#allocation4 + $0x78] sm:$0xff] %vm279, %v2563
      %2596 = vst.msk [vmem:[#allocation4 + $0x80] sm:$0xff] %vm279, %v2564
      %2597 = vst.msk [vmem:[#allocation4 + $0x88] sm:$0xff] %vm279, %v2565
      %2598 = vst.msk [vmem:[#allocation4 + $0x90] sm:$0xff] %vm279, %v2566
      %2599 = vst.msk [vmem:[#allocation4 + $0x98] sm:$0xff] %vm279, %v2567
      %2600 = vst.msk [vmem:[#allocation4 + $0xa0] sm:$0xff] %vm279, %v2568
      %2601 = vst.msk [vmem:[#allocation4 + $0xa8] sm:$0xff] %vm279, %v2569
      %2602 = vst.msk [vmem:[#allocation4 + $0xb0] sm:$0xff] %vm279, %v2570
      %2603 = vst.msk [vmem:[#allocation4 + $0xb8] sm:$0xff] %vm279, %v2571
      %2604 = vst.msk [vmem:[#allocation4 + $0xc0] sm:$0xff] %vm279, %v2572
      %2605 = vst.msk [vmem:[#allocation4 + $0xc8] sm:$0xff] %vm279, %v2573
      %2606 = vst.msk [vmem:[#allocation4 + $0xd0] sm:$0xff] %vm279, %v2574
      %2607 = vst.msk [vmem:[#allocation4 + $0xd8] sm:$0xff] %vm279, %v2575
      %2608 = vst.msk [vmem:[#allocation4 + $0xe0] sm:$0xff] %vm279, %v2576
      %2609 = vst.msk [vmem:[#allocation4 + $0xe8] sm:$0xff] %vm279, %v2577
      %2610 = vst.msk [vmem:[#allocation4 + $0xf0] sm:$0xff] %vm279, %v2578
      %2611 = vst.msk [vmem:[#allocation4 + $0xf8] sm:$0xff] %vm279, %v2579
      %v2612 = vld [vmem:[#allocation3 + $0x1] sm:$0xff]
      %v2613 = vld [vmem:[#allocation3 + $0x9] sm:$0xff]
      %v2614 = vld [vmem:[#allocation3 + $0x19] sm:$0xff]
      %v2615 = vld [vmem:[#allocation3 + $0x21] sm:$0xff]
      %v2616 = vld [vmem:[#allocation3 + $0x31] sm:$0xff]
      %v2617 = vld [vmem:[#allocation3 + $0x39] sm:$0xff]
      %v2618 = vld [vmem:[#allocation3 + $0x49] sm:$0xff]
      %v2619 = vld [vmem:[#allocation3 + $0x51] sm:$0xff]
      %v2620 = vld [vmem:[#allocation3 + $0x61] sm:$0xff]
      %v2621 = vld [vmem:[#allocation3 + $0x69] sm:$0xff]
      %v2622 = vld [vmem:[#allocation3 + $0x79] sm:$0xff]
      %v2623 = vld [vmem:[#allocation3 + $0x81] sm:$0xff]
      %v2624 = vld [vmem:[#allocation3 + $0x91] sm:$0xff]
      %v2625 = vld [vmem:[#allocation3 + $0x99] sm:$0xff]
      %v2626 = vld [vmem:[#allocation3 + $0xa9] sm:$0xff]
      %v2627 = vld [vmem:[#allocation3 + $0xb1] sm:$0xff]
      %v2628 = vld [vmem:[#allocation3 + $0xc1] sm:$0xff]
      %v2629 = vld [vmem:[#allocation3 + $0xc9] sm:$0xff]
      %v2630 = vld [vmem:[#allocation3 + $0xd9] sm:$0xff]
      %v2631 = vld [vmem:[#allocation3 + $0xe1] sm:$0xff]
      %v2632 = vld [vmem:[#allocation3 + $0xf1] sm:$0xff]
      %v2633 = vld [vmem:[#allocation3 + $0xf9] sm:$0xff]
      %v2634 = vld [vmem:[#allocation3 + $0x109] sm:$0xff]
      %v2635 = vld [vmem:[#allocation3 + $0x111] sm:$0xff]
      %v2636 = vld [vmem:[#allocation3 + $0x121] sm:$0xff]
      %v2637 = vld [vmem:[#allocation3 + $0x129] sm:$0xff]
      %v2638 = vld [vmem:[#allocation3 + $0x139] sm:$0xff]
      %v2639 = vld [vmem:[#allocation3 + $0x141] sm:$0xff]
      %v2640 = vld [vmem:[#allocation3 + $0x151] sm:$0xff]
      %v2641 = vld [vmem:[#allocation3 + $0x159] sm:$0xff]
      %v2642 = vld [vmem:[#allocation3 + $0x169] sm:$0xff]
      %v2643 = vld [vmem:[#allocation3 + $0x171] sm:$0xff]
      %2676 = vrot.lane.b32.xlu0 %v2612, 4
      %v2677 = vpop.permute.xlu0 %2676
      %2678 = vrot.lane.b32.xlu0 %v2613, 4
      %v2679 = vpop.permute.xlu0 %2678
      %2680 = vrot.lane.b32.xlu0 %v2614, 4
      %v2681 = vpop.permute.xlu0 %2680
      %2682 = vrot.lane.b32.xlu0 %v2615, 4
      %v2683 = vpop.permute.xlu0 %2682
      %2684 = vrot.lane.b32.xlu0 %v2616, 4
      %v2685 = vpop.permute.xlu0 %2684
      %2686 = vrot.lane.b32.xlu0 %v2617, 4
      %v2687 = vpop.permute.xlu0 %2686
      %2688 = vrot.lane.b32.xlu0 %v2618, 4
      %v2689 = vpop.permute.xlu0 %2688
      %2690 = vrot.lane.b32.xlu0 %v2619, 4
      %v2691 = vpop.permute.xlu0 %2690
      %2692 = vrot.lane.b32.xlu0 %v2620, 4
      %v2693 = vpop.permute.xlu0 %2692
      %2694 = vrot.lane.b32.xlu0 %v2621, 4
      %v2695 = vpop.permute.xlu0 %2694
      %2696 = vrot.lane.b32.xlu0 %v2622, 4
      %v2697 = vpop.permute.xlu0 %2696
      %2698 = vrot.lane.b32.xlu0 %v2623, 4
      %v2699 = vpop.permute.xlu0 %2698
      %2700 = vrot.lane.b32.xlu0 %v2624, 4
      %v2701 = vpop.permute.xlu0 %2700
      %2702 = vrot.lane.b32.xlu0 %v2625, 4
      %v2703 = vpop.permute.xlu0 %2702
      %2704 = vrot.lane.b32.xlu0 %v2626, 4
      %v2705 = vpop.permute.xlu0 %2704
      %2706 = vrot.lane.b32.xlu0 %v2627, 4
      %v2707 = vpop.permute.xlu0 %2706
      %2708 = vrot.lane.b32.xlu0 %v2628, 4
      %v2709 = vpop.permute.xlu0 %2708
      %2710 = vrot.lane.b32.xlu0 %v2629, 4
      %v2711 = vpop.permute.xlu0 %2710
      %2712 = vrot.lane.b32.xlu0 %v2630, 4
      %v2713 = vpop.permute.xlu0 %2712
      %2714 = vrot.lane.b32.xlu0 %v2631, 4
      %v2715 = vpop.permute.xlu0 %2714
      %2716 = vrot.lane.b32.xlu0 %v2632, 4
      %v2717 = vpop.permute.xlu0 %2716
      %2718 = vrot.lane.b32.xlu0 %v2633, 4
      %v2719 = vpop.permute.xlu0 %2718
      %2720 = vrot.lane.b32.xlu0 %v2634, 4
      %v2721 = vpop.permute.xlu0 %2720
      %2722 = vrot.lane.b32.xlu0 %v2635, 4
      %v2723 = vpop.permute.xlu0 %2722
      %2724 = vrot.lane.b32.xlu0 %v2636, 4
      %v2725 = vpop.permute.xlu0 %2724
      %2726 = vrot.lane.b32.xlu0 %v2637, 4
      %v2727 = vpop.permute.xlu0 %2726
      %2728 = vrot.lane.b32.xlu0 %v2638, 4
      %v2729 = vpop.permute.xlu0 %2728
      %2730 = vrot.lane.b32.xlu0 %v2639, 4
      %v2731 = vpop.permute.xlu0 %2730
      %2732 = vrot.lane.b32.xlu0 %v2640, 4
      %v2733 = vpop.permute.xlu0 %2732
      %2734 = vrot.lane.b32.xlu0 %v2641, 4
      %v2735 = vpop.permute.xlu0 %2734
      %2736 = vrot.lane.b32.xlu0 %v2642, 4
      %v2737 = vpop.permute.xlu0 %2736
      %2738 = vrot.lane.b32.xlu0 %v2643, 4
      %v2739 = vpop.permute.xlu0 %2738
      %2772 = vst.msk [vmem:[#allocation4] sm:$0xff] %vm657, %v2677
      %2773 = vst.msk [vmem:[#allocation4 + $0x8] sm:$0xff] %vm657, %v2679
      %2774 = vst.msk [vmem:[#allocation4 + $0x10] sm:$0xff] %vm657, %v2681
      %2775 = vst.msk [vmem:[#allocation4 + $0x18] sm:$0xff] %vm657, %v2683
      %2776 = vst.msk [vmem:[#allocation4 + $0x20] sm:$0xff] %vm657, %v2685
      %2777 = vst.msk [vmem:[#allocation4 + $0x28] sm:$0xff] %vm657, %v2687
      %2778 = vst.msk [vmem:[#allocation4 + $0x30] sm:$0xff] %vm657, %v2689
      %2779 = vst.msk [vmem:[#allocation4 + $0x38] sm:$0xff] %vm657, %v2691
      %2780 = vst.msk [vmem:[#allocation4 + $0x40] sm:$0xff] %vm657, %v2693
      %2781 = vst.msk [vmem:[#allocation4 + $0x48] sm:$0xff] %vm657, %v2695
      %2782 = vst.msk [vmem:[#allocation4 + $0x50] sm:$0xff] %vm657, %v2697
      %2783 = vst.msk [vmem:[#allocation4 + $0x58] sm:$0xff] %vm657, %v2699
      %2784 = vst.msk [vmem:[#allocation4 + $0x60] sm:$0xff] %vm657, %v2701
      %2785 = vst.msk [vmem:[#allocation4 + $0x68] sm:$0xff] %vm657, %v2703
      %2786 = vst.msk [vmem:[#allocation4 + $0x70] sm:$0xff] %vm657, %v2705
      %2787 = vst.msk [vmem:[#allocation4 + $0x78] sm:$0xff] %vm657, %v2707
      %2788 = vst.msk [vmem:[#allocation4 + $0x80] sm:$0xff] %vm657, %v2709
      %2789 = vst.msk [vmem:[#allocation4 + $0x88] sm:$0xff] %vm657, %v2711
      %2790 = vst.msk [vmem:[#allocation4 + $0x90] sm:$0xff] %vm657, %v2713
      %2791 = vst.msk [vmem:[#allocation4 + $0x98] sm:$0xff] %vm657, %v2715
      %2792 = vst.msk [vmem:[#allocation4 + $0xa0] sm:$0xff] %vm657, %v2717
      %2793 = vst.msk [vmem:[#allocation4 + $0xa8] sm:$0xff] %vm657, %v2719
      %2794 = vst.msk [vmem:[#allocation4 + $0xb0] sm:$0xff] %vm657, %v2721
      %2795 = vst.msk [vmem:[#allocation4 + $0xb8] sm:$0xff] %vm657, %v2723
      %2796 = vst.msk [vmem:[#allocation4 + $0xc0] sm:$0xff] %vm657, %v2725
      %2797 = vst.msk [vmem:[#allocation4 + $0xc8] sm:$0xff] %vm657, %v2727
      %2798 = vst.msk [vmem:[#allocation4 + $0xd0] sm:$0xff] %vm657, %v2729
      %2799 = vst.msk [vmem:[#allocation4 + $0xd8] sm:$0xff] %vm657, %v2731
      %2800 = vst.msk [vmem:[#allocation4 + $0xe0] sm:$0xff] %vm657, %v2733
      %2801 = vst.msk [vmem:[#allocation4 + $0xe8] sm:$0xff] %vm657, %v2735
      %2802 = vst.msk [vmem:[#allocation4 + $0xf0] sm:$0xff] %vm657, %v2737
      %2803 = vst.msk [vmem:[#allocation4 + $0xf8] sm:$0xff] %vm657, %v2739
      %v2804 = vld [vmem:[#allocation3 + $0x2] sm:$0xff]
      %v2805 = vld [vmem:[#allocation3 + $0xa] sm:$0xff]
      %v2806 = vld [vmem:[#allocation3 + $0x1a] sm:$0xff]
      %v2807 = vld [vmem:[#allocation3 + $0x22] sm:$0xff]
      %v2808 = vld [vmem:[#allocation3 + $0x32] sm:$0xff]
      %v2809 = vld [vmem:[#allocation3 + $0x3a] sm:$0xff]
      %v2810 = vld [vmem:[#allocation3 + $0x4a] sm:$0xff]
      %v2811 = vld [vmem:[#allocation3 + $0x52] sm:$0xff]
      %v2812 = vld [vmem:[#allocation3 + $0x62] sm:$0xff]
      %v2813 = vld [vmem:[#allocation3 + $0x6a] sm:$0xff]
      %v2814 = vld [vmem:[#allocation3 + $0x7a] sm:$0xff]
      %v2815 = vld [vmem:[#allocation3 + $0x82] sm:$0xff]
      %v2816 = vld [vmem:[#allocation3 + $0x92] sm:$0xff]
      %v2817 = vld [vmem:[#allocation3 + $0x9a] sm:$0xff]
      %v2818 = vld [vmem:[#allocation3 + $0xaa] sm:$0xff]
      %v2819 = vld [vmem:[#allocation3 + $0xb2] sm:$0xff]
      %v2820 = vld [vmem:[#allocation3 + $0xc2] sm:$0xff]
      %v2821 = vld [vmem:[#allocation3 + $0xca] sm:$0xff]
      %v2822 = vld [vmem:[#allocation3 + $0xda] sm:$0xff]
      %v2823 = vld [vmem:[#allocation3 + $0xe2] sm:$0xff]
      %v2824 = vld [vmem:[#allocation3 + $0xf2] sm:$0xff]
      %v2825 = vld [vmem:[#allocation3 + $0xfa] sm:$0xff]
      %v2826 = vld [vmem:[#allocation3 + $0x10a] sm:$0xff]
      %v2827 = vld [vmem:[#allocation3 + $0x112] sm:$0xff]
      %v2828 = vld [vmem:[#allocation3 + $0x122] sm:$0xff]
      %v2829 = vld [vmem:[#allocation3 + $0x12a] sm:$0xff]
      %v2830 = vld [vmem:[#allocation3 + $0x13a] sm:$0xff]
      %v2831 = vld [vmem:[#allocation3 + $0x142] sm:$0xff]
      %v2832 = vld [vmem:[#allocation3 + $0x152] sm:$0xff]
      %v2833 = vld [vmem:[#allocation3 + $0x15a] sm:$0xff]
      %v2834 = vld [vmem:[#allocation3 + $0x16a] sm:$0xff]
      %v2835 = vld [vmem:[#allocation3 + $0x172] sm:$0xff]
      %2868 = vrot.lane.b32.xlu0 %v2804, 8
      %v2869 = vpop.permute.xlu0 %2868
      %2870 = vrot.lane.b32.xlu0 %v2805, 8
      %v2871 = vpop.permute.xlu0 %2870
      %2872 = vrot.lane.b32.xlu0 %v2806, 8
      %v2873 = vpop.permute.xlu0 %2872
      %2874 = vrot.lane.b32.xlu0 %v2807, 8
      %v2875 = vpop.permute.xlu0 %2874
      %2876 = vrot.lane.b32.xlu0 %v2808, 8
      %v2877 = vpop.permute.xlu0 %2876
      %2878 = vrot.lane.b32.xlu0 %v2809, 8
      %v2879 = vpop.permute.xlu0 %2878
      %2880 = vrot.lane.b32.xlu0 %v2810, 8
      %v2881 = vpop.permute.xlu0 %2880
      %2882 = vrot.lane.b32.xlu0 %v2811, 8
      %v2883 = vpop.permute.xlu0 %2882
      %2884 = vrot.lane.b32.xlu0 %v2812, 8
      %v2885 = vpop.permute.xlu0 %2884
      %2886 = vrot.lane.b32.xlu0 %v2813, 8
      %v2887 = vpop.permute.xlu0 %2886
      %2888 = vrot.lane.b32.xlu0 %v2814, 8
      %v2889 = vpop.permute.xlu0 %2888
      %2890 = vrot.lane.b32.xlu0 %v2815, 8
      %v2891 = vpop.permute.xlu0 %2890
      %2892 = vrot.lane.b32.xlu0 %v2816, 8
      %v2893 = vpop.permute.xlu0 %2892
      %2894 = vrot.lane.b32.xlu0 %v2817, 8
      %v2895 = vpop.permute.xlu0 %2894
      %2896 = vrot.lane.b32.xlu0 %v2818, 8
      %v2897 = vpop.permute.xlu0 %2896
      %2898 = vrot.lane.b32.xlu0 %v2819, 8
      %v2899 = vpop.permute.xlu0 %2898
      %2900 = vrot.lane.b32.xlu0 %v2820, 8
      %v2901 = vpop.permute.xlu0 %2900
      %2902 = vrot.lane.b32.xlu0 %v2821, 8
      %v2903 = vpop.permute.xlu0 %2902
      %2904 = vrot.lane.b32.xlu0 %v2822, 8
      %v2905 = vpop.permute.xlu0 %2904
      %2906 = vrot.lane.b32.xlu0 %v2823, 8
      %v2907 = vpop.permute.xlu0 %2906
      %2908 = vrot.lane.b32.xlu0 %v2824, 8
      %v2909 = vpop.permute.xlu0 %2908
      %2910 = vrot.lane.b32.xlu0 %v2825, 8
      %v2911 = vpop.permute.xlu0 %2910
      %2912 = vrot.lane.b32.xlu0 %v2826, 8
      %v2913 = vpop.permute.xlu0 %2912
      %2914 = vrot.lane.b32.xlu0 %v2827, 8
      %v2915 = vpop.permute.xlu0 %2914
      %2916 = vrot.lane.b32.xlu0 %v2828, 8
      %v2917 = vpop.permute.xlu0 %2916
      %2918 = vrot.lane.b32.xlu0 %v2829, 8
      %v2919 = vpop.permute.xlu0 %2918
      %2920 = vrot.lane.b32.xlu0 %v2830, 8
      %v2921 = vpop.permute.xlu0 %2920
      %2922 = vrot.lane.b32.xlu0 %v2831, 8
      %v2923 = vpop.permute.xlu0 %2922
      %2924 = vrot.lane.b32.xlu0 %v2832, 8
      %v2925 = vpop.permute.xlu0 %2924
      %2926 = vrot.lane.b32.xlu0 %v2833, 8
      %v2927 = vpop.permute.xlu0 %2926
      %2928 = vrot.lane.b32.xlu0 %v2834, 8
      %v2929 = vpop.permute.xlu0 %2928
      %2930 = vrot.lane.b32.xlu0 %v2835, 8
      %v2931 = vpop.permute.xlu0 %2930
      %2964 = vst.msk [vmem:[#allocation4] sm:$0xff] %vm850, %v2869
      %2965 = vst.msk [vmem:[#allocation4 + $0x8] sm:$0xff] %vm850, %v2871
      %2966 = vst.msk [vmem:[#allocation4 + $0x10] sm:$0xff] %vm850, %v2873
      %2967 = vst.msk [vmem:[#allocation4 + $0x18] sm:$0xff] %vm850, %v2875
      %2968 = vst.msk [vmem:[#allocation4 + $0x20] sm:$0xff] %vm850, %v2877
      %2969 = vst.msk [vmem:[#allocation4 + $0x28] sm:$0xff] %vm850, %v2879
      %2970 = vst.msk [vmem:[#allocation4 + $0x30] sm:$0xff] %vm850, %v2881
      %2971 = vst.msk [vmem:[#allocation4 + $0x38] sm:$0xff] %vm850, %v2883
      %2972 = vst.msk [vmem:[#allocation4 + $0x40] sm:$0xff] %vm850, %v2885
      %2973 = vst.msk [vmem:[#allocation4 + $0x48] sm:$0xff] %vm850, %v2887
      %2974 = vst.msk [vmem:[#allocation4 + $0x50] sm:$0xff] %vm850, %v2889
      %2975 = vst.msk [vmem:[#allocation4 + $0x58] sm:$0xff] %vm850, %v2891
      %2976 = vst.msk [vmem:[#allocation4 + $0x60] sm:$0xff] %vm850, %v2893
      %2977 = vst.msk [vmem:[#allocation4 + $0x68] sm:$0xff] %vm850, %v2895
      %2978 = vst.msk [vmem:[#allocation4 + $0x70] sm:$0xff] %vm850, %v2897
      %2979 = vst.msk [vmem:[#allocation4 + $0x78] sm:$0xff] %vm850, %v2899
      %2980 = vst.msk [vmem:[#allocation4 + $0x80] sm:$0xff] %vm850, %v2901
      %2981 = vst.msk [vmem:[#allocation4 + $0x88] sm:$0xff] %vm850, %v2903
      %2982 = vst.msk [vmem:[#allocation4 + $0x90] sm:$0xff] %vm850, %v2905
      %2983 = vst.msk [vmem:[#allocation4 + $0x98] sm:$0xff] %vm850, %v2907
      %2984 = vst.msk [vmem:[#allocation4 + $0xa0] sm:$0xff] %vm850, %v2909
      %2985 = vst.msk [vmem:[#allocation4 + $0xa8] sm:$0xff] %vm850, %v2911
      %2986 = vst.msk [vmem:[#allocation4 + $0xb0] sm:$0xff] %vm850, %v2913
      %2987 = vst.msk [vmem:[#allocation4 + $0xb8] sm:$0xff] %vm850, %v2915
      %2988 = vst.msk [vmem:[#allocation4 + $0xc0] sm:$0xff] %vm850, %v2917
      %2989 = vst.msk [vmem:[#allocation4 + $0xc8] sm:$0xff] %vm850, %v2919
      %2990 = vst.msk [vmem:[#allocation4 + $0xd0] sm:$0xff] %vm850, %v2921
      %2991 = vst.msk [vmem:[#allocation4 + $0xd8] sm:$0xff] %vm850, %v2923
      %2992 = vst.msk [vmem:[#allocation4 + $0xe0] sm:$0xff] %vm850, %v2925
      %2993 = vst.msk [vmem:[#allocation4 + $0xe8] sm:$0xff] %vm850, %v2927
      %2994 = vst.msk [vmem:[#allocation4 + $0xf0] sm:$0xff] %vm850, %v2929
      %2995 = vst.msk [vmem:[#allocation4 + $0xf8] sm:$0xff] %vm850, %v2931
      %v2996 = vld [vmem:[%s2515] sm:$0xff]
      %v2997 = vld [vmem:[%s2515 + $0x8] sm:$0xff]
      %v2998 = vld [vmem:[%s2515 + $0x18] sm:$0xff]
      %v2999 = vld [vmem:[%s2515 + $0x20] sm:$0xff]
      %v3000 = vld [vmem:[%s2515 + $0x30] sm:$0xff]
      %v3001 = vld [vmem:[%s2515 + $0x38] sm:$0xff]
      %v3002 = vld [vmem:[%s2515 + $0x48] sm:$0xff]
      %v3003 = vld [vmem:[%s2515 + $0x50] sm:$0xff]
      %v3004 = vld [vmem:[%s2515 + $0x60] sm:$0xff]
      %v3005 = vld [vmem:[%s2515 + $0x68] sm:$0xff]
      %v3006 = vld [vmem:[%s2515 + $0x78] sm:$0xff]
      %v3007 = vld [vmem:[%s2515 + $0x80] sm:$0xff]
      %v3008 = vld [vmem:[%s2515 + $0x90] sm:$0xff]
      %v3009 = vld [vmem:[%s2515 + $0x98] sm:$0xff]
      %v3010 = vld [vmem:[%s2515 + $0xa8] sm:$0xff]
      %v3011 = vld [vmem:[%s2515 + $0xb0] sm:$0xff]
      %v3012 = vld [vmem:[%s2515 + $0xc0] sm:$0xff]
      %v3013 = vld [vmem:[%s2515 + $0xc8] sm:$0xff]
      %v3014 = vld [vmem:[%s2515 + $0xd8] sm:$0xff]
      %v3015 = vld [vmem:[%s2515 + $0xe0] sm:$0xff]
      %v3016 = vld [vmem:[%s2515 + $0xf0] sm:$0xff]
      %v3017 = vld [vmem:[%s2515 + $0xf8] sm:$0xff]
      %v3018 = vld [vmem:[%s2515 + $0x108] sm:$0xff]
      %v3019 = vld [vmem:[%s2515 + $0x110] sm:$0xff]
      %v3020 = vld [vmem:[%s2515 + $0x120] sm:$0xff]
      %v3021 = vld [vmem:[%s2515 + $0x128] sm:$0xff]
      %v3022 = vld [vmem:[%s2515 + $0x138] sm:$0xff]
      %v3023 = vld [vmem:[%s2515 + $0x140] sm:$0xff]
      %v3024 = vld [vmem:[%s2515 + $0x150] sm:$0xff]
      %v3025 = vld [vmem:[%s2515 + $0x158] sm:$0xff]
      %v3026 = vld [vmem:[%s2515 + $0x168] sm:$0xff]
      %v3027 = vld [vmem:[%s2515 + $0x170] sm:$0xff]
      %3060 = vrot.lane.b32.xlu0 %v2996, 12
      %v3061 = vpop.permute.xlu0 %3060
      %3062 = vrot.lane.b32.xlu0 %v2997, 12
      %v3063 = vpop.permute.xlu0 %3062
      %3064 = vrot.lane.b32.xlu0 %v2998, 12
      %v3065 = vpop.permute.xlu0 %3064
      %3066 = vrot.lane.b32.xlu0 %v2999, 12
      %v3067 = vpop.permute.xlu0 %3066
      %3068 = vrot.lane.b32.xlu0 %v3000, 12
      %v3069 = vpop.permute.xlu0 %3068
      %3070 = vrot.lane.b32.xlu0 %v3001, 12
      %v3071 = vpop.permute.xlu0 %3070
      %3072 = vrot.lane.b32.xlu0 %v3002, 12
      %v3073 = vpop.permute.xlu0 %3072
      %3074 = vrot.lane.b32.xlu0 %v3003, 12
      %v3075 = vpop.permute.xlu0 %3074
      %3076 = vrot.lane.b32.xlu0 %v3004, 12
      %v3077 = vpop.permute.xlu0 %3076
      %3078 = vrot.lane.b32.xlu0 %v3005, 12
      %v3079 = vpop.permute.xlu0 %3078
      %3080 = vrot.lane.b32.xlu0 %v3006, 12
      %v3081 = vpop.permute.xlu0 %3080
      %3082 = vrot.lane.b32.xlu0 %v3007, 12
      %v3083 = vpop.permute.xlu0 %3082
      %3084 = vrot.lane.b32.xlu0 %v3008, 12
      %v3085 = vpop.permute.xlu0 %3084
      %3086 = vrot.lane.b32.xlu0 %v3009, 12
      %v3087 = vpop.permute.xlu0 %3086
      %3088 = vrot.lane.b32.xlu0 %v3010, 12
      %v3089 = vpop.permute.xlu0 %3088
      %3090 = vrot.lane.b32.xlu0 %v3011, 12
      %v3091 = vpop.permute.xlu0 %3090
      %3092 = vrot.lane.b32.xlu0 %v3012, 12
      %v3093 = vpop.permute.xlu0 %3092
      %3094 = vrot.lane.b32.xlu0 %v3013, 12
      %v3095 = vpop.permute.xlu0 %3094
      %3096 = vrot.lane.b32.xlu0 %v3014, 12
      %v3097 = vpop.permute.xlu0 %3096
      %3098 = vrot.lane.b32.xlu0 %v3015, 12
      %v3099 = vpop.permute.xlu0 %3098
      %3100 = vrot.lane.b32.xlu0 %v3016, 12
      %v3101 = vpop.permute.xlu0 %3100
      %3102 = vrot.lane.b32.xlu0 %v3017, 12
      %v3103 = vpop.permute.xlu0 %3102
      %3104 = vrot.lane.b32.xlu0 %v3018, 12
      %v3105 = vpop.permute.xlu0 %3104
      %3106 = vrot.lane.b32.xlu0 %v3019, 12
      %v3107 = vpop.permute.xlu0 %3106
      %3108 = vrot.lane.b32.xlu0 %v3020, 12
      %v3109 = vpop.permute.xlu0 %3108
      %3110 = vrot.lane.b32.xlu0 %v3021, 12
      %v3111 = vpop.permute.xlu0 %3110
      %3112 = vrot.lane.b32.xlu0 %v3022, 12
      %v3113 = vpop.permute.xlu0 %3112
      %3114 = vrot.lane.b32.xlu0 %v3023, 12
      %v3115 = vpop.permute.xlu0 %3114
      %3116 = vrot.lane.b32.xlu0 %v3024, 12
      %v3117 = vpop.permute.xlu0 %3116
      %3118 = vrot.lane.b32.xlu0 %v3025, 12
      %v3119 = vpop.permute.xlu0 %3118
      %3120 = vrot.lane.b32.xlu0 %v3026, 12
      %v3121 = vpop.permute.xlu0 %3120
      %3122 = vrot.lane.b32.xlu0 %v3027, 12
      %v3123 = vpop.permute.xlu0 %3122
      %3156 = vst.msk [vmem:[#allocation4] sm:$0xff] %vm1043, %v3061
      %3157 = vst.msk [vmem:[#allocation4 + $0x8] sm:$0xff] %vm1043, %v3063
      %3158 = vst.msk [vmem:[#allocation4 + $0x10] sm:$0xff] %vm1043, %v3065
      %3159 = vst.msk [vmem:[#allocation4 + $0x18] sm:$0xff] %vm1043, %v3067
      %3160 = vst.msk [vmem:[#allocation4 + $0x20] sm:$0xff] %vm1043, %v3069
      %3161 = vst.msk [vmem:[#allocation4 + $0x28] sm:$0xff] %vm1043, %v3071
      %3162 = vst.msk [vmem:[#allocation4 + $0x30] sm:$0xff] %vm1043, %v3073
      %3163 = vst.msk [vmem:[#allocation4 + $0x38] sm:$0xff] %vm1043, %v3075
      %3164 = vst.msk [vmem:[#allocation4 + $0x40] sm:$0xff] %vm1043, %v3077
      %3165 = vst.msk [vmem:[#allocation4 + $0x48] sm:$0xff] %vm1043, %v3079
      %3166 = vst.msk [vmem:[#allocation4 + $0x50] sm:$0xff] %vm1043, %v3081
      %3167 = vst.msk [vmem:[#allocation4 + $0x58] sm:$0xff] %vm1043, %v3083
      %3168 = vst.msk [vmem:[#allocation4 + $0x60] sm:$0xff] %vm1043, %v3085
      %3169 = vst.msk [vmem:[#allocation4 + $0x68] sm:$0xff] %vm1043, %v3087
      %3170 = vst.msk [vmem:[#allocation4 + $0x70] sm:$0xff] %vm1043, %v3089
      %3171 = vst.msk [vmem:[#allocation4 + $0x78] sm:$0xff] %vm1043, %v3091
      %3172 = vst.msk [vmem:[#allocation4 + $0x80] sm:$0xff] %vm1043, %v3093
      %3173 = vst.msk [vmem:[#allocation4 + $0x88] sm:$0xff] %vm1043, %v3095
      %3174 = vst.msk [vmem:[#allocation4 + $0x90] sm:$0xff] %vm1043, %v3097
      %3175 = vst.msk [vmem:[#allocation4 + $0x98] sm:$0xff] %vm1043, %v3099
      %3176 = vst.msk [vmem:[#allocation4 + $0xa0] sm:$0xff] %vm1043, %v3101
      %3177 = vst.msk [vmem:[#allocation4 + $0xa8] sm:$0xff] %vm1043, %v3103
      %3178 = vst.msk [vmem:[#allocation4 + $0xb0] sm:$0xff] %vm1043, %v3105
      %3179 = vst.msk [vmem:[#allocation4 + $0xb8] sm:$0xff] %vm1043, %v3107
      %3180 = vst.msk [vmem:[#allocation4 + $0xc0] sm:$0xff] %vm1043, %v3109
      %3181 = vst.msk [vmem:[#allocation4 + $0xc8] sm:$0xff] %vm1043, %v3111
      %3182 = vst.msk [vmem:[#allocation4 + $0xd0] sm:$0xff] %vm1043, %v3113
      %3183 = vst.msk [vmem:[#allocation4 + $0xd8] sm:$0xff] %vm1043, %v3115
      %3184 = vst.msk [vmem:[#allocation4 + $0xe0] sm:$0xff] %vm1043, %v3117
      %3185 = vst.msk [vmem:[#allocation4 + $0xe8] sm:$0xff] %vm1043, %v3119
      %3186 = vst.msk [vmem:[#allocation4 + $0xf0] sm:$0xff] %vm1043, %v3121
      %3187 = vst.msk [vmem:[#allocation4 + $0xf8] sm:$0xff] %vm1043, %v3123
      %v3188 = vld [vmem:[%s2515 + $0x1] sm:$0xff]
      %v3189 = vld [vmem:[%s2515 + $0x9] sm:$0xff]
      %v3190 = vld [vmem:[%s2515 + $0x19] sm:$0xff]
      %v3191 = vld [vmem:[%s2515 + $0x21] sm:$0xff]
      %v3192 = vld [vmem:[%s2515 + $0x31] sm:$0xff]
      %v3193 = vld [vmem:[%s2515 + $0x39] sm:$0xff]
      %v3194 = vld [vmem:[%s2515 + $0x49] sm:$0xff]
      %v3195 = vld [vmem:[%s2515 + $0x51] sm:$0xff]
      %v3196 = vld [vmem:[%s2515 + $0x61] sm:$0xff]
      %v3197 = vld [vmem:[%s2515 + $0x69] sm:$0xff]
      %v3198 = vld [vmem:[%s2515 + $0x79] sm:$0xff]
      %v3199 = vld [vmem:[%s2515 + $0x81] sm:$0xff]
      %v3200 = vld [vmem:[%s2515 + $0x91] sm:$0xff]
      %v3201 = vld [vmem:[%s2515 + $0x99] sm:$0xff]
      %v3202 = vld [vmem:[%s2515 + $0xa9] sm:$0xff]
      %v3203 = vld [vmem:[%s2515 + $0xb1] sm:$0xff]
      %v3204 = vld [vmem:[%s2515 + $0xc1] sm:$0xff]
      %v3205 = vld [vmem:[%s2515 + $0xc9] sm:$0xff]
      %v3206 = vld [vmem:[%s2515 + $0xd9] sm:$0xff]
      %v3207 = vld [vmem:[%s2515 + $0xe1] sm:$0xff]
      %v3208 = vld [vmem:[%s2515 + $0xf1] sm:$0xff]
      %v3209 = vld [vmem:[%s2515 + $0xf9] sm:$0xff]
      %v3210 = vld [vmem:[%s2515 + $0x109] sm:$0xff]
      %v3211 = vld [vmem:[%s2515 + $0x111] sm:$0xff]
      %v3212 = vld [vmem:[%s2515 + $0x121] sm:$0xff]
      %v3213 = vld [vmem:[%s2515 + $0x129] sm:$0xff]
      %v3214 = vld [vmem:[%s2515 + $0x139] sm:$0xff]
      %v3215 = vld [vmem:[%s2515 + $0x141] sm:$0xff]
      %v3216 = vld [vmem:[%s2515 + $0x151] sm:$0xff]
      %v3217 = vld [vmem:[%s2515 + $0x159] sm:$0xff]
      %v3218 = vld [vmem:[%s2515 + $0x169] sm:$0xff]
      %v3219 = vld [vmem:[%s2515 + $0x171] sm:$0xff]
      %3252 = vrot.lane.b32.xlu0 %v3188, 16
      %v3253 = vpop.permute.xlu0 %3252
      %3254 = vrot.lane.b32.xlu0 %v3189, 16
      %v3255 = vpop.permute.xlu0 %3254
      %3256 = vrot.lane.b32.xlu0 %v3190, 16
      %v3257 = vpop.permute.xlu0 %3256
      %3258 = vrot.lane.b32.xlu0 %v3191, 16
      %v3259 = vpop.permute.xlu0 %3258
      %3260 = vrot.lane.b32.xlu0 %v3192, 16
      %v3261 = vpop.permute.xlu0 %3260
      %3262 = vrot.lane.b32.xlu0 %v3193, 16
      %v3263 = vpop.permute.xlu0 %3262
      %3264 = vrot.lane.b32.xlu0 %v3194, 16
      %v3265 = vpop.permute.xlu0 %3264
      %3266 = vrot.lane.b32.xlu0 %v3195, 16
      %v3267 = vpop.permute.xlu0 %3266
      %3268 = vrot.lane.b32.xlu0 %v3196, 16
      %v3269 = vpop.permute.xlu0 %3268
      %3270 = vrot.lane.b32.xlu0 %v3197, 16
      %v3271 = vpop.permute.xlu0 %3270
      %3272 = vrot.lane.b32.xlu0 %v3198, 16
      %v3273 = vpop.permute.xlu0 %3272
      %3274 = vrot.lane.b32.xlu0 %v3199, 16
      %v3275 = vpop.permute.xlu0 %3274
      %3276 = vrot.lane.b32.xlu0 %v3200, 16
      %v3277 = vpop.permute.xlu0 %3276
      %3278 = vrot.lane.b32.xlu0 %v3201, 16
      %v3279 = vpop.permute.xlu0 %3278
      %3280 = vrot.lane.b32.xlu0 %v3202, 16
      %v3281 = vpop.permute.xlu0 %3280
      %3282 = vrot.lane.b32.xlu0 %v3203, 16
      %v3283 = vpop.permute.xlu0 %3282
      %3284 = vrot.lane.b32.xlu0 %v3204, 16
      %v3285 = vpop.permute.xlu0 %3284
      %3286 = vrot.lane.b32.xlu0 %v3205, 16
      %v3287 = vpop.permute.xlu0 %3286
      %3288 = vrot.lane.b32.xlu0 %v3206, 16
      %v3289 = vpop.permute.xlu0 %3288
      %3290 = vrot.lane.b32.xlu0 %v3207, 16
      %v3291 = vpop.permute.xlu0 %3290
      %3292 = vrot.lane.b32.xlu0 %v3208, 16
      %v3293 = vpop.permute.xlu0 %3292
      %3294 = vrot.lane.b32.xlu0 %v3209, 16
      %v3295 = vpop.permute.xlu0 %3294
      %3296 = vrot.lane.b32.xlu0 %v3210, 16
      %v3297 = vpop.permute.xlu0 %3296
      %3298 = vrot.lane.b32.xlu0 %v3211, 16
      %v3299 = vpop.permute.xlu0 %3298
      %3300 = vrot.lane.b32.xlu0 %v3212, 16
      %v3301 = vpop.permute.xlu0 %3300
      %3302 = vrot.lane.b32.xlu0 %v3213, 16
      %v3303 = vpop.permute.xlu0 %3302
      %3304 = vrot.lane.b32.xlu0 %v3214, 16
      %v3305 = vpop.permute.xlu0 %3304
      %3306 = vrot.lane.b32.xlu0 %v3215, 16
      %v3307 = vpop.permute.xlu0 %3306
      %3308 = vrot.lane.b32.xlu0 %v3216, 16
      %v3309 = vpop.permute.xlu0 %3308
      %3310 = vrot.lane.b32.xlu0 %v3217, 16
      %v3311 = vpop.permute.xlu0 %3310
      %3312 = vrot.lane.b32.xlu0 %v3218, 16
      %v3313 = vpop.permute.xlu0 %3312
      %3314 = vrot.lane.b32.xlu0 %v3219, 16
      %v3315 = vpop.permute.xlu0 %3314
      %3348 = vst.msk [vmem:[#allocation4] sm:$0xff] %vm1236, %v3253
      %3349 = vst.msk [vmem:[#allocation4 + $0x8] sm:$0xff] %vm1236, %v3255
      %3350 = vst.msk [vmem:[#allocation4 + $0x10] sm:$0xff] %vm1236, %v3257
      %3351 = vst.msk [vmem:[#allocation4 + $0x18] sm:$0xff] %vm1236, %v3259
      %3352 = vst.msk [vmem:[#allocation4 + $0x20] sm:$0xff] %vm1236, %v3261
      %3353 = vst.msk [vmem:[#allocation4 + $0x28] sm:$0xff] %vm1236, %v3263
      %3354 = vst.msk [vmem:[#allocation4 + $0x30] sm:$0xff] %vm1236, %v3265
      %3355 = vst.msk [vmem:[#allocation4 + $0x38] sm:$0xff] %vm1236, %v3267
      %3356 = vst.msk [vmem:[#allocation4 + $0x40] sm:$0xff] %vm1236, %v3269
      %3357 = vst.msk [vmem:[#allocation4 + $0x48] sm:$0xff] %vm1236, %v3271
      %3358 = vst.msk [vmem:[#allocation4 + $0x50] sm:$0xff] %vm1236, %v3273
      %3359 = vst.msk [vmem:[#allocation4 + $0x58] sm:$0xff] %vm1236, %v3275
      %3360 = vst.msk [vmem:[#allocation4 + $0x60] sm:$0xff] %vm1236, %v3277
      %3361 = vst.msk [vmem:[#allocation4 + $0x68] sm:$0xff] %vm1236, %v3279
      %3362 = vst.msk [vmem:[#allocation4 + $0x70] sm:$0xff] %vm1236, %v3281
      %3363 = vst.msk [vmem:[#allocation4 + $0x78] sm:$0xff] %vm1236, %v3283
      %3364 = vst.msk [vmem:[#allocation4 + $0x80] sm:$0xff] %vm1236, %v3285
      %3365 = vst.msk [vmem:[#allocation4 + $0x88] sm:$0xff] %vm1236, %v3287
      %3366 = vst.msk [vmem:[#allocation4 + $0x90] sm:$0xff] %vm1236, %v3289
      %3367 = vst.msk [vmem:[#allocation4 + $0x98] sm:$0xff] %vm1236, %v3291
      %3368 = vst.msk [vmem:[#allocation4 + $0xa0] sm:$0xff] %vm1236, %v3293
      %3369 = vst.msk [vmem:[#allocation4 + $0xa8] sm:$0xff] %vm1236, %v3295
      %3370 = vst.msk [vmem:[#allocation4 + $0xb0] sm:$0xff] %vm1236, %v3297
      %3371 = vst.msk [vmem:[#allocation4 + $0xb8] sm:$0xff] %vm1236, %v3299
      %3372 = vst.msk [vmem:[#allocation4 + $0xc0] sm:$0xff] %vm1236, %v3301
      %3373 = vst.msk [vmem:[#allocation4 + $0xc8] sm:$0xff] %vm1236, %v3303
      %3374 = vst.msk [vmem:[#allocation4 + $0xd0] sm:$0xff] %vm1236, %v3305
      %3375 = vst.msk [vmem:[#allocation4 + $0xd8] sm:$0xff] %vm1236, %v3307
      %3376 = vst.msk [vmem:[#allocation4 + $0xe0] sm:$0xff] %vm1236, %v3309
      %3377 = vst.msk [vmem:[#allocation4 + $0xe8] sm:$0xff] %vm1236, %v3311
      %3378 = vst.msk [vmem:[#allocation4 + $0xf0] sm:$0xff] %vm1236, %v3313
      %3379 = vst.msk [vmem:[#allocation4 + $0xf8] sm:$0xff] %vm1236, %v3315
      %v3380 = vld [vmem:[%s2515 + $0x2] sm:$0xff]
      %v3381 = vld [vmem:[%s2515 + $0xa] sm:$0xff]
      %v3382 = vld [vmem:[%s2515 + $0x1a] sm:$0xff]
      %v3383 = vld [vmem:[%s2515 + $0x22] sm:$0xff]
      %v3384 = vld [vmem:[%s2515 + $0x32] sm:$0xff]
      %v3385 = vld [vmem:[%s2515 + $0x3a] sm:$0xff]
      %v3386 = vld [vmem:[%s2515 + $0x4a] sm:$0xff]
      %v3387 = vld [vmem:[%s2515 + $0x52] sm:$0xff]
      %v3388 = vld [vmem:[%s2515 + $0x62] sm:$0xff]
      %v3389 = vld [vmem:[%s2515 + $0x6a] sm:$0xff]
      %v3390 = vld [vmem:[%s2515 + $0x7a] sm:$0xff]
      %v3391 = vld [vmem:[%s2515 + $0x82] sm:$0xff]
      %v3392 = vld [vmem:[%s2515 + $0x92] sm:$0xff]
      %v3393 = vld [vmem:[%s2515 + $0x9a] sm:$0xff]
      %v3394 = vld [vmem:[%s2515 + $0xaa] sm:$0xff]
      %v3395 = vld [vmem:[%s2515 + $0xb2] sm:$0xff]
      %v3396 = vld [vmem:[%s2515 + $0xc2] sm:$0xff]
      %v3397 = vld [vmem:[%s2515 + $0xca] sm:$0xff]
      %v3398 = vld [vmem:[%s2515 + $0xda] sm:$0xff]
      %v3399 = vld [vmem:[%s2515 + $0xe2] sm:$0xff]
      %v3400 = vld [vmem:[%s2515 + $0xf2] sm:$0xff]
      %v3401 = vld [vmem:[%s2515 + $0xfa] sm:$0xff]
      %v3402 = vld [vmem:[%s2515 + $0x10a] sm:$0xff]
      %v3403 = vld [vmem:[%s2515 + $0x112] sm:$0xff]
      %v3404 = vld [vmem:[%s2515 + $0x122] sm:$0xff]
      %v3405 = vld [vmem:[%s2515 + $0x12a] sm:$0xff]
      %v3406 = vld [vmem:[%s2515 + $0x13a] sm:$0xff]
      %v3407 = vld [vmem:[%s2515 + $0x142] sm:$0xff]
      %v3408 = vld [vmem:[%s2515 + $0x152] sm:$0xff]
      %v3409 = vld [vmem:[%s2515 + $0x15a] sm:$0xff]
      %v3410 = vld [vmem:[%s2515 + $0x16a] sm:$0xff]
      %v3411 = vld [vmem:[%s2515 + $0x172] sm:$0xff]
      %3444 = vrot.lane.b32.xlu0 %v3380, 20
      %v3445 = vpop.permute.xlu0 %3444
      %3446 = vrot.lane.b32.xlu0 %v3381, 20
      %v3447 = vpop.permute.xlu0 %3446
      %3448 = vrot.lane.b32.xlu0 %v3382, 20
      %v3449 = vpop.permute.xlu0 %3448
      %3450 = vrot.lane.b32.xlu0 %v3383, 20
      %v3451 = vpop.permute.xlu0 %3450
      %3452 = vrot.lane.b32.xlu0 %v3384, 20
      %v3453 = vpop.permute.xlu0 %3452
      %3454 = vrot.lane.b32.xlu0 %v3385, 20
      %v3455 = vpop.permute.xlu0 %3454
      %3456 = vrot.lane.b32.xlu0 %v3386, 20
      %v3457 = vpop.permute.xlu0 %3456
      %3458 = vrot.lane.b32.xlu0 %v3387, 20
      %v3459 = vpop.permute.xlu0 %3458
      %3460 = vrot.lane.b32.xlu0 %v3388, 20
      %v3461 = vpop.permute.xlu0 %3460
      %3462 = vrot.lane.b32.xlu0 %v3389, 20
      %v3463 = vpop.permute.xlu0 %3462
      %3464 = vrot.lane.b32.xlu0 %v3390, 20
      %v3465 = vpop.permute.xlu0 %3464
      %3466 = vrot.lane.b32.xlu0 %v3391, 20
      %v3467 = vpop.permute.xlu0 %3466
      %3468 = vrot.lane.b32.xlu0 %v3392, 20
      %v3469 = vpop.permute.xlu0 %3468
      %3470 = vrot.lane.b32.xlu0 %v3393, 20
      %v3471 = vpop.permute.xlu0 %3470
      %3472 = vrot.lane.b32.xlu0 %v3394, 20
      %v3473 = vpop.permute.xlu0 %3472
      %3474 = vrot.lane.b32.xlu0 %v3395, 20
      %v3475 = vpop.permute.xlu0 %3474
      %3476 = vrot.lane.b32.xlu0 %v3396, 20
      %v3477 = vpop.permute.xlu0 %3476
      %3478 = vrot.lane.b32.xlu0 %v3397, 20
      %v3479 = vpop.permute.xlu0 %3478
      %3480 = vrot.lane.b32.xlu0 %v3398, 20
      %v3481 = vpop.permute.xlu0 %3480
      %3482 = vrot.lane.b32.xlu0 %v3399, 20
      %v3483 = vpop.permute.xlu0 %3482
      %3484 = vrot.lane.b32.xlu0 %v3400, 20
      %v3485 = vpop.permute.xlu0 %3484
      %3486 = vrot.lane.b32.xlu0 %v3401, 20
      %v3487 = vpop.permute.xlu0 %3486
      %3488 = vrot.lane.b32.xlu0 %v3402, 20
      %v3489 = vpop.permute.xlu0 %3488
      %3490 = vrot.lane.b32.xlu0 %v3403, 20
      %v3491 = vpop.permute.xlu0 %3490
      %3492 = vrot.lane.b32.xlu0 %v3404, 20
      %v3493 = vpop.permute.xlu0 %3492
      %3494 = vrot.lane.b32.xlu0 %v3405, 20
      %v3495 = vpop.permute.xlu0 %3494
      %3496 = vrot.lane.b32.xlu0 %v3406, 20
      %v3497 = vpop.permute.xlu0 %3496
      %3498 = vrot.lane.b32.xlu0 %v3407, 20
      %v3499 = vpop.permute.xlu0 %3498
      %3500 = vrot.lane.b32.xlu0 %v3408, 20
      %v3501 = vpop.permute.xlu0 %3500
      %3502 = vrot.lane.b32.xlu0 %v3409, 20
      %v3503 = vpop.permute.xlu0 %3502
      %3504 = vrot.lane.b32.xlu0 %v3410, 20
      %v3505 = vpop.permute.xlu0 %3504
      %3506 = vrot.lane.b32.xlu0 %v3411, 20
      %v3507 = vpop.permute.xlu0 %3506
      %3540 = vst.msk [vmem:[#allocation4] sm:$0xff] %vm1429, %v3445
      %3541 = vst.msk [vmem:[#allocation4 + $0x8] sm:$0xff] %vm1429, %v3447
      %3542 = vst.msk [vmem:[#allocation4 + $0x10] sm:$0xff] %vm1429, %v3449
      %3543 = vst.msk [vmem:[#allocation4 + $0x18] sm:$0xff] %vm1429, %v3451
      %3544 = vst.msk [vmem:[#allocation4 + $0x20] sm:$0xff] %vm1429, %v3453
      %3545 = vst.msk [vmem:[#allocation4 + $0x28] sm:$0xff] %vm1429, %v3455
      %3546 = vst.msk [vmem:[#allocation4 + $0x30] sm:$0xff] %vm1429, %v3457
      %3547 = vst.msk [vmem:[#allocation4 + $0x38] sm:$0xff] %vm1429, %v3459
      %3548 = vst.msk [vmem:[#allocation4 + $0x40] sm:$0xff] %vm1429, %v3461
      %3549 = vst.msk [vmem:[#allocation4 + $0x48] sm:$0xff] %vm1429, %v3463
      %3550 = vst.msk [vmem:[#allocation4 + $0x50] sm:$0xff] %vm1429, %v3465
      %3551 = vst.msk [vmem:[#allocation4 + $0x58] sm:$0xff] %vm1429, %v3467
      %3552 = vst.msk [vmem:[#allocation4 + $0x60] sm:$0xff] %vm1429, %v3469
      %3553 = vst.msk [vmem:[#allocation4 + $0x68] sm:$0xff] %vm1429, %v3471
      %3554 = vst.msk [vmem:[#allocation4 + $0x70] sm:$0xff] %vm1429, %v3473
      %3555 = vst.msk [vmem:[#allocation4 + $0x78] sm:$0xff] %vm1429, %v3475
      %3556 = vst.msk [vmem:[#allocation4 + $0x80] sm:$0xff] %vm1429, %v3477
      %3557 = vst.msk [vmem:[#allocation4 + $0x88] sm:$0xff] %vm1429, %v3479
      %3558 = vst.msk [vmem:[#allocation4 + $0x90] sm:$0xff] %vm1429, %v3481
      %3559 = vst.msk [vmem:[#allocation4 + $0x98] sm:$0xff] %vm1429, %v3483
      %3560 = vst.msk [vmem:[#allocation4 + $0xa0] sm:$0xff] %vm1429, %v3485
      %3561 = vst.msk [vmem:[#allocation4 + $0xa8] sm:$0xff] %vm1429, %v3487
      %3562 = vst.msk [vmem:[#allocation4 + $0xb0] sm:$0xff] %vm1429, %v3489
      %3563 = vst.msk [vmem:[#allocation4 + $0xb8] sm:$0xff] %vm1429, %v3491
      %3564 = vst.msk [vmem:[#allocation4 + $0xc0] sm:$0xff] %vm1429, %v3493
      %3565 = vst.msk [vmem:[#allocation4 + $0xc8] sm:$0xff] %vm1429, %v3495
      %3566 = vst.msk [vmem:[#allocation4 + $0xd0] sm:$0xff] %vm1429, %v3497
      %3567 = vst.msk [vmem:[#allocation4 + $0xd8] sm:$0xff] %vm1429, %v3499
      %3568 = vst.msk [vmem:[#allocation4 + $0xe0] sm:$0xff] %vm1429, %v3501
      %3569 = vst.msk [vmem:[#allocation4 + $0xe8] sm:$0xff] %vm1429, %v3503
      %3570 = vst.msk [vmem:[#allocation4 + $0xf0] sm:$0xff] %vm1429, %v3505
      %3571 = vst.msk [vmem:[#allocation4 + $0xf8] sm:$0xff] %vm1429, %v3507
      %s3572 = scalar_lea.vmem [#allocation3], 48
      %v3573 = vld [vmem:[%s3572] sm:$0xff]
      %v3574 = vld [vmem:[%s3572 + $0x8] sm:$0xff]
      %v3575 = vld [vmem:[%s3572 + $0x18] sm:$0xff]
      %v3576 = vld [vmem:[%s3572 + $0x20] sm:$0xff]
      %v3577 = vld [vmem:[%s3572 + $0x30] sm:$0xff]
      %v3578 = vld [vmem:[%s3572 + $0x38] sm:$0xff]
      %v3579 = vld [vmem:[%s3572 + $0x48] sm:$0xff]
      %v3580 = vld [vmem:[%s3572 + $0x50] sm:$0xff]
      %v3581 = vld [vmem:[%s3572 + $0x60] sm:$0xff]
      %v3582 = vld [vmem:[%s3572 + $0x68] sm:$0xff]
      %v3583 = vld [vmem:[%s3572 + $0x78] sm:$0xff]
      %v3584 = vld [vmem:[%s3572 + $0x80] sm:$0xff]
      %v3585 = vld [vmem:[%s3572 + $0x90] sm:$0xff]
      %v3586 = vld [vmem:[%s3572 + $0x98] sm:$0xff]
      %v3587 = vld [vmem:[%s3572 + $0xa8] sm:$0xff]
      %v3588 = vld [vmem:[%s3572 + $0xb0] sm:$0xff]
      %v3589 = vld [vmem:[%s3572 + $0xc0] sm:$0xff]
      %v3590 = vld [vmem:[%s3572 + $0xc8] sm:$0xff]
      %v3591 = vld [vmem:[%s3572 + $0xd8] sm:$0xff]
      %v3592 = vld [vmem:[%s3572 + $0xe0] sm:$0xff]
      %v3593 = vld [vmem:[%s3572 + $0xf0] sm:$0xff]
      %v3594 = vld [vmem:[%s3572 + $0xf8] sm:$0xff]
      %v3595 = vld [vmem:[%s3572 + $0x108] sm:$0xff]
      %v3596 = vld [vmem:[%s3572 + $0x110] sm:$0xff]
      %v3597 = vld [vmem:[%s3572 + $0x120] sm:$0xff]
      %v3598 = vld [vmem:[%s3572 + $0x128] sm:$0xff]
      %v3599 = vld [vmem:[%s3572 + $0x138] sm:$0xff]
      %v3600 = vld [vmem:[%s3572 + $0x140] sm:$0xff]
      %v3601 = vld [vmem:[%s3572 + $0x150] sm:$0xff]
      %v3602 = vld [vmem:[%s3572 + $0x158] sm:$0xff]
      %v3603 = vld [vmem:[%s3572 + $0x168] sm:$0xff]
      %v3604 = vld [vmem:[%s3572 + $0x170] sm:$0xff]
      %3637 = vrot.lane.b32.xlu0 %v3573, 24
      %v3638 = vpop.permute.xlu0 %3637
      %3639 = vrot.lane.b32.xlu0 %v3574, 24
      %v3640 = vpop.permute.xlu0 %3639
      %3641 = vrot.lane.b32.xlu0 %v3575, 24
      %v3642 = vpop.permute.xlu0 %3641
      %3643 = vrot.lane.b32.xlu0 %v3576, 24
      %v3644 = vpop.permute.xlu0 %3643
      %3645 = vrot.lane.b32.xlu0 %v3577, 24
      %v3646 = vpop.permute.xlu0 %3645
      %3647 = vrot.lane.b32.xlu0 %v3578, 24
      %v3648 = vpop.permute.xlu0 %3647
      %3649 = vrot.lane.b32.xlu0 %v3579, 24
      %v3650 = vpop.permute.xlu0 %3649
      %3651 = vrot.lane.b32.xlu0 %v3580, 24
      %v3652 = vpop.permute.xlu0 %3651
      %3653 = vrot.lane.b32.xlu0 %v3581, 24
      %v3654 = vpop.permute.xlu0 %3653
      %3655 = vrot.lane.b32.xlu0 %v3582, 24
      %v3656 = vpop.permute.xlu0 %3655
      %3657 = vrot.lane.b32.xlu0 %v3583, 24
      %v3658 = vpop.permute.xlu0 %3657
      %3659 = vrot.lane.b32.xlu0 %v3584, 24
      %v3660 = vpop.permute.xlu0 %3659
      %3661 = vrot.lane.b32.xlu0 %v3585, 24
      %v3662 = vpop.permute.xlu0 %3661
      %3663 = vrot.lane.b32.xlu0 %v3586, 24
      %v3664 = vpop.permute.xlu0 %3663
      %3665 = vrot.lane.b32.xlu0 %v3587, 24
      %v3666 = vpop.permute.xlu0 %3665
      %3667 = vrot.lane.b32.xlu0 %v3588, 24
      %v3668 = vpop.permute.xlu0 %3667
      %3669 = vrot.lane.b32.xlu0 %v3589, 24
      %v3670 = vpop.permute.xlu0 %3669
      %3671 = vrot.lane.b32.xlu0 %v3590, 24
      %v3672 = vpop.permute.xlu0 %3671
      %3673 = vrot.lane.b32.xlu0 %v3591, 24
      %v3674 = vpop.permute.xlu0 %3673
      %3675 = vrot.lane.b32.xlu0 %v3592, 24
      %v3676 = vpop.permute.xlu0 %3675
      %3677 = vrot.lane.b32.xlu0 %v3593, 24
      %v3678 = vpop.permute.xlu0 %3677
      %3679 = vrot.lane.b32.xlu0 %v3594, 24
      %v3680 = vpop.permute.xlu0 %3679
      %3681 = vrot.lane.b32.xlu0 %v3595, 24
      %v3682 = vpop.permute.xlu0 %3681
      %3683 = vrot.lane.b32.xlu0 %v3596, 24
      %v3684 = vpop.permute.xlu0 %3683
      %3685 = vrot.lane.b32.xlu0 %v3597, 24
      %v3686 = vpop.permute.xlu0 %3685
      %3687 = vrot.lane.b32.xlu0 %v3598, 24
      %v3688 = vpop.permute.xlu0 %3687
      %3689 = vrot.lane.b32.xlu0 %v3599, 24
      %v3690 = vpop.permute.xlu0 %3689
      %3691 = vrot.lane.b32.xlu0 %v3600, 24
      %v3692 = vpop.permute.xlu0 %3691
      %3693 = vrot.lane.b32.xlu0 %v3601, 24
      %v3694 = vpop.permute.xlu0 %3693
      %3695 = vrot.lane.b32.xlu0 %v3602, 24
      %v3696 = vpop.permute.xlu0 %3695
      %3697 = vrot.lane.b32.xlu0 %v3603, 24
      %v3698 = vpop.permute.xlu0 %3697
      %3699 = vrot.lane.b32.xlu0 %v3604, 24
      %v3700 = vpop.permute.xlu0 %3699
      %3733 = vst.msk [vmem:[#allocation4] sm:$0xff] %vm1623, %v3638
      %3734 = vst.msk [vmem:[#allocation4 + $0x8] sm:$0xff] %vm1623, %v3640
      %3735 = vst.msk [vmem:[#allocation4 + $0x10] sm:$0xff] %vm1623, %v3642
      %3736 = vst.msk [vmem:[#allocation4 + $0x18] sm:$0xff] %vm1623, %v3644
      %3737 = vst.msk [vmem:[#allocation4 + $0x20] sm:$0xff] %vm1623, %v3646
      %3738 = vst.msk [vmem:[#allocation4 + $0x28] sm:$0xff] %vm1623, %v3648
      %3739 = vst.msk [vmem:[#allocation4 + $0x30] sm:$0xff] %vm1623, %v3650
      %3740 = vst.msk [vmem:[#allocation4 + $0x38] sm:$0xff] %vm1623, %v3652
      %3741 = vst.msk [vmem:[#allocation4 + $0x40] sm:$0xff] %vm1623, %v3654
      %3742 = vst.msk [vmem:[#allocation4 + $0x48] sm:$0xff] %vm1623, %v3656
      %3743 = vst.msk [vmem:[#allocation4 + $0x50] sm:$0xff] %vm1623, %v3658
      %3744 = vst.msk [vmem:[#allocation4 + $0x58] sm:$0xff] %vm1623, %v3660
      %3745 = vst.msk [vmem:[#allocation4 + $0x60] sm:$0xff] %vm1623, %v3662
      %3746 = vst.msk [vmem:[#allocation4 + $0x68] sm:$0xff] %vm1623, %v3664
      %3747 = vst.msk [vmem:[#allocation4 + $0x70] sm:$0xff] %vm1623, %v3666
      %3748 = vst.msk [vmem:[#allocation4 + $0x78] sm:$0xff] %vm1623, %v3668
      %3749 = vst.msk [vmem:[#allocation4 + $0x80] sm:$0xff] %vm1623, %v3670
      %3750 = vst.msk [vmem:[#allocation4 + $0x88] sm:$0xff] %vm1623, %v3672
      %3751 = vst.msk [vmem:[#allocation4 + $0x90] sm:$0xff] %vm1623, %v3674
      %3752 = vst.msk [vmem:[#allocation4 + $0x98] sm:$0xff] %vm1623, %v3676
      %3753 = vst.msk [vmem:[#allocation4 + $0xa0] sm:$0xff] %vm1623, %v3678
      %3754 = vst.msk [vmem:[#allocation4 + $0xa8] sm:$0xff] %vm1623, %v3680
      %3755 = vst.msk [vmem:[#allocation4 + $0xb0] sm:$0xff] %vm1623, %v3682
      %3756 = vst.msk [vmem:[#allocation4 + $0xb8] sm:$0xff] %vm1623, %v3684
      %3757 = vst.msk [vmem:[#allocation4 + $0xc0] sm:$0xff] %vm1623, %v3686
      %3758 = vst.msk [vmem:[#allocation4 + $0xc8] sm:$0xff] %vm1623, %v3688
      %3759 = vst.msk [vmem:[#allocation4 + $0xd0] sm:$0xff] %vm1623, %v3690
      %3760 = vst.msk [vmem:[#allocation4 + $0xd8] sm:$0xff] %vm1623, %v3692
      %3761 = vst.msk [vmem:[#allocation4 + $0xe0] sm:$0xff] %vm1623, %v3694
      %3762 = vst.msk [vmem:[#allocation4 + $0xe8] sm:$0xff] %vm1623, %v3696
      %3763 = vst.msk [vmem:[#allocation4 + $0xf0] sm:$0xff] %vm1623, %v3698
      %3764 = vst.msk [vmem:[#allocation4 + $0xf8] sm:$0xff] %vm1623, %v3700
      %v3765 = vld [vmem:[%s3572 + $0x1] sm:$0xff]
      %v3766 = vld [vmem:[%s3572 + $0x9] sm:$0xff]
      %v3767 = vld [vmem:[%s3572 + $0x19] sm:$0xff]
      %v3768 = vld [vmem:[%s3572 + $0x21] sm:$0xff]
      %v3769 = vld [vmem:[%s3572 + $0x31] sm:$0xff]
      %v3770 = vld [vmem:[%s3572 + $0x39] sm:$0xff]
      %v3771 = vld [vmem:[%s3572 + $0x49] sm:$0xff]
      %v3772 = vld [vmem:[%s3572 + $0x51] sm:$0xff]
      %v3773 = vld [vmem:[%s3572 + $0x61] sm:$0xff]
      %v3774 = vld [vmem:[%s3572 + $0x69] sm:$0xff]
      %v3775 = vld [vmem:[%s3572 + $0x79] sm:$0xff]
      %v3776 = vld [vmem:[%s3572 + $0x81] sm:$0xff]
      %v3777 = vld [vmem:[%s3572 + $0x91] sm:$0xff]
      %v3778 = vld [vmem:[%s3572 + $0x99] sm:$0xff]
      %v3779 = vld [vmem:[%s3572 + $0xa9] sm:$0xff]
      %v3780 = vld [vmem:[%s3572 + $0xb1] sm:$0xff]
      %v3781 = vld [vmem:[%s3572 + $0xc1] sm:$0xff]
      %v3782 = vld [vmem:[%s3572 + $0xc9] sm:$0xff]
      %v3783 = vld [vmem:[%s3572 + $0xd9] sm:$0xff]
      %v3784 = vld [vmem:[%s3572 + $0xe1] sm:$0xff]
      %v3785 = vld [vmem:[%s3572 + $0xf1] sm:$0xff]
      %v3786 = vld [vmem:[%s3572 + $0xf9] sm:$0xff]
      %v3787 = vld [vmem:[%s3572 + $0x109] sm:$0xff]
      %v3788 = vld [vmem:[%s3572 + $0x111] sm:$0xff]
      %v3789 = vld [vmem:[%s3572 + $0x121] sm:$0xff]
      %v3790 = vld [vmem:[%s3572 + $0x129] sm:$0xff]
      %v3791 = vld [vmem:[%s3572 + $0x139] sm:$0xff]
      %v3792 = vld [vmem:[%s3572 + $0x141] sm:$0xff]
      %v3793 = vld [vmem:[%s3572 + $0x151] sm:$0xff]
      %v3794 = vld [vmem:[%s3572 + $0x159] sm:$0xff]
      %v3795 = vld [vmem:[%s3572 + $0x169] sm:$0xff]
      %v3796 = vld [vmem:[%s3572 + $0x171] sm:$0xff]
      %3829 = vrot.lane.b32.xlu0 %v3765, 28
      %v3830 = vpop.permute.xlu0 %3829
      %3831 = vrot.lane.b32.xlu0 %v3766, 28
      %v3832 = vpop.permute.xlu0 %3831
      %3833 = vrot.lane.b32.xlu0 %v3767, 28
      %v3834 = vpop.permute.xlu0 %3833
      %3835 = vrot.lane.b32.xlu0 %v3768, 28
      %v3836 = vpop.permute.xlu0 %3835
      %3837 = vrot.lane.b32.xlu0 %v3769, 28
      %v3838 = vpop.permute.xlu0 %3837
      %3839 = vrot.lane.b32.xlu0 %v3770, 28
      %v3840 = vpop.permute.xlu0 %3839
      %3841 = vrot.lane.b32.xlu0 %v3771, 28
      %v3842 = vpop.permute.xlu0 %3841
      %3843 = vrot.lane.b32.xlu0 %v3772, 28
      %v3844 = vpop.permute.xlu0 %3843
      %3845 = vrot.lane.b32.xlu0 %v3773, 28
      %v3846 = vpop.permute.xlu0 %3845
      %3847 = vrot.lane.b32.xlu0 %v3774, 28
      %v3848 = vpop.permute.xlu0 %3847
      %3849 = vrot.lane.b32.xlu0 %v3775, 28
      %v3850 = vpop.permute.xlu0 %3849
      %3851 = vrot.lane.b32.xlu0 %v3776, 28
      %v3852 = vpop.permute.xlu0 %3851
      %3853 = vrot.lane.b32.xlu0 %v3777, 28
      %v3854 = vpop.permute.xlu0 %3853
      %3855 = vrot.lane.b32.xlu0 %v3778, 28
      %v3856 = vpop.permute.xlu0 %3855
      %3857 = vrot.lane.b32.xlu0 %v3779, 28
      %v3858 = vpop.permute.xlu0 %3857
      %3859 = vrot.lane.b32.xlu0 %v3780, 28
      %v3860 = vpop.permute.xlu0 %3859
      %3861 = vrot.lane.b32.xlu0 %v3781, 28
      %v3862 = vpop.permute.xlu0 %3861
      %3863 = vrot.lane.b32.xlu0 %v3782, 28
      %v3864 = vpop.permute.xlu0 %3863
      %3865 = vrot.lane.b32.xlu0 %v3783, 28
      %v3866 = vpop.permute.xlu0 %3865
      %3867 = vrot.lane.b32.xlu0 %v3784, 28
      %v3868 = vpop.permute.xlu0 %3867
      %3869 = vrot.lane.b32.xlu0 %v3785, 28
      %v3870 = vpop.permute.xlu0 %3869
      %3871 = vrot.lane.b32.xlu0 %v3786, 28
      %v3872 = vpop.permute.xlu0 %3871
      %3873 = vrot.lane.b32.xlu0 %v3787, 28
      %v3874 = vpop.permute.xlu0 %3873
      %3875 = vrot.lane.b32.xlu0 %v3788, 28
      %v3876 = vpop.permute.xlu0 %3875
      %3877 = vrot.lane.b32.xlu0 %v3789, 28
      %v3878 = vpop.permute.xlu0 %3877
      %3879 = vrot.lane.b32.xlu0 %v3790, 28
      %v3880 = vpop.permute.xlu0 %3879
      %3881 = vrot.lane.b32.xlu0 %v3791, 28
      %v3882 = vpop.permute.xlu0 %3881
      %3883 = vrot.lane.b32.xlu0 %v3792, 28
      %v3884 = vpop.permute.xlu0 %3883
      %3885 = vrot.lane.b32.xlu0 %v3793, 28
      %v3886 = vpop.permute.xlu0 %3885
      %3887 = vrot.lane.b32.xlu0 %v3794, 28
      %v3888 = vpop.permute.xlu0 %3887
      %3889 = vrot.lane.b32.xlu0 %v3795, 28
      %v3890 = vpop.permute.xlu0 %3889
      %3891 = vrot.lane.b32.xlu0 %v3796, 28
      %v3892 = vpop.permute.xlu0 %3891
      %3925 = vst.msk [vmem:[#allocation4] sm:$0xff] %vm1816, %v3830
      %3926 = vst.msk [vmem:[#allocation4 + $0x8] sm:$0xff] %vm1816, %v3832
      %3927 = vst.msk [vmem:[#allocation4 + $0x10] sm:$0xff] %vm1816, %v3834
      %3928 = vst.msk [vmem:[#allocation4 + $0x18] sm:$0xff] %vm1816, %v3836
      %3929 = vst.msk [vmem:[#allocation4 + $0x20] sm:$0xff] %vm1816, %v3838
      %3930 = vst.msk [vmem:[#allocation4 + $0x28] sm:$0xff] %vm1816, %v3840
      %3931 = vst.msk [vmem:[#allocation4 + $0x30] sm:$0xff] %vm1816, %v3842
      %3932 = vst.msk [vmem:[#allocation4 + $0x38] sm:$0xff] %vm1816, %v3844
      %3933 = vst.msk [vmem:[#allocation4 + $0x40] sm:$0xff] %vm1816, %v3846
      %3934 = vst.msk [vmem:[#allocation4 + $0x48] sm:$0xff] %vm1816, %v3848
      %3935 = vst.msk [vmem:[#allocation4 + $0x50] sm:$0xff] %vm1816, %v3850
      %3936 = vst.msk [vmem:[#allocation4 + $0x58] sm:$0xff] %vm1816, %v3852
      %3937 = vst.msk [vmem:[#allocation4 + $0x60] sm:$0xff] %vm1816, %v3854
      %3938 = vst.msk [vmem:[#allocation4 + $0x68] sm:$0xff] %vm1816, %v3856
      %3939 = vst.msk [vmem:[#allocation4 + $0x70] sm:$0xff] %vm1816, %v3858
      %3940 = vst.msk [vmem:[#allocation4 + $0x78] sm:$0xff] %vm1816, %v3860
      %3941 = vst.msk [vmem:[#allocation4 + $0x80] sm:$0xff] %vm1816, %v3862
      %3942 = vst.msk [vmem:[#allocation4 + $0x88] sm:$0xff] %vm1816, %v3864
      %3943 = vst.msk [vmem:[#allocation4 + $0x90] sm:$0xff] %vm1816, %v3866
      %3944 = vst.msk [vmem:[#allocation4 + $0x98] sm:$0xff] %vm1816, %v3868
      %3945 = vst.msk [vmem:[#allocation4 + $0xa0] sm:$0xff] %vm1816, %v3870
      %3946 = vst.msk [vmem:[#allocation4 + $0xa8] sm:$0xff] %vm1816, %v3872
      %3947 = vst.msk [vmem:[#allocation4 + $0xb0] sm:$0xff] %vm1816, %v3874
      %3948 = vst.msk [vmem:[#allocation4 + $0xb8] sm:$0xff] %vm1816, %v3876
      %3949 = vst.msk [vmem:[#allocation4 + $0xc0] sm:$0xff] %vm1816, %v3878
      %3950 = vst.msk [vmem:[#allocation4 + $0xc8] sm:$0xff] %vm1816, %v3880
      %3951 = vst.msk [vmem:[#allocation4 + $0xd0] sm:$0xff] %vm1816, %v3882
      %3952 = vst.msk [vmem:[#allocation4 + $0xd8] sm:$0xff] %vm1816, %v3884
      %3953 = vst.msk [vmem:[#allocation4 + $0xe0] sm:$0xff] %vm1816, %v3886
      %3954 = vst.msk [vmem:[#allocation4 + $0xe8] sm:$0xff] %vm1816, %v3888
      %3955 = vst.msk [vmem:[#allocation4 + $0xf0] sm:$0xff] %vm1816, %v3890
      %3956 = vst.msk [vmem:[#allocation4 + $0xf8] sm:$0xff] %vm1816, %v3892
      %v3957 = vld [vmem:[%s3572 + $0x2] sm:$0xff]
      %v3958 = vld [vmem:[%s3572 + $0xa] sm:$0xff]
      %v3959 = vld [vmem:[%s3572 + $0x1a] sm:$0xff]
      %v3960 = vld [vmem:[%s3572 + $0x22] sm:$0xff]
      %v3961 = vld [vmem:[%s3572 + $0x32] sm:$0xff]
      %v3962 = vld [vmem:[%s3572 + $0x3a] sm:$0xff]
      %v3963 = vld [vmem:[%s3572 + $0x4a] sm:$0xff]
      %v3964 = vld [vmem:[%s3572 + $0x52] sm:$0xff]
      %v3965 = vld [vmem:[%s3572 + $0x62] sm:$0xff]
      %v3966 = vld [vmem:[%s3572 + $0x6a] sm:$0xff]
      %v3967 = vld [vmem:[%s3572 + $0x7a] sm:$0xff]
      %v3968 = vld [vmem:[%s3572 + $0x82] sm:$0xff]
      %v3969 = vld [vmem:[%s3572 + $0x92] sm:$0xff]
      %v3970 = vld [vmem:[%s3572 + $0x9a] sm:$0xff]
      %v3971 = vld [vmem:[%s3572 + $0xaa] sm:$0xff]
      %v3972 = vld [vmem:[%s3572 + $0xb2] sm:$0xff]
      %v3973 = vld [vmem:[%s3572 + $0xc2] sm:$0xff]
      %v3974 = vld [vmem:[%s3572 + $0xca] sm:$0xff]
      %v3975 = vld [vmem:[%s3572 + $0xda] sm:$0xff]
      %v3976 = vld [vmem:[%s3572 + $0xe2] sm:$0xff]
      %v3977 = vld [vmem:[%s3572 + $0xf2] sm:$0xff]
      %v3978 = vld [vmem:[%s3572 + $0xfa] sm:$0xff]
      %v3979 = vld [vmem:[%s3572 + $0x10a] sm:$0xff]
      %v3980 = vld [vmem:[%s3572 + $0x112] sm:$0xff]
      %v3981 = vld [vmem:[%s3572 + $0x122] sm:$0xff]
      %v3982 = vld [vmem:[%s3572 + $0x12a] sm:$0xff]
      %v3983 = vld [vmem:[%s3572 + $0x13a] sm:$0xff]
      %v3984 = vld [vmem:[%s3572 + $0x142] sm:$0xff]
      %v3985 = vld [vmem:[%s3572 + $0x152] sm:$0xff]
      %v3986 = vld [vmem:[%s3572 + $0x15a] sm:$0xff]
      %v3987 = vld [vmem:[%s3572 + $0x16a] sm:$0xff]
      %v3988 = vld [vmem:[%s3572 + $0x172] sm:$0xff]
      %4021 = vrot.lane.b32.xlu0 %v3957, 32
      %v4022 = vpop.permute.xlu0 %4021
      %4023 = vrot.lane.b32.xlu0 %v3958, 32
      %v4024 = vpop.permute.xlu0 %4023
      %4025 = vrot.lane.b32.xlu0 %v3959, 32
      %v4026 = vpop.permute.xlu0 %4025
      %4027 = vrot.lane.b32.xlu0 %v3960, 32
      %v4028 = vpop.permute.xlu0 %4027
      %4029 = vrot.lane.b32.xlu0 %v3961, 32
      %v4030 = vpop.permute.xlu0 %4029
      %4031 = vrot.lane.b32.xlu0 %v3962, 32
      %v4032 = vpop.permute.xlu0 %4031
      %4033 = vrot.lane.b32.xlu0 %v3963, 32
      %v4034 = vpop.permute.xlu0 %4033
      %4035 = vrot.lane.b32.xlu0 %v3964, 32
      %v4036 = vpop.permute.xlu0 %4035
      %4037 = vrot.lane.b32.xlu0 %v3965, 32
      %v4038 = vpop.permute.xlu0 %4037
      %4039 = vrot.lane.b32.xlu0 %v3966, 32
      %v4040 = vpop.permute.xlu0 %4039
      %4041 = vrot.lane.b32.xlu0 %v3967, 32
      %v4042 = vpop.permute.xlu0 %4041
      %4043 = vrot.lane.b32.xlu0 %v3968, 32
      %v4044 = vpop.permute.xlu0 %4043
      %4045 = vrot.lane.b32.xlu0 %v3969, 32
      %v4046 = vpop.permute.xlu0 %4045
      %4047 = vrot.lane.b32.xlu0 %v3970, 32
      %v4048 = vpop.permute.xlu0 %4047
      %4049 = vrot.lane.b32.xlu0 %v3971, 32
      %v4050 = vpop.permute.xlu0 %4049
      %4051 = vrot.lane.b32.xlu0 %v3972, 32
      %v4052 = vpop.permute.xlu0 %4051
      %4053 = vrot.lane.b32.xlu0 %v3973, 32
      %v4054 = vpop.permute.xlu0 %4053
      %4055 = vrot.lane.b32.xlu0 %v3974, 32
      %v4056 = vpop.permute.xlu0 %4055
      %4057 = vrot.lane.b32.xlu0 %v3975, 32
      %v4058 = vpop.permute.xlu0 %4057
      %4059 = vrot.lane.b32.xlu0 %v3976, 32
      %v4060 = vpop.permute.xlu0 %4059
      %4061 = vrot.lane.b32.xlu0 %v3977, 32
      %v4062 = vpop.permute.xlu0 %4061
      %4063 = vrot.lane.b32.xlu0 %v3978, 32
      %v4064 = vpop.permute.xlu0 %4063
      %4065 = vrot.lane.b32.xlu0 %v3979, 32
      %v4066 = vpop.permute.xlu0 %4065
      %4067 = vrot.lane.b32.xlu0 %v3980, 32
      %v4068 = vpop.permute.xlu0 %4067
      %4069 = vrot.lane.b32.xlu0 %v3981, 32
      %v4070 = vpop.permute.xlu0 %4069
      %4071 = vrot.lane.b32.xlu0 %v3982, 32
      %v4072 = vpop.permute.xlu0 %4071
      %4073 = vrot.lane.b32.xlu0 %v3983, 32
      %v4074 = vpop.permute.xlu0 %4073
      %4075 = vrot.lane.b32.xlu0 %v3984, 32
      %v4076 = vpop.permute.xlu0 %4075
      %4077 = vrot.lane.b32.xlu0 %v3985, 32
      %v4078 = vpop.permute.xlu0 %4077
      %4079 = vrot.lane.b32.xlu0 %v3986, 32
      %v4080 = vpop.permute.xlu0 %4079
      %4081 = vrot.lane.b32.xlu0 %v3987, 32
      %v4082 = vpop.permute.xlu0 %4081
      %4083 = vrot.lane.b32.xlu0 %v3988, 32
      %v4084 = vpop.permute.xlu0 %4083
      %4117 = vst.msk [vmem:[#allocation4] sm:$0xff] %vm2009, %v4022
      %4118 = vst.msk [vmem:[#allocation4 + $0x8] sm:$0xff] %vm2009, %v4024
      %4119 = vst.msk [vmem:[#allocation4 + $0x10] sm:$0xff] %vm2009, %v4026
      %4120 = vst.msk [vmem:[#allocation4 + $0x18] sm:$0xff] %vm2009, %v4028
      %4121 = vst.msk [vmem:[#allocation4 + $0x20] sm:$0xff] %vm2009, %v4030
      %4122 = vst.msk [vmem:[#allocation4 + $0x28] sm:$0xff] %vm2009, %v4032
      %4123 = vst.msk [vmem:[#allocation4 + $0x30] sm:$0xff] %vm2009, %v4034
      %4124 = vst.msk [vmem:[#allocation4 + $0x38] sm:$0xff] %vm2009, %v4036
      %4125 = vst.msk [vmem:[#allocation4 + $0x40] sm:$0xff] %vm2009, %v4038
      %4126 = vst.msk [vmem:[#allocation4 + $0x48] sm:$0xff] %vm2009, %v4040
      %4127 = vst.msk [vmem:[#allocation4 + $0x50] sm:$0xff] %vm2009, %v4042
      %4128 = vst.msk [vmem:[#allocation4 + $0x58] sm:$0xff] %vm2009, %v4044
      %4129 = vst.msk [vmem:[#allocation4 + $0x60] sm:$0xff] %vm2009, %v4046
      %4130 = vst.msk [vmem:[#allocation4 + $0x68] sm:$0xff] %vm2009, %v4048
      %4131 = vst.msk [vmem:[#allocation4 + $0x70] sm:$0xff] %vm2009, %v4050
      %4132 = vst.msk [vmem:[#allocation4 + $0x78] sm:$0xff] %vm2009, %v4052
      %4133 = vst.msk [vmem:[#allocation4 + $0x80] sm:$0xff] %vm2009, %v4054
      %4134 = vst.msk [vmem:[#allocation4 + $0x88] sm:$0xff] %vm2009, %v4056
      %4135 = vst.msk [vmem:[#allocation4 + $0x90] sm:$0xff] %vm2009, %v4058
      %4136 = vst.msk [vmem:[#allocation4 + $0x98] sm:$0xff] %vm2009, %v4060
      %4137 = vst.msk [vmem:[#allocation4 + $0xa0] sm:$0xff] %vm2009, %v4062
      %4138 = vst.msk [vmem:[#allocation4 + $0xa8] sm:$0xff] %vm2009, %v4064
      %4139 = vst.msk [vmem:[#allocation4 + $0xb0] sm:$0xff] %vm2009, %v4066
      %4140 = vst.msk [vmem:[#allocation4 + $0xb8] sm:$0xff] %vm2009, %v4068
      %4141 = vst.msk [vmem:[#allocation4 + $0xc0] sm:$0xff] %vm2009, %v4070
      %4142 = vst.msk [vmem:[#allocation4 + $0xc8] sm:$0xff] %vm2009, %v4072
      %4143 = vst.msk [vmem:[#allocation4 + $0xd0] sm:$0xff] %vm2009, %v4074
      %4144 = vst.msk [vmem:[#allocation4 + $0xd8] sm:$0xff] %vm2009, %v4076
      %4145 = vst.msk [vmem:[#allocation4 + $0xe0] sm:$0xff] %vm2009, %v4078
      %4146 = vst.msk [vmem:[#allocation4 + $0xe8] sm:$0xff] %vm2009, %v4080
      %4147 = vst.msk [vmem:[#allocation4 + $0xf0] sm:$0xff] %vm2009, %v4082
      %4148 = vst.msk [vmem:[#allocation4 + $0xf8] sm:$0xff] %vm2009, %v4084
      %v4149 = vld [vmem:[#allocation4] sm:$0xff]
      %v4150 = vld [vmem:[#allocation4 + $0x8] sm:$0xff]
      %v4151 = vld [vmem:[#allocation4 + $0x10] sm:$0xff]
      %v4152 = vld [vmem:[#allocation4 + $0x18] sm:$0xff]
      %v4153 = vld [vmem:[#allocation4 + $0x20] sm:$0xff]
      %v4154 = vld [vmem:[#allocation4 + $0x28] sm:$0xff]
      %v4155 = vld [vmem:[#allocation4 + $0x30] sm:$0xff]
      %v4156 = vld [vmem:[#allocation4 + $0x38] sm:$0xff]
      %v4157 = vld [vmem:[#allocation4 + $0x40] sm:$0xff]
      %v4158 = vld [vmem:[#allocation4 + $0x48] sm:$0xff]
      %v4159 = vld [vmem:[#allocation4 + $0x50] sm:$0xff]
      %v4160 = vld [vmem:[#allocation4 + $0x58] sm:$0xff]
      %v4161 = vld [vmem:[#allocation4 + $0x60] sm:$0xff]
      %v4162 = vld [vmem:[#allocation4 + $0x68] sm:$0xff]
      %v4163 = vld [vmem:[#allocation4 + $0x70] sm:$0xff]
      %v4164 = vld [vmem:[#allocation4 + $0x78] sm:$0xff]
      %v4165 = vld [vmem:[#allocation4 + $0x80] sm:$0xff]
      %v4166 = vld [vmem:[#allocation4 + $0x88] sm:$0xff]
      %v4167 = vld [vmem:[#allocation4 + $0x90] sm:$0xff]
      %v4168 = vld [vmem:[#allocation4 + $0x98] sm:$0xff]
      %v4169 = vld [vmem:[#allocation4 + $0xa0] sm:$0xff]
      %v4170 = vld [vmem:[#allocation4 + $0xa8] sm:$0xff]
      %v4171 = vld [vmem:[#allocation4 + $0xb0] sm:$0xff]
      %v4172 = vld [vmem:[#allocation4 + $0xb8] sm:$0xff]
      %v4173 = vld [vmem:[#allocation4 + $0xc0] sm:$0xff]
      %v4174 = vld [vmem:[#allocation4 + $0xc8] sm:$0xff]
      %v4175 = vld [vmem:[#allocation4 + $0xd0] sm:$0xff]
      %v4176 = vld [vmem:[#allocation4 + $0xd8] sm:$0xff]
      %v4177 = vld [vmem:[#allocation4 + $0xe0] sm:$0xff]
      %v4178 = vld [vmem:[#allocation4 + $0xe8] sm:$0xff]
      %v4179 = vld [vmem:[#allocation4 + $0xf0] sm:$0xff]
      %v4180 = vld [vmem:[#allocation4 + $0xf8] sm:$0xff]
      %v4181 = vld [vmem:[%s4] sm:$0xff]
      %v4182 = vld [vmem:[%s4 + $0x8] sm:$0xff]
      %v4183 = vld [vmem:[%s4 + $0x10] sm:$0xff]
      %v4184 = vld [vmem:[%s4 + $0x18] sm:$0xff]
      %v4185 = vld [vmem:[%s4 + $0x20] sm:$0xf]
      %v4187 = vsel %vm2079, %v4149, 0
      %v4190 = vsel %vm2079, %v4150, 0
      %v4193 = vsel %vm2079, %v4151, 0
      %v4196 = vsel %vm2079, %v4152, 0
      %v4199 = vsel %vm2079, %v4153, 0
      %v4202 = vsel %vm2079, %v4154, 0
      %v4205 = vsel %vm2079, %v4155, 0
      %v4208 = vsel %vm2079, %v4156, 0
      %v4211 = vsel %vm2079, %v4157, 0
      %v4214 = vsel %vm2079, %v4158, 0
      %v4217 = vsel %vm2079, %v4159, 0
      %v4220 = vsel %vm2079, %v4160, 0
      %v4223 = vsel %vm2079, %v4161, 0
      %v4226 = vsel %vm2079, %v4162, 0
      %v4229 = vsel %vm2079, %v4163, 0
      %v4232 = vsel %vm2079, %v4164, 0
      %v4235 = vsel %vm2079, %v4165, 0
      %v4238 = vsel %vm2079, %v4166, 0
      %v4241 = vsel %vm2079, %v4167, 0
      %v4244 = vsel %vm2079, %v4168, 0
      %v4247 = vsel %vm2079, %v4169, 0
      %v4250 = vsel %vm2079, %v4170, 0
      %v4253 = vsel %vm2079, %v4171, 0
      %v4256 = vsel %vm2079, %v4172, 0
      %v4259 = vsel %vm2079, %v4173, 0
      %v4262 = vsel %vm2079, %v4174, 0
      %v4265 = vsel %vm2079, %v4175, 0
      %v4268 = vsel %vm2079, %v4176, 0
      %v4271 = vsel %vm2079, %v4177, 0
      %v4274 = vsel %vm2079, %v4178, 0
      %v4277 = vsel %vm2079, %v4179, 0
      %v4280 = vsel %vm2079, %v4180, 0
      %v4283 = vsel %vm2176, %v4185, 0
      %4285 = vmatprep.subr.mxu0 0.0
      %4286 = vmatpush1.msra.mxu0 %v4181
      %4287 = vmatprep.subr.mxu0 0.0
      %4288 = vmatpush1.msra.mxu0 %v4182
      %4289 = vmatprep.subr.mxu0 0.0
      %4290 = vmatpush1.msra.mxu0 %v4183
      %4291 = vmatprep.subr.mxu0 0.0
      %4292 = vmatpush1.msra.mxu0 %v4184
      %4293 = vmatprep.subr.mxu0 0.0
      %4294 = vmatpush1.msra.mxu0 %v4283
      %4295 = vmatprep.subr.mxu0 0.0
      %4296 = vmatpush1.msra.mxu0 0.0
      %4297 = vmatprep.subr.mxu0 0.0
      %4298 = vmatpush1.msra.mxu0 0.0
      %4299 = vmatprep.subr.mxu0 0.0
      %4300 = vmatpush1.msra.mxu0 0.0
      %4301 = vmatprep.subr.mxu0 0.0
      %4302 = vmatpush1.msra.mxu0 0.0
      %4303 = vmatprep.subr.mxu0 0.0
      %4304 = vmatpush1.msra.mxu0 0.0
      %4305 = vmatprep.subr.mxu0 0.0
      %4306 = vmatpush1.msra.mxu0 0.0
      %4307 = vmatprep.subr.mxu0 0.0
      %4308 = vmatpush1.msra.mxu0 0.0
      %4309 = vmatprep.subr.mxu0 0.0
      %4310 = vmatpush1.msra.mxu0 0.0
      %4311 = vmatprep.subr.mxu0 0.0
      %4312 = vmatpush1.msra.mxu0 0.0
      %4313 = vmatprep.subr.mxu0 0.0
      %4314 = vmatpush1.msra.mxu0 0.0
      %4315 = vmatprep.subr.mxu0 0.0
      %4316 = vmatpush1.msra.mxu0 0.0
      %4317 = vmatprep.subr.mxu0 0.0
      %4318 = vmatpush1.msra.mxu0 0.0
      %4319 = vmatprep.subr.mxu0 0.0
      %4320 = vmatpush1.msra.mxu0 0.0
      %4321 = vmatprep.subr.mxu0 0.0
      %4322 = vmatpush1.msra.mxu0 0.0
      %4323 = vmatprep.subr.mxu0 0.0
      %4324 = vmatpush1.msra.mxu0 0.0
      %4325 = vmatprep.subr.mxu0 0.0
      %4326 = vmatpush1.msra.mxu0 0.0
      %4327 = vmatprep.subr.mxu0 0.0
      %4328 = vmatpush1.msra.mxu0 0.0
      %4329 = vmatprep.subr.mxu0 0.0
      %4330 = vmatpush1.msra.mxu0 0.0
      %4331 = vmatprep.subr.mxu0 0.0
      %4332 = vmatpush1.msra.mxu0 0.0
      %4333 = vmatprep.subr.mxu0 0.0
      %4334 = vmatpush1.msra.mxu0 0.0
      %4335 = vmatprep.subr.mxu0 0.0
      %4336 = vmatpush1.msra.mxu0 0.0
      %4337 = vmatprep.subr.mxu0 0.0
      %4338 = vmatpush1.msra.mxu0 0.0
      %4339 = vmatprep.subr.mxu0 0.0
      %4340 = vmatpush1.msra.mxu0 0.0
      %4341 = vmatprep.subr.mxu0 0.0
      %4342 = vmatpush1.msra.mxu0 0.0
      %4343 = vmatprep.subr.mxu0 0.0
      %4344 = vmatpush1.msra.mxu0 0.0
      %4345 = vmatprep.subr.mxu0 0.0
      %4346 = vmatpush1.msra.mxu0 0.0
      %4347 = vmatprep.subr.mxu0 0.0
      %4348 = vmatpush1.msra.mxu0 0.0
      %4349 = vmatprep.mubr.f32.mxu0 0.0
      %4350 = vmatmul.mubr.f32.gmra.mrb[0].mxu0 %v4187
      %v4351 = vpop.f32.mrb[0].mxu0
      %v4352 = vadd.f32 0.0, %v4351
      %v4353 = vpop.f32.mrb[0].mxu0
      %4354 = vmatprep.mubr.f32.mxu0 0.0
      %4355 = vmatmul.mubr.f32.gmra.mrb[0].mxu0 %v4190
      %v4356 = vpop.f32.mrb[0].mxu0
      %v4357 = vadd.f32 0.0, %v4356
      %v4358 = vpop.f32.mrb[0].mxu0
      %4359 = vmatprep.mubr.f32.mxu0 0.0
      %4360 = vmatmul.mubr.f32.gmra.mrb[0].mxu0 %v4193
      %v4361 = vpop.f32.mrb[0].mxu0
      %v4362 = vadd.f32 0.0, %v4361
      %v4363 = vpop.f32.mrb[0].mxu0
      %4364 = vmatprep.mubr.f32.mxu0 0.0
      %4365 = vmatmul.mubr.f32.gmra.mrb[0].mxu0 %v4196
      %v4366 = vpop.f32.mrb[0].mxu0
      %v4367 = vadd.f32 0.0, %v4366
      %v4368 = vpop.f32.mrb[0].mxu0
      %4369 = vmatprep.mubr.f32.mxu0 0.0
      %4370 = vmatmul.mubr.f32.gmra.mrb[0].mxu0 %v4199
      %v4371 = vpop.f32.mrb[0].mxu0
      %v4372 = vadd.f32 0.0, %v4371
      %v4373 = vpop.f32.mrb[0].mxu0
      %4374 = vmatprep.mubr.f32.mxu0 0.0
      %4375 = vmatmul.mubr.f32.gmra.mrb[0].mxu0 %v4202
      %v4376 = vpop.f32.mrb[0].mxu0
      %v4377 = vadd.f32 0.0, %v4376
      %v4378 = vpop.f32.mrb[0].mxu0
      %4379 = vmatprep.mubr.f32.mxu0 0.0
      %4380 = vmatmul.mubr.f32.gmra.mrb[0].mxu0 %v4205
      %v4381 = vpop.f32.mrb[0].mxu0
      %v4382 = vadd.f32 0.0, %v4381
      %v4383 = vpop.f32.mrb[0].mxu0
      %4384 = vmatprep.mubr.f32.mxu0 0.0
      %4385 = vmatmul.mubr.f32.gmra.mrb[0].mxu0 %v4208
      %v4386 = vpop.f32.mrb[0].mxu0
      %v4387 = vadd.f32 0.0, %v4386
      %v4388 = vpop.f32.mrb[0].mxu0
      %4389 = vmatprep.mubr.f32.mxu0 0.0
      %4390 = vmatmul.mubr.f32.gmra.mrb[0].mxu0 %v4211
      %v4391 = vpop.f32.mrb[0].mxu0
      %v4392 = vadd.f32 0.0, %v4391
      %v4393 = vpop.f32.mrb[0].mxu0
      %4394 = vmatprep.mubr.f32.mxu0 0.0
      %4395 = vmatmul.mubr.f32.gmra.mrb[0].mxu0 %v4214
      %v4396 = vpop.f32.mrb[0].mxu0
      %v4397 = vadd.f32 0.0, %v4396
      %v4398 = vpop.f32.mrb[0].mxu0
      %4399 = vmatprep.mubr.f32.mxu0 0.0
      %4400 = vmatmul.mubr.f32.gmra.mrb[0].mxu0 %v4217
      %v4401 = vpop.f32.mrb[0].mxu0
      %v4402 = vadd.f32 0.0, %v4401
      %v4403 = vpop.f32.mrb[0].mxu0
      %4404 = vmatprep.mubr.f32.mxu0 0.0
      %4405 = vmatmul.mubr.f32.gmra.mrb[0].mxu0 %v4220
      %v4406 = vpop.f32.mrb[0].mxu0
      %v4407 = vadd.f32 0.0, %v4406
      %v4408 = vpop.f32.mrb[0].mxu0
      %4409 = vmatprep.mubr.f32.mxu0 0.0
      %4410 = vmatmul.mubr.f32.gmra.mrb[0].mxu0 %v4223
      %v4411 = vpop.f32.mrb[0].mxu0
      %v4412 = vadd.f32 0.0, %v4411
      %v4413 = vpop.f32.mrb[0].mxu0
      %4414 = vmatprep.mubr.f32.mxu0 0.0
      %4415 = vmatmul.mubr.f32.gmra.mrb[0].mxu0 %v4226
      %v4416 = vpop.f32.mrb[0].mxu0
      %v4417 = vadd.f32 0.0, %v4416
      %v4418 = vpop.f32.mrb[0].mxu0
      %4419 = vmatprep.mubr.f32.mxu0 0.0
      %4420 = vmatmul.mubr.f32.gmra.mrb[0].mxu0 %v4229
      %v4421 = vpop.f32.mrb[0].mxu0
      %v4422 = vadd.f32 0.0, %v4421
      %v4423 = vpop.f32.mrb[0].mxu0
      %4424 = vmatprep.mubr.f32.mxu0 0.0
      %4425 = vmatmul.mubr.f32.gmra.mrb[0].mxu0 %v4232
      %v4426 = vpop.f32.mrb[0].mxu0
      %v4427 = vadd.f32 0.0, %v4426
      %v4428 = vpop.f32.mrb[0].mxu0
      %4429 = vmatprep.mubr.f32.mxu0 0.0
      %4430 = vmatmul.mubr.f32.gmra.mrb[0].mxu0 %v4235
      %v4431 = vpop.f32.mrb[0].mxu0
      %v4432 = vadd.f32 0.0, %v4431
      %v4433 = vpop.f32.mrb[0].mxu0
      %4434 = vmatprep.mubr.f32.mxu0 0.0
      %4435 = vmatmul.mubr.f32.gmra.mrb[0].mxu0 %v4238
      %v4436 = vpop.f32.mrb[0].mxu0
      %v4437 = vadd.f32 0.0, %v4436
      %v4438 = vpop.f32.mrb[0].mxu0
      %4439 = vmatprep.mubr.f32.mxu0 0.0
      %4440 = vmatmul.mubr.f32.gmra.mrb[0].mxu0 %v4241
      %v4441 = vpop.f32.mrb[0].mxu0
      %v4442 = vadd.f32 0.0, %v4441
      %v4443 = vpop.f32.mrb[0].mxu0
      %4444 = vmatprep.mubr.f32.mxu0 0.0
      %4445 = vmatmul.mubr.f32.gmra.mrb[0].mxu0 %v4244
      %v4446 = vpop.f32.mrb[0].mxu0
      %v4447 = vadd.f32 0.0, %v4446
      %v4448 = vpop.f32.mrb[0].mxu0
      %4449 = vmatprep.mubr.f32.mxu0 0.0
      %4450 = vmatmul.mubr.f32.gmra.mrb[0].mxu0 %v4247
      %v4451 = vpop.f32.mrb[0].mxu0
      %v4452 = vadd.f32 0.0, %v4451
      %v4453 = vpop.f32.mrb[0].mxu0
      %4454 = vmatprep.mubr.f32.mxu0 0.0
      %4455 = vmatmul.mubr.f32.gmra.mrb[0].mxu0 %v4250
      %v4456 = vpop.f32.mrb[0].mxu0
      %v4457 = vadd.f32 0.0, %v4456
      %v4458 = vpop.f32.mrb[0].mxu0
      %4459 = vmatprep.mubr.f32.mxu0 0.0
      %4460 = vmatmul.mubr.f32.gmra.mrb[0].mxu0 %v4253
      %v4461 = vpop.f32.mrb[0].mxu0
      %v4462 = vadd.f32 0.0, %v4461
      %v4463 = vpop.f32.mrb[0].mxu0
      %4464 = vmatprep.mubr.f32.mxu0 0.0
      %4465 = vmatmul.mubr.f32.gmra.mrb[0].mxu0 %v4256
      %v4466 = vpop.f32.mrb[0].mxu0
      %v4467 = vadd.f32 0.0, %v4466
      %v4468 = vpop.f32.mrb[0].mxu0
      %4469 = vmatprep.mubr.f32.mxu0 0.0
      %4470 = vmatmul.mubr.f32.gmra.mrb[0].mxu0 %v4259
      %v4471 = vpop.f32.mrb[0].mxu0
      %v4472 = vadd.f32 0.0, %v4471
      %v4473 = vpop.f32.mrb[0].mxu0
      %4474 = vmatprep.mubr.f32.mxu0 0.0
      %4475 = vmatmul.mubr.f32.gmra.mrb[0].mxu0 %v4262
      %v4476 = vpop.f32.mrb[0].mxu0
      %v4477 = vadd.f32 0.0, %v4476
      %v4478 = vpop.f32.mrb[0].mxu0
      %4479 = vmatprep.mubr.f32.mxu0 0.0
      %4480 = vmatmul.mubr.f32.gmra.mrb[0].mxu0 %v4265
      %v4481 = vpop.f32.mrb[0].mxu0
      %v4482 = vadd.f32 0.0, %v4481
      %v4483 = vpop.f32.mrb[0].mxu0
      %4484 = vmatprep.mubr.f32.mxu0 0.0
      %4485 = vmatmul.mubr.f32.gmra.mrb[0].mxu0 %v4268
      %v4486 = vpop.f32.mrb[0].mxu0
      %v4487 = vadd.f32 0.0, %v4486
      %v4488 = vpop.f32.mrb[0].mxu0
      %4489 = vmatprep.mubr.f32.mxu0 0.0
      %4490 = vmatmul.mubr.f32.gmra.mrb[0].mxu0 %v4271
      %v4491 = vpop.f32.mrb[0].mxu0
      %v4492 = vadd.f32 0.0, %v4491
      %v4493 = vpop.f32.mrb[0].mxu0
      %4494 = vmatprep.mubr.f32.mxu0 0.0
      %4495 = vmatmul.mubr.f32.gmra.mrb[0].mxu0 %v4274
      %v4496 = vpop.f32.mrb[0].mxu0
      %v4497 = vadd.f32 0.0, %v4496
      %v4498 = vpop.f32.mrb[0].mxu0
      %4499 = vmatprep.mubr.f32.mxu0 0.0
      %4500 = vmatmul.mubr.f32.gmra.mrb[0].mxu0 %v4277
      %v4501 = vpop.f32.mrb[0].mxu0
      %v4502 = vadd.f32 0.0, %v4501
      %v4503 = vpop.f32.mrb[0].mxu0
      %4504 = vmatprep.mubr.f32.mxu0 0.0
      %4505 = vmatmul.mubr.f32.gmra.mrb[0].mxu0 %v4280
      %v4506 = vpop.f32.mrb[0].mxu0
      %v4507 = vadd.f32 0.0, %v4506
      %v4508 = vpop.f32.mrb[0].mxu0
      %4509 = vdwg.mxu0
      %v4510 = vld [vmem:[%s5] sm:$0x1]
      %v4512 = vlaneseq
      %v4513 = vshrl.u32 %v4512, 7
      %v4514 = vsub.s32 0, %v4513
      %v4515 = vrot.slane %v4510, %v4514
      %v4517 = vmul.f32 %v4352, %v4515
      %v4518 = vmul.f32 %v4357, %v4515
      %v4519 = vmul.f32 %v4362, %v4515
      %v4520 = vmul.f32 %v4367, %v4515
      %v4521 = vmul.f32 %v4372, %v4515
      %v4522 = vmul.f32 %v4377, %v4515
      %v4523 = vmul.f32 %v4382, %v4515
      %v4524 = vmul.f32 %v4387, %v4515
      %v4525 = vmul.f32 %v4392, %v4515
      %v4526 = vmul.f32 %v4397, %v4515
      %v4527 = vmul.f32 %v4402, %v4515
      %v4528 = vmul.f32 %v4407, %v4515
      %v4529 = vmul.f32 %v4412, %v4515
      %v4530 = vmul.f32 %v4417, %v4515
      %v4531 = vmul.f32 %v4422, %v4515
      %v4532 = vmul.f32 %v4427, %v4515
      %v4533 = vmul.f32 %v4432, %v4515
      %v4534 = vmul.f32 %v4437, %v4515
      %v4535 = vmul.f32 %v4442, %v4515
      %v4536 = vmul.f32 %v4447, %v4515
      %v4537 = vmul.f32 %v4452, %v4515
      %v4538 = vmul.f32 %v4457, %v4515
      %v4539 = vmul.f32 %v4462, %v4515
      %v4540 = vmul.f32 %v4467, %v4515
      %v4541 = vmul.f32 %v4472, %v4515
      %v4542 = vmul.f32 %v4477, %v4515
      %v4543 = vmul.f32 %v4482, %v4515
      %v4544 = vmul.f32 %v4487, %v4515
      %v4545 = vmul.f32 %v4492, %v4515
      %v4546 = vmul.f32 %v4497, %v4515
      %v4547 = vmul.f32 %v4502, %v4515
      %v4548 = vmul.f32 %v4507, %v4515
      %v4549 = vld [vmem:[%s6] sm:$0x1]
      %v4551 = vlaneseq
      %v4552 = vshrl.u32 %v4551, 7
      %v4553 = vsub.s32 0, %v4552
      %v4554 = vrot.slane %v4549, %v4553
      %v4556 = vadd.f32 %v4517, %v4554
      %v4557 = vadd.f32 %v4518, %v4554
      %v4558 = vadd.f32 %v4519, %v4554
      %v4559 = vadd.f32 %v4520, %v4554
      %v4560 = vadd.f32 %v4521, %v4554
      %v4561 = vadd.f32 %v4522, %v4554
      %v4562 = vadd.f32 %v4523, %v4554
      %v4563 = vadd.f32 %v4524, %v4554
      %v4564 = vadd.f32 %v4525, %v4554
      %v4565 = vadd.f32 %v4526, %v4554
      %v4566 = vadd.f32 %v4527, %v4554
      %v4567 = vadd.f32 %v4528, %v4554
      %v4568 = vadd.f32 %v4529, %v4554
      %v4569 = vadd.f32 %v4530, %v4554
      %v4570 = vadd.f32 %v4531, %v4554
      %v4571 = vadd.f32 %v4532, %v4554
      %v4572 = vadd.f32 %v4533, %v4554
      %v4573 = vadd.f32 %v4534, %v4554
      %v4574 = vadd.f32 %v4535, %v4554
      %v4575 = vadd.f32 %v4536, %v4554
      %v4576 = vadd.f32 %v4537, %v4554
      %v4577 = vadd.f32 %v4538, %v4554
      %v4578 = vadd.f32 %v4539, %v4554
      %v4579 = vadd.f32 %v4540, %v4554
      %v4580 = vadd.f32 %v4541, %v4554
      %v4581 = vadd.f32 %v4542, %v4554
      %v4582 = vadd.f32 %v4543, %v4554
      %v4583 = vadd.f32 %v4544, %v4554
      %v4584 = vadd.f32 %v4545, %v4554
      %v4585 = vadd.f32 %v4546, %v4554
      %v4586 = vadd.f32 %v4547, %v4554
      %v4587 = vadd.f32 %v4548, %v4554
      %v4588 = vld [vmem:[%s400 + $0x1] sm:$0xff]
      %v4589 = vld [vmem:[%s400 + $0x9] sm:$0xff]
      %v4590 = vld [vmem:[%s400 + $0x19] sm:$0xff]
      %v4591 = vld [vmem:[%s400 + $0x21] sm:$0xff]
      %v4592 = vld [vmem:[%s400 + $0x31] sm:$0xff]
      %v4593 = vld [vmem:[%s400 + $0x39] sm:$0xff]
      %v4594 = vld [vmem:[%s400 + $0x49] sm:$0xff]
      %v4595 = vld [vmem:[%s400 + $0x51] sm:$0xff]
      %v4596 = vld [vmem:[%s400 + $0x61] sm:$0xff]
      %v4597 = vld [vmem:[%s400 + $0x69] sm:$0xff]
      %v4598 = vld [vmem:[%s400 + $0x79] sm:$0xff]
      %v4599 = vld [vmem:[%s400 + $0x81] sm:$0xff]
      %v4600 = vld [vmem:[%s400 + $0x91] sm:$0xff]
      %v4601 = vld [vmem:[%s400 + $0x99] sm:$0xff]
      %v4602 = vld [vmem:[%s400 + $0xa9] sm:$0xff]
      %v4603 = vld [vmem:[%s400 + $0xb1] sm:$0xff]
      %v4604 = vld [vmem:[%s400 + $0xc1] sm:$0xff]
      %v4605 = vld [vmem:[%s400 + $0xc9] sm:$0xff]
      %v4606 = vld [vmem:[%s400 + $0xd9] sm:$0xff]
      %v4607 = vld [vmem:[%s400 + $0xe1] sm:$0xff]
      %v4608 = vld [vmem:[%s400 + $0xf1] sm:$0xff]
      %v4609 = vld [vmem:[%s400 + $0xf9] sm:$0xff]
      %v4610 = vld [vmem:[%s400 + $0x109] sm:$0xff]
      %v4611 = vld [vmem:[%s400 + $0x111] sm:$0xff]
      %v4612 = vld [vmem:[%s400 + $0x121] sm:$0xff]
      %v4613 = vld [vmem:[%s400 + $0x129] sm:$0xff]
      %v4614 = vld [vmem:[%s400 + $0x139] sm:$0xff]
      %v4615 = vld [vmem:[%s400 + $0x141] sm:$0xff]
      %v4616 = vld [vmem:[%s400 + $0x151] sm:$0xff]
      %v4617 = vld [vmem:[%s400 + $0x159] sm:$0xff]
      %v4618 = vld [vmem:[%s400 + $0x169] sm:$0xff]
      %v4619 = vld [vmem:[%s400 + $0x171] sm:$0xff]
      %v4620 = vadd.f32 %v4556, %v4588
      %v4621 = vadd.f32 %v4557, %v4589
      %v4622 = vadd.f32 %v4558, %v4590
      %v4623 = vadd.f32 %v4559, %v4591
      %v4624 = vadd.f32 %v4560, %v4592
      %v4625 = vadd.f32 %v4561, %v4593
      %v4626 = vadd.f32 %v4562, %v4594
      %v4627 = vadd.f32 %v4563, %v4595
      %v4628 = vadd.f32 %v4564, %v4596
      %v4629 = vadd.f32 %v4565, %v4597
      %v4630 = vadd.f32 %v4566, %v4598
      %v4631 = vadd.f32 %v4567, %v4599
      %v4632 = vadd.f32 %v4568, %v4600
      %v4633 = vadd.f32 %v4569, %v4601
      %v4634 = vadd.f32 %v4570, %v4602
      %v4635 = vadd.f32 %v4571, %v4603
      %v4636 = vadd.f32 %v4572, %v4604
      %v4637 = vadd.f32 %v4573, %v4605
      %v4638 = vadd.f32 %v4574, %v4606
      %v4639 = vadd.f32 %v4575, %v4607
      %v4640 = vadd.f32 %v4576, %v4608
      %v4641 = vadd.f32 %v4577, %v4609
      %v4642 = vadd.f32 %v4578, %v4610
      %v4643 = vadd.f32 %v4579, %v4611
      %v4644 = vadd.f32 %v4580, %v4612
      %v4645 = vadd.f32 %v4581, %v4613
      %v4646 = vadd.f32 %v4582, %v4614
      %v4647 = vadd.f32 %v4583, %v4615
      %v4648 = vadd.f32 %v4584, %v4616
      %v4649 = vadd.f32 %v4585, %v4617
      %v4650 = vadd.f32 %v4586, %v4618
      %v4651 = vadd.f32 %v4587, %v4619
      %v4652 = vmax.f32 %v4620, 0.0
      %v4653 = vmax.f32 %v4621, 0.0
      %v4654 = vmax.f32 %v4622, 0.0
      %v4655 = vmax.f32 %v4623, 0.0
      %v4656 = vmax.f32 %v4624, 0.0
      %v4657 = vmax.f32 %v4625, 0.0
      %v4658 = vmax.f32 %v4626, 0.0
      %v4659 = vmax.f32 %v4627, 0.0
      %v4660 = vmax.f32 %v4628, 0.0
      %v4661 = vmax.f32 %v4629, 0.0
      %v4662 = vmax.f32 %v4630, 0.0
      %v4663 = vmax.f32 %v4631, 0.0
      %v4664 = vmax.f32 %v4632, 0.0
      %v4665 = vmax.f32 %v4633, 0.0
      %v4666 = vmax.f32 %v4634, 0.0
      %v4667 = vmax.f32 %v4635, 0.0
      %v4668 = vmax.f32 %v4636, 0.0
      %v4669 = vmax.f32 %v4637, 0.0
      %v4670 = vmax.f32 %v4638, 0.0
      %v4671 = vmax.f32 %v4639, 0.0
      %v4672 = vmax.f32 %v4640, 0.0
      %v4673 = vmax.f32 %v4641, 0.0
      %v4674 = vmax.f32 %v4642, 0.0
      %v4675 = vmax.f32 %v4643, 0.0
      %v4676 = vmax.f32 %v4644, 0.0
      %v4677 = vmax.f32 %v4645, 0.0
      %v4678 = vmax.f32 %v4646, 0.0
      %v4679 = vmax.f32 %v4647, 0.0
      %v4680 = vmax.f32 %v4648, 0.0
      %v4681 = vmax.f32 %v4649, 0.0
      %v4682 = vmax.f32 %v4650, 0.0
      %v4683 = vmax.f32 %v4651, 0.0
      %4684 = vst.msk [vmem:[%s278] sm:$0xff] %vm279, %v4652
      %4685 = vst.msk [vmem:[%s278 + $0x8] sm:$0xff] %vm279, %v4653
      %4686 = vst.msk [vmem:[%s278 + $0x10] sm:$0xff] %vm279, %v4654
      %4687 = vst.msk [vmem:[%s278 + $0x18] sm:$0xff] %vm279, %v4655
      %4688 = vst.msk [vmem:[%s278 + $0x20] sm:$0xff] %vm279, %v4656
      %4689 = vst.msk [vmem:[%s278 + $0x28] sm:$0xff] %vm279, %v4657
      %4690 = vst.msk [vmem:[%s278 + $0x30] sm:$0xff] %vm279, %v4658
      %4691 = vst.msk [vmem:[%s278 + $0x38] sm:$0xff] %vm279, %v4659
      %4692 = vst.msk [vmem:[%s278 + $0x40] sm:$0xff] %vm279, %v4660
      %4693 = vst.msk [vmem:[%s278 + $0x48] sm:$0xff] %vm279, %v4661
      %4694 = vst.msk [vmem:[%s278 + $0x50] sm:$0xff] %vm279, %v4662
      %4695 = vst.msk [vmem:[%s278 + $0x58] sm:$0xff] %vm279, %v4663
      %4696 = vst.msk [vmem:[%s278 + $0x60] sm:$0xff] %vm279, %v4664
      %4697 = vst.msk [vmem:[%s278 + $0x68] sm:$0xff] %vm279, %v4665
      %4698 = vst.msk [vmem:[%s278 + $0x70] sm:$0xff] %vm279, %v4666
      %4699 = vst.msk [vmem:[%s278 + $0x78] sm:$0xff] %vm279, %v4667
      %4700 = vst.msk [vmem:[%s278 + $0x80] sm:$0xff] %vm279, %v4668
      %4701 = vst.msk [vmem:[%s278 + $0x88] sm:$0xff] %vm279, %v4669
      %4702 = vst.msk [vmem:[%s278 + $0x90] sm:$0xff] %vm279, %v4670
      %4703 = vst.msk [vmem:[%s278 + $0x98] sm:$0xff] %vm279, %v4671
      %4704 = vst.msk [vmem:[%s278 + $0xa0] sm:$0xff] %vm279, %v4672
      %4705 = vst.msk [vmem:[%s278 + $0xa8] sm:$0xff] %vm279, %v4673
      %4706 = vst.msk [vmem:[%s278 + $0xb0] sm:$0xff] %vm279, %v4674
      %4707 = vst.msk [vmem:[%s278 + $0xb8] sm:$0xff] %vm279, %v4675
      %4708 = vst.msk [vmem:[%s278 + $0xc0] sm:$0xff] %vm279, %v4676
      %4709 = vst.msk [vmem:[%s278 + $0xc8] sm:$0xff] %vm279, %v4677
      %4710 = vst.msk [vmem:[%s278 + $0xd0] sm:$0xff] %vm279, %v4678
      %4711 = vst.msk [vmem:[%s278 + $0xd8] sm:$0xff] %vm279, %v4679
      %4712 = vst.msk [vmem:[%s278 + $0xe0] sm:$0xff] %vm279, %v4680
      %4713 = vst.msk [vmem:[%s278 + $0xe8] sm:$0xff] %vm279, %v4681
      %4714 = vst.msk [vmem:[%s278 + $0xf0] sm:$0xff] %vm279, %v4682
      %4715 = vst.msk [vmem:[%s278 + $0xf8] sm:$0xff] %vm279, %v4683
      %p4716 = scmp.lt.s32.totalorder %s18, 1
      %s4717 = scalar_select %p4716, %s18, 1
      %s4718 = smul.addr %s4717, 32
      %s4719 = smul.addr %s4718, 8
      %s4720 = scalar_lea.vmem %s7, %s4719
      // Predicated region
      $region49: #{basic_block_forward.1} parent=47 // pred_check
        %p4721 = pneg %p188
      $region50: #{basic_block_forward.1} parent=47 // pred_check_branch
        %4723 = sbr.rel (%p4721) target = $region52
      $region51: #{basic_block_forward.1} parent=47 // pred_region
        _
      $region52: #{basic_block_forward.1} parent=47 // pred_fallthru
        _
    $region48: #{basic_block_forward.1} parent=5 // pred_fallthru
      _
    %p4724 = scmp.le.s32.totalorder 2, %s13
    // Predicated region
    $region53: #{basic_block_forward.1} parent=5 // pred_check
      %p4725 = pneg %p4724
    $region54: #{basic_block_forward.1} parent=5 // pred_check_branch
      %4727 = sbr.rel (%p4725) target = $region56
    $region55: #{basic_block_forward.1} parent=5 // pred_region
      %s4728 = ssub.s32 %s13, 2
      // Predicated region
      $region57: #{basic_block_forward.1} parent=55 // pred_check
        %p4729 = pneg %p194
      $region58: #{basic_block_forward.1} parent=55 // pred_check_branch
        %4731 = sbr.rel (%p4729) target = $region60
      $region59: #{basic_block_forward.1} parent=55 // pred_region
        %p4732 = scmp.lt.s32.totalorder %s19, 1
        %s4733 = scalar_select %p4732, %s19, 1
        %s4734 = smul.addr %s4733, 32
        %s4735 = smul.addr %s4734, 8
        %s4736 = scalar_lea.vmem %s7, %s4735
      $region60: #{basic_block_forward.1} parent=55 // pred_fallthru
        _
    $region56: #{basic_block_forward.1} parent=5 // pred_fallthru
      _
  $region6: #{basic_block_forward.1} parent=0 // loop_footer
    %s17 = sadd.s32 1, %s13
  $region7: #{basic_block_forward.1} parent=0 // loop_footer_branch
    %12 = sbr.rel target = $region3
  $region8: #{basic_block_forward.1} parent=0 // loop_exit
    _

</llo_original>
